<compile_context>
chip_gen: v7x
topology: tpu7x:2x2x1
jax: 0.10.0
libtpu: 0.0.40
codegen_flags: <defaults>
</compile_context>

<pallas_src>
import functools

import jax
import jax.numpy as jnp
from jax import lax
from jax.experimental import pallas as pl
from jax.experimental.pallas import tpu as pltpu

_EPS = 1e-5  # CLIP LayerNorm eps


# ------------------------------- small helpers --------------------------------

def _vmem_limit_bytes():
    """Generation-aware VMEM budget (128 MiB on v5e/v6e, 64 MiB on v7x)."""
    try:
        cap = int(pltpu.get_tpu_info().vmem_capacity_bytes)
    except Exception:
        cap = 64 * 1024 * 1024
    return min(int(cap * 0.8), 100 * 1024 * 1024)


def _cparams(dim_sem):
    return pltpu.CompilerParams(
        dimension_semantics=dim_sem,
        vmem_limit_bytes=_vmem_limit_bytes(),
    )


def _round_up(x, m):
    return (x + m - 1) // m * m


def _row_tile(m, cap=128):
    """Largest divisor of m <= cap, preferring multiples of 16 (bf16), else 8."""
    cap = min(m, cap)
    for step in (16, 8):
        c = cap - cap % step
        for t in range(c, step - 1, -step):
            if m % t == 0:
                return t
    return m


def _head_group(n_heads, hd):
    """Largest group size dividing n_heads with group*hd <= 256 (MXU depth)."""
    best = 1
    for g in range(1, n_heads + 1):
        if n_heads % g == 0 and g * hd <= 256:
            best = g
    return best


def _layernorm_f32(x, g, b, eps):
    mu = jnp.mean(x, axis=-1, keepdims=True)
    var = jnp.mean(jnp.square(x - mu), axis=-1, keepdims=True)
    return (x - mu) * lax.rsqrt(var + eps) * g + b


# --------------------------- fused Pallas kernels ------------------------------

def _attn_kernel(x_ref, g_ref, b_ref, w_ref, wb_ref, ow_ref, ob_ref,
                 o_ref, ogrp_ref, acc_ref, *, eps, n_groups, group, scale):
    """LN1 + QKV (head-major) + causal MHA + O-proj + residual for one
    (batch, head-group) grid step; accumulates over head groups."""
    hg = pl.program_id(1)

    x = x_ref[0].astype(jnp.float32)                         # (S, D) residual
    h16 = _layernorm_f32(x, g_ref[...], b_ref[...], eps).astype(jnp.bfloat16)
    S = x.shape[0]
    hd = w_ref.shape[-1]

    # Causal additive mask (pad rows sit at the end -> valid queries never see
    # pad keys). Scores stay f32, so -1e9 is safe.
    row = lax.broadcasted_iota(jnp.int32, (S, S), 0)
    col = lax.broadcasted_iota(jnp.int32, (S, S), 1)
    neg = jnp.where(col <= row, 0.0, -1e9).astype(jnp.float32)

    for hi in range(group):
        # Head-major weights: leading-dim indexing, no lane slicing of QKV.
        q = jnp.dot(h16, w_ref[hi, 0], preferred_element_type=jnp.float32) + wb_ref[hi, 0]
        k = jnp.dot(h16, w_ref[hi, 1], preferred_element_type=jnp.float32) + wb_ref[hi, 1]
        v = jnp.dot(h16, w_ref[hi, 2], preferred_element_type=jnp.float32) + wb_ref[hi, 2]

        s = lax.dot_general(q.astype(jnp.bfloat16), k.astype(jnp.bfloat16),
                            (((1,), (1,)), ((), ())),
                            preferred_element_type=jnp.float32)
        s = s * scale + neg
        m = jnp.max(s, axis=-1, keepdims=True)
        p = jnp.exp(s - m)
        p = p * pl.reciprocal(jnp.sum(p, axis=-1, keepdims=True), approx=True)
        o_h = jnp.dot(p.astype(jnp.bfloat16), v.astype(jnp.bfloat16),
                      preferred_element_type=jnp.float32)
        # Collect head outputs head-contiguously in VMEM scratch.
        ogrp_ref[:, hi * hd:(hi + 1) * hd] = o_h.astype(jnp.bfloat16)

    @pl.when(hg == 0)
    def _():
        acc_ref[...] = x + ob_ref[...]            # residual + o-proj bias (f32)

    # Single O-projection per head group: (S, G*hd) @ (G*hd, D), K = G*hd.
    acc_ref[...] += jnp.dot(ogrp_ref[...], ow_ref[...],
                            preferred_element_type=jnp.float32)

    @pl.when(hg == n_groups - 1)
    def _():
        o_ref[0] = acc_ref[...].astype(o_ref.dtype)


def _mlp_kernel(*refs, eps, fuse_final_ln):
    """LN2 + fc1 + quickGELU + fc2 + residual (+ optional final LayerNorm)."""
    if fuse_final_ln:
        (x_ref, g_ref, b_ref, w1_ref, b1_ref, w2_ref, b2_ref,
         fg_ref, fb_ref, o_ref) = refs
    else:
        x_ref, g_ref, b_ref, w1_ref, b1_ref, w2_ref, b2_ref, o_ref = refs
        fg_ref = fb_ref = None

    x = x_ref[...].astype(jnp.float32)
    h = _layernorm_f32(x, g_ref[...], b_ref[...], eps)
    h1 = jnp.dot(h.astype(jnp.bfloat16), w1_ref[...],
                 preferred_element_type=jnp.float32) + b1_ref[...]
    h1 = h1 * jax.nn.sigmoid(1.702 * h1)                 # quickGELU (f32, EUP)
    y = jnp.dot(h1.astype(jnp.bfloat16), w2_ref[...],
                preferred_element_type=jnp.float32) + b2_ref[...]
    out = x + y
    if fuse_final_ln:
        out = _layernorm_f32(out, fg_ref[...], fb_ref[...], eps)
    o_ref[...] = out.astype(o_ref.dtype)


# ------------------------------ Pallas wrappers --------------------------------

def attn_block(x3, ln_g, ln_b, qkv_w, qkv_b, o_w, o_b, *, n_heads, group):
    """x3: (B, S_pad, D) bf16 -> (B, S_pad, D) bf16 (attn block incl. residual)."""
    B, S, D = x3.shape
    hd = D // n_heads
    n_groups = n_heads // group
    scale = hd ** -0.5

    kernel = functools.partial(_attn_kernel, eps=_EPS, n_groups=n_groups,
                               group=group, scale=scale)
    return pl.pallas_call(
        kernel,
        out_shape=jax.ShapeDtypeStruct((B, S, D), jnp.bfloat16),
        grid_spec=pltpu.PrefetchScalarGridSpec(
            num_scalar_prefetch=0,
            grid=(B, n_groups),
            in_specs=[
                pl.BlockSpec((1, S, D), lambda b, hg: (b, 0, 0)),            # x
                pl.BlockSpec((1, D), lambda b, hg: (0, 0)),                  # ln1_g
                pl.BlockSpec((1, D), lambda b, hg: (0, 0)),                  # ln1_b
                pl.BlockSpec((group, 3, D, hd), lambda b, hg: (hg, 0, 0, 0)),  # qkv_w
                pl.BlockSpec((group, 3, 1, hd), lambda b, hg: (hg, 0, 0, 0)),  # qkv_b
                pl.BlockSpec((group * hd, D), lambda b, hg: (hg, 0)),        # o_w rows
                pl.BlockSpec((1, D), lambda b, hg: (0, 0)),                  # o_b
            ],
            out_specs=pl.BlockSpec((1, S, D), lambda b, hg: (b, 0, 0)),
            scratch_shapes=[
                pltpu.VMEM((S, group * hd), jnp.bfloat16),   # head-group output
                pltpu.VMEM((S, D), jnp.float32),             # f32 accumulator
            ],
        ),
        compiler_params=_cparams(("parallel", "arbitrary")),
    )(x3, ln_g, ln_b, qkv_w, qkv_b, o_w, o_b)


def mlp_block(x, ln_g, ln_b, w1, b1, w2, b2, *, final_ln=None,
              out_dtype=jnp.bfloat16):
    """x: (M_pad, D) bf16 -> (M_pad, D) MLP block incl. residual (+final LN)."""
    M, D = x.shape
    F = w1.shape[1]
    tm = _row_tile(M)
    fuse = final_ln is not None

    arrays = [x, ln_g, ln_b, w1, b1, w2, b2]
    in_specs = [
        pl.BlockSpec((tm, D), lambda i: (i, 0)),
        pl.BlockSpec((1, D), lambda i: (0, 0)),
        pl.BlockSpec((1, D), lambda i: (0, 0)),
        pl.BlockSpec((D, F), lambda i: (0, 0)),
        pl.BlockSpec((1, F), lambda i: (0, 0)),
        pl.BlockSpec((F, D), lambda i: (0, 0)),
        pl.BlockSpec((1, D), lambda i: (0, 0)),
    ]
    if fuse:
        arrays += [final_ln[0], final_ln[1]]
        in_specs += [pl.BlockSpec((1, D), lambda i: (0, 0)),
                     pl.BlockSpec((1, D), lambda i: (0, 0))]

    return pl.pallas_call(
        functools.partial(_mlp_kernel, eps=_EPS, fuse_final_ln=fuse),
        out_shape=jax.ShapeDtypeStruct((M, D), out_dtype),
        grid_spec=pltpu.PrefetchScalarGridSpec(
            num_scalar_prefetch=0,
            grid=(M // tm,),
            in_specs=in_specs,
            out_specs=pl.BlockSpec((tm, D), lambda i: (i, 0)),
        ),
        compiler_params=_cparams(("parallel",)),
    )(*arrays)


# ------------------------------ CLIP text model --------------------------------

def init_params(key, *, vocab, d_model, n_heads, n_layers, d_mlp, max_length):
    hd = d_model // n_heads
    keys = jax.random.split(key, 2 + n_layers)
    std = 0.02
    params = {
        "token_emb": std * jax.random.normal(keys[0], (vocab, d_model), jnp.float32),
        "pos_emb": std * jax.random.normal(keys[1], (max_length, d_model), jnp.float32),
        "lnf_g": jnp.ones((1, d_model), jnp.float32),
        "lnf_b": jnp.zeros((1, d_model), jnp.float32),
        "layers": [],
    }

    def head_major(w):  # (D, D) -> (n_heads, D, hd)
        return jnp.transpose(w.reshape(d_model, n_heads, hd), (1, 0, 2))

    for li in range(n_layers):
        ks = jax.random.split(keys[2 + li], 6)
        q_w = std * jax.random.normal(ks[0], (d_model, d_model), jnp.float32)
        k_w = std * jax.random.normal(ks[1], (d_model, d_model), jnp.float32)
        v_w = std * jax.random.normal(ks[2], (d_model, d_model), jnp.float32)
        qkv_w = jnp.stack([head_major(q_w), head_major(k_w), head_major(v_w)],
                          axis=1)                             # (n_heads, 3, D, hd)
        layer = {
            "ln1_g": jnp.ones((1, d_model), jnp.float32),
            "ln1_b": jnp.zeros((1, d_model), jnp.float32),
            "qkv_w": qkv_w.astype(jnp.bfloat16),
            "qkv_b": jnp.zeros((n_heads, 3, 1, hd), jnp.float32),
            "o_w": (std * jax.random.normal(ks[3], (d_model, d_model),
                                            jnp.float32)).astype(jnp.bfloat16),
            "o_b": jnp.zeros((1, d_model), jnp.float32),
            "ln2_g": jnp.ones((1, d_model), jnp.float32),
            "ln2_b": jnp.zeros((1, d_model), jnp.float32),
            "fc1_w": (std * jax.random.normal(ks[4], (d_model, d_mlp),
                                              jnp.float32)).astype(jnp.bfloat16),
            "fc1_b": jnp.zeros((1, d_mlp), jnp.float32),
            "fc2_w": (std * jax.random.normal(ks[5], (d_mlp, d_model),
                                              jnp.float32)).astype(jnp.bfloat16),
            "fc2_b": jnp.zeros((1, d_model), jnp.float32),
        }
        params["layers"].append(layer)
    return params


def clip_text_forward(params, tokens, *, n_heads):
    """Equivalent of CLIPTextModel(input_ids=tokens).last_hidden_state."""
    B, S = tokens.shape
    D = params["token_emb"].shape[1]
    hd = D // n_heads
    group = _head_group(n_heads, hd)

    # Embedding gather (plain JAX glue).
    x = jnp.take(params["token_emb"], tokens, axis=0) + params["pos_emb"][None, :S, :]

    # Pad the token axis to a multiple of 8 so the kernels get real grids
    # (pad rows appended at the end: causal mask keeps valid rows unaffected).
    S_pad = _round_up(S, 8)
    x = jnp.pad(x, ((0, 0), (0, S_pad - S), (0, 0))).astype(jnp.bfloat16)

    n_layers = len(params["layers"])
    for li, layer in enumerate(params["layers"]):
        # --- attention block: LN1 + QKV + causal MHA + O-proj + residual ---
        x = attn_block(x, layer["ln1_g"], layer["ln1_b"],
                       layer["qkv_w"], layer["qkv_b"], layer["o_w"], layer["o_b"],
                       n_heads=n_heads, group=group)

        # --- MLP block (pre-LN, quickGELU) + residual; final LN fused on last ---
        is_last = li == n_layers - 1
        x2 = mlp_block(
            x.reshape(B * S_pad, D),
            layer["ln2_g"], layer["ln2_b"],
            layer["fc1_w"], layer["fc1_b"], layer["fc2_w"], layer["fc2_b"],
            final_ln=(params["lnf_g"], params["lnf_b"]) if is_last else None,
            out_dtype=jnp.float32 if is_last else jnp.bfloat16,
        )
        x = x2.reshape(B, S_pad, D)

    return x[:, :S, :]   # drop pad rows -> last_hidden_state


# ----------------------------------- main ---------------------------------------

if __name__ == "__main__":
    # Small synthetic CLIP text config (real ViT-L/14: S=77, D=768, 12 heads).
    # S=7 deliberately exercises the pad-to-multiple-of-8 path.
    B, S = 2, 7
    cfg = dict(vocab=1000, d_model=128, n_heads=2, n_layers=2, d_mlp=512,
               max_length=S)

    key = jax.random.PRNGKey(0)
    params = init_params(key, **cfg)

    # TODO(synk): CLIPTokenizer (BPE text -> ids) has no Pallas equivalent;
    # deterministic token ids are fed directly instead of raw strings.
    tokens = jax.random.randint(
        jax.random.fold_in(key, 123), (B, S), 0, cfg["vocab"], dtype=jnp.int32)

    fwd = jax.jit(functools.partial(clip_text_forward, n_heads=cfg["n_heads"]))
    z = fwd(params, tokens)
    z = jax.block_until_ready(z)

    assert z.shape == (B, S, cfg["d_model"]), z.shape
    assert z.dtype == jnp.float32, z.dtype
    assert bool(jnp.all(jnp.isfinite(z)))
    print("KERNEL_OK")
</pallas_src>

<mosaic_0001>
module attributes {stable_mosaic.version = 11 : i64} {
  func.func @_mlp_kernel(%arg0: i32, %arg1: memref<16x128xbf16, #tpu.memory_space<vmem>>, %arg2: memref<1x128xf32, #tpu.memory_space<vmem>>, %arg3: memref<1x128xf32, #tpu.memory_space<vmem>>, %arg4: memref<128x512xbf16, #tpu.memory_space<vmem>>, %arg5: memref<1x512xf32, #tpu.memory_space<vmem>>, %arg6: memref<512x128xbf16, #tpu.memory_space<vmem>>, %arg7: memref<1x128xf32, #tpu.memory_space<vmem>>, %arg8: memref<16x128xbf16, #tpu.memory_space<vmem>>) attributes {dimension_semantics = [#tpu.dimension_semantics<parallel>], iteration_bounds = array<i64: 1>, scalar_prefetch = 0 : i64, scratch_operands = 0 : i64, tpu.core_type = #tpu.core_type<tc>, window_params = [{transform_indices = @transform_0, window_bounds = array<i64: 16, 128>}, {pipeline_mode = #tpu.pipeline_mode<synchronous>, transform_indices = @transform_1, window_bounds = array<i64: 1, 128>}, {pipeline_mode = #tpu.pipeline_mode<synchronous>, transform_indices = @transform_2, window_bounds = array<i64: 1, 128>}, {pipeline_mode = #tpu.pipeline_mode<synchronous>, transform_indices = @transform_3, window_bounds = array<i64: 128, 512>}, {pipeline_mode = #tpu.pipeline_mode<synchronous>, transform_indices = @transform_4, window_bounds = array<i64: 1, 512>}, {pipeline_mode = #tpu.pipeline_mode<synchronous>, transform_indices = @transform_5, window_bounds = array<i64: 512, 128>}, {pipeline_mode = #tpu.pipeline_mode<synchronous>, transform_indices = @transform_6, window_bounds = array<i64: 1, 128>}, {transform_indices = @transform_7, window_bounds = array<i64: 16, 128>}]} {
    %c0 = arith.constant 0 : index
    %c0_0 = arith.constant 0 : index
    %0 = vector.load %arg1[%c0, %c0_0] : memref<16x128xbf16, #tpu.memory_space<vmem>>, vector<16x128xbf16>
    %1 = arith.extf %0 : vector<16x128xbf16> to vector<16x128xf32>
    %c0_1 = arith.constant 0 : index
    %c0_2 = arith.constant 0 : index
    %2 = vector.load %arg2[%c0_1, %c0_2] : memref<1x128xf32, #tpu.memory_space<vmem>>, vector<1x128xf32>
    %c0_3 = arith.constant 0 : index
    %c0_4 = arith.constant 0 : index
    %3 = vector.load %arg3[%c0_3, %c0_4] : memref<1x128xf32, #tpu.memory_space<vmem>>, vector<1x128xf32>
    %cst = arith.constant dense<0.000000e+00> : vector<16xf32>
    %4 = vector.multi_reduction <add>, %1, %cst [1] : vector<16x128xf32> to vector<16xf32>
    %5 = vector.shape_cast %4 : vector<16xf32> to vector<16x1xf32>
    %cst_5 = arith.constant 1.280000e+02 : f32
    %6 = vector.broadcast %cst_5 : f32 to vector<16x1xf32>
    %7 = arith.divf %5, %6 : vector<16x1xf32>
    %8 = vector.broadcast %7 : vector<16x1xf32> to vector<16x128xf32>
    %9 = arith.subf %1, %8 : vector<16x128xf32>
    %10 = arith.mulf %9, %9 : vector<16x128xf32>
    %cst_6 = arith.constant dense<0.000000e+00> : vector<16xf32>
    %11 = vector.multi_reduction <add>, %10, %cst_6 [1] : vector<16x128xf32> to vector<16xf32>
    %12 = vector.shape_cast %11 : vector<16xf32> to vector<16x1xf32>
    %cst_7 = arith.constant 1.280000e+02 : f32
    %13 = vector.broadcast %cst_7 : f32 to vector<16x1xf32>
    %14 = arith.divf %12, %13 : vector<16x1xf32>
    %15 = vector.broadcast %7 : vector<16x1xf32> to vector<16x128xf32>
    %16 = arith.subf %1, %15 : vector<16x128xf32>
    %cst_8 = arith.constant 9.99999974E-6 : f32
    %17 = vector.broadcast %cst_8 : f32 to vector<16x1xf32>
    %18 = arith.addf %14, %17 : vector<16x1xf32>
    %19 = math.rsqrt %18 : vector<16x1xf32>
    %20 = vector.broadcast %19 : vector<16x1xf32> to vector<16x128xf32>
    %21 = arith.mulf %16, %20 : vector<16x128xf32>
    %22 = vector.broadcast %2 : vector<1x128xf32> to vector<16x128xf32>
    %23 = arith.mulf %21, %22 : vector<16x128xf32>
    %24 = vector.broadcast %3 : vector<1x128xf32> to vector<16x128xf32>
    %25 = arith.addf %23, %24 : vector<16x128xf32>
    %26 = arith.truncf %25 : vector<16x128xf32> to vector<16x128xbf16>
    %c0_9 = arith.constant 0 : index
    %c0_10 = arith.constant 0 : index
    %27 = vector.load %arg4[%c0_9, %c0_10] : memref<128x512xbf16, #tpu.memory_space<vmem>>, vector<128x512xbf16>
    %cst_11 = arith.constant dense<0.000000e+00> : vector<16x512xf32>
    %28 = tpu.matmul %26, %27, %cst_11 {dimension_numbers = #tpu.dot_dimension_numbers<[1], [0], [0], [1], [0, 0, 1, 1], [], []>} : vector<16x128xbf16>, vector<128x512xbf16>, vector<16x512xf32> -> vector<16x512xf32>
    %c0_12 = arith.constant 0 : index
    %c0_13 = arith.constant 0 : index
    %29 = vector.load %arg5[%c0_12, %c0_13] : memref<1x512xf32, #tpu.memory_space<vmem>>, vector<1x512xf32>
    %30 = vector.broadcast %29 : vector<1x512xf32> to vector<16x512xf32>
    %31 = arith.addf %28, %30 : vector<16x512xf32>
    %cst_14 = arith.constant 1.702000e+00 : f32
    %32 = vector.broadcast %cst_14 : f32 to vector<16x512xf32>
    %33 = arith.mulf %32, %31 : vector<16x512xf32>
    %34 = arith.negf %33 : vector<16x512xf32>
    %35 = math.exp %34 : vector<16x512xf32>
    %cst_15 = arith.constant 1.000000e+00 : f32
    %36 = vector.broadcast %cst_15 : f32 to vector<16x512xf32>
    %37 = arith.addf %36, %35 : vector<16x512xf32>
    %38 = arith.divf %36, %37 : vector<16x512xf32>
    %39 = arith.mulf %31, %38 : vector<16x512xf32>
    %40 = arith.truncf %39 : vector<16x512xf32> to vector<16x512xbf16>
    %c0_16 = arith.constant 0 : index
    %c0_17 = arith.constant 0 : index
    %41 = vector.load %arg6[%c0_16, %c0_17] : memref<512x128xbf16, #tpu.memory_space<vmem>>, vector<512x128xbf16>
    %cst_18 = arith.constant dense<0.000000e+00> : vector<16x128xf32>
    %42 = tpu.matmul %40, %41, %cst_18 {dimension_numbers = #tpu.dot_dimension_numbers<[1], [0], [0], [1], [0, 0, 1, 1], [], []>} : vector<16x512xbf16>, vector<512x128xbf16>, vector<16x128xf32> -> vector<16x128xf32>
    %c0_19 = arith.constant 0 : index
    %c0_20 = arith.constant 0 : index
    %43 = vector.load %arg7[%c0_19, %c0_20] : memref<1x128xf32, #tpu.memory_space<vmem>>, vector<1x128xf32>
    %44 = vector.broadcast %43 : vector<1x128xf32> to vector<16x128xf32>
    %45 = arith.addf %42, %44 : vector<16x128xf32>
    %46 = arith.addf %1, %45 : vector<16x128xf32>
    %47 = arith.truncf %46 : vector<16x128xf32> to vector<16x128xbf16>
    %c0_21 = arith.constant 0 : index
    %c0_22 = arith.constant 0 : index
    %48 = vector.load %arg8[%c0_21, %c0_22] : memref<16x128xbf16, #tpu.memory_space<vmem>>, vector<16x128xbf16>
    tpu.vector_store %arg8[%c0_21, %c0_22], %47 {strides = array<i32>} : memref<16x128xbf16, #tpu.memory_space<vmem>>, vector<16x128xbf16>,
    return
  }
  func.func @transform_0(%arg0: i32) -> (i32, i32) {
    %c0_i32 = arith.constant 0 : i32
    %c0_i32_0 = arith.constant 0 : i32
    return %arg0, %c0_i32 : i32, i32
  }
  func.func @transform_1(%arg0: i32) -> (i32, i32) {
    %c0_i32 = arith.constant 0 : i32
    %c0_i32_0 = arith.constant 0 : i32
    %c0_i32_1 = arith.constant 0 : i32
    return %c0_i32, %c0_i32_0 : i32, i32
  }
  func.func @transform_2(%arg0: i32) -> (i32, i32) {
    %c0_i32 = arith.constant 0 : i32
    %c0_i32_0 = arith.constant 0 : i32
    %c0_i32_1 = arith.constant 0 : i32
    return %c0_i32, %c0_i32_0 : i32, i32
  }
  func.func @transform_3(%arg0: i32) -> (i32, i32) {
    %c0_i32 = arith.constant 0 : i32
    %c0_i32_0 = arith.constant 0 : i32
    %c0_i32_1 = arith.constant 0 : i32
    return %c0_i32, %c0_i32_0 : i32, i32
  }
  func.func @transform_4(%arg0: i32) -> (i32, i32) {
    %c0_i32 = arith.constant 0 : i32
    %c0_i32_0 = arith.constant 0 : i32
    %c0_i32_1 = arith.constant 0 : i32
    return %c0_i32, %c0_i32_0 : i32, i32
  }
  func.func @transform_5(%arg0: i32) -> (i32, i32) {
    %c0_i32 = arith.constant 0 : i32
    %c0_i32_0 = arith.constant 0 : i32
    %c0_i32_1 = arith.constant 0 : i32
    return %c0_i32, %c0_i32_0 : i32, i32
  }
  func.func @transform_6(%arg0: i32) -> (i32, i32) {
    %c0_i32 = arith.constant 0 : i32
    %c0_i32_0 = arith.constant 0 : i32
    %c0_i32_1 = arith.constant 0 : i32
    return %c0_i32, %c0_i32_0 : i32, i32
  }
  func.func @transform_7(%arg0: i32) -> (i32, i32) {
    %c0_i32 = arith.constant 0 : i32
    %c0_i32_0 = arith.constant 0 : i32
    return %arg0, %c0_i32 : i32, i32
  }
}

module attributes {stable_mosaic.version = 11 : i64} {
  func.func @_mlp_kernel(%arg0: i32, %arg1: memref<16x128xbf16, #tpu.memory_space<vmem>>, %arg2: memref<1x128xf32, #tpu.memory_space<vmem>>, %arg3: memref<1x128xf32, #tpu.memory_space<vmem>>, %arg4: memref<128x512xbf16, #tpu.memory_space<vmem>>, %arg5: memref<1x512xf32, #tpu.memory_space<vmem>>, %arg6: memref<512x128xbf16, #tpu.memory_space<vmem>>, %arg7: memref<1x128xf32, #tpu.memory_space<vmem>>, %arg8: memref<1x128xf32, #tpu.memory_space<vmem>>, %arg9: memref<1x128xf32, #tpu.memory_space<vmem>>, %arg10: memref<16x128xf32, #tpu.memory_space<vmem>>) attributes {dimension_semantics = [#tpu.dimension_semantics<parallel>], iteration_bounds = array<i64: 1>, scalar_prefetch = 0 : i64, scratch_operands = 0 : i64, tpu.core_type = #tpu.core_type<tc>, window_params = [{transform_indices = @transform_0, window_bounds = array<i64: 16, 128>}, {pipeline_mode = #tpu.pipeline_mode<synchronous>, transform_indices = @transform_1, window_bounds = array<i64: 1, 128>}, {pipeline_mode = #tpu.pipeline_mode<synchronous>, transform_indices = @transform_2, window_bounds = array<i64: 1, 128>}, {pipeline_mode = #tpu.pipeline_mode<synchronous>, transform_indices = @transform_3, window_bounds = array<i64: 128, 512>}, {pipeline_mode = #tpu.pipeline_mode<synchronous>, transform_indices = @transform_4, window_bounds = array<i64: 1, 512>}, {pipeline_mode = #tpu.pipeline_mode<synchronous>, transform_indices = @transform_5, window_bounds = array<i64: 512, 128>}, {pipeline_mode = #tpu.pipeline_mode<synchronous>, transform_indices = @transform_6, window_bounds = array<i64: 1, 128>}, {pipeline_mode = #tpu.pipeline_mode<synchronous>, transform_indices = @transform_7, window_bounds = array<i64: 1, 128>}, {pipeline_mode = #tpu.pipeline_mode<synchronous>, transform_indices = @transform_8, window_bounds = array<i64: 1, 128>}, {transform_indices = @transform_9, window_bounds = array<i64: 16, 128>}]} {
    %c0 = arith.constant 0 : index
    %c0_0 = arith.constant 0 : index
    %0 = vector.load %arg1[%c0, %c0_0] : memref<16x128xbf16, #tpu.memory_space<vmem>>, vector<16x128xbf16>
    %1 = arith.extf %0 : vector<16x128xbf16> to vector<16x128xf32>
    %c0_1 = arith.constant 0 : index
    %c0_2 = arith.constant 0 : index
    %2 = vector.load %arg2[%c0_1, %c0_2] : memref<1x128xf32, #tpu.memory_space<vmem>>, vector<1x128xf32>
    %c0_3 = arith.constant 0 : index
    %c0_4 = arith.constant 0 : index
    %3 = vector.load %arg3[%c0_3, %c0_4] : memref<1x128xf32, #tpu.memory_space<vmem>>, vector<1x128xf32>
    %cst = arith.constant dense<0.000000e+00> : vector<16xf32>
    %4 = vector.multi_reduction <add>, %1, %cst [1] : vector<16x128xf32> to vector<16xf32>
    %5 = vector.shape_cast %4 : vector<16xf32> to vector<16x1xf32>
    %cst_5 = arith.constant 1.280000e+02 : f32
    %6 = vector.broadcast %cst_5 : f32 to vector<16x1xf32>
    %7 = arith.divf %5, %6 : vector<16x1xf32>
    %8 = vector.broadcast %7 : vector<16x1xf32> to vector<16x128xf32>
    %9 = arith.subf %1, %8 : vector<16x128xf32>
    %10 = arith.mulf %9, %9 : vector<16x128xf32>
    %cst_6 = arith.constant dense<0.000000e+00> : vector<16xf32>
    %11 = vector.multi_reduction <add>, %10, %cst_6 [1] : vector<16x128xf32> to vector<16xf32>
    %12 = vector.shape_cast %11 : vector<16xf32> to vector<16x1xf32>
    %cst_7 = arith.constant 1.280000e+02 : f32
    %13 = vector.broadcast %cst_7 : f32 to vector<16x1xf32>
    %14 = arith.divf %12, %13 : vector<16x1xf32>
    %15 = vector.broadcast %7 : vector<16x1xf32> to vector<16x128xf32>
    %16 = arith.subf %1, %15 : vector<16x128xf32>
    %cst_8 = arith.constant 9.99999974E-6 : f32
    %17 = vector.broadcast %cst_8 : f32 to vector<16x1xf32>
    %18 = arith.addf %14, %17 : vector<16x1xf32>
    %19 = math.rsqrt %18 : vector<16x1xf32>
    %20 = vector.broadcast %19 : vector<16x1xf32> to vector<16x128xf32>
    %21 = arith.mulf %16, %20 : vector<16x128xf32>
    %22 = vector.broadcast %2 : vector<1x128xf32> to vector<16x128xf32>
    %23 = arith.mulf %21, %22 : vector<16x128xf32>
    %24 = vector.broadcast %3 : vector<1x128xf32> to vector<16x128xf32>
    %25 = arith.addf %23, %24 : vector<16x128xf32>
    %26 = arith.truncf %25 : vector<16x128xf32> to vector<16x128xbf16>
    %c0_9 = arith.constant 0 : index
    %c0_10 = arith.constant 0 : index
    %27 = vector.load %arg4[%c0_9, %c0_10] : memref<128x512xbf16, #tpu.memory_space<vmem>>, vector<128x512xbf16>
    %cst_11 = arith.constant dense<0.000000e+00> : vector<16x512xf32>
    %28 = tpu.matmul %26, %27, %cst_11 {dimension_numbers = #tpu.dot_dimension_numbers<[1], [0], [0], [1], [0, 0, 1, 1], [], []>} : vector<16x128xbf16>, vector<128x512xbf16>, vector<16x512xf32> -> vector<16x512xf32>
    %c0_12 = arith.constant 0 : index
    %c0_13 = arith.constant 0 : index
    %29 = vector.load %arg5[%c0_12, %c0_13] : memref<1x512xf32, #tpu.memory_space<vmem>>, vector<1x512xf32>
    %30 = vector.broadcast %29 : vector<1x512xf32> to vector<16x512xf32>
    %31 = arith.addf %28, %30 : vector<16x512xf32>
    %cst_14 = arith.constant 1.702000e+00 : f32
    %32 = vector.broadcast %cst_14 : f32 to vector<16x512xf32>
    %33 = arith.mulf %32, %31 : vector<16x512xf32>
    %34 = arith.negf %33 : vector<16x512xf32>
    %35 = math.exp %34 : vector<16x512xf32>
    %cst_15 = arith.constant 1.000000e+00 : f32
    %36 = vector.broadcast %cst_15 : f32 to vector<16x512xf32>
    %37 = arith.addf %36, %35 : vector<16x512xf32>
    %38 = arith.divf %36, %37 : vector<16x512xf32>
    %39 = arith.mulf %31, %38 : vector<16x512xf32>
    %40 = arith.truncf %39 : vector<16x512xf32> to vector<16x512xbf16>
    %c0_16 = arith.constant 0 : index
    %c0_17 = arith.constant 0 : index
    %41 = vector.load %arg6[%c0_16, %c0_17] : memref<512x128xbf16, #tpu.memory_space<vmem>>, vector<512x128xbf16>
    %cst_18 = arith.constant dense<0.000000e+00> : vector<16x128xf32>
    %42 = tpu.matmul %40, %41, %cst_18 {dimension_numbers = #tpu.dot_dimension_numbers<[1], [0], [0], [1], [0, 0, 1, 1], [], []>} : vector<16x512xbf16>, vector<512x128xbf16>, vector<16x128xf32> -> vector<16x128xf32>
    %c0_19 = arith.constant 0 : index
    %c0_20 = arith.constant 0 : index
    %43 = vector.load %arg7[%c0_19, %c0_20] : memref<1x128xf32, #tpu.memory_space<vmem>>, vector<1x128xf32>
    %44 = vector.broadcast %43 : vector<1x128xf32> to vector<16x128xf32>
    %45 = arith.addf %42, %44 : vector<16x128xf32>
    %46 = arith.addf %1, %45 : vector<16x128xf32>
    %c0_21 = arith.constant 0 : index
    %c0_22 = arith.constant 0 : index
    %47 = vector.load %arg8[%c0_21, %c0_22] : memref<1x128xf32, #tpu.memory_space<vmem>>, vector<1x128xf32>
    %c0_23 = arith.constant 0 : index
    %c0_24 = arith.constant 0 : index
    %48 = vector.load %arg9[%c0_23, %c0_24] : memref<1x128xf32, #tpu.memory_space<vmem>>, vector<1x128xf32>
    %cst_25 = arith.constant dense<0.000000e+00> : vector<16xf32>
    %49 = vector.multi_reduction <add>, %46, %cst_25 [1] : vector<16x128xf32> to vector<16xf32>
    %50 = vector.shape_cast %49 : vector<16xf32> to vector<16x1xf32>
    %cst_26 = arith.constant 1.280000e+02 : f32
    %51 = vector.broadcast %cst_26 : f32 to vector<16x1xf32>
    %52 = arith.divf %50, %51 : vector<16x1xf32>
    %53 = vector.broadcast %52 : vector<16x1xf32> to vector<16x128xf32>
    %54 = arith.subf %46, %53 : vector<16x128xf32>
    %55 = arith.mulf %54, %54 : vector<16x128xf32>
    %cst_27 = arith.constant dense<0.000000e+00> : vector<16xf32>
    %56 = vector.multi_reduction <add>, %55, %cst_27 [1] : vector<16x128xf32> to vector<16xf32>
    %57 = vector.shape_cast %56 : vector<16xf32> to vector<16x1xf32>
    %cst_28 = arith.constant 1.280000e+02 : f32
    %58 = vector.broadcast %cst_28 : f32 to vector<16x1xf32>
    %59 = arith.divf %57, %58 : vector<16x1xf32>
    %60 = vector.broadcast %52 : vector<16x1xf32> to vector<16x128xf32>
    %61 = arith.subf %46, %60 : vector<16x128xf32>
    %cst_29 = arith.constant 9.99999974E-6 : f32
    %62 = vector.broadcast %cst_29 : f32 to vector<16x1xf32>
    %63 = arith.addf %59, %62 : vector<16x1xf32>
    %64 = math.rsqrt %63 : vector<16x1xf32>
    %65 = vector.broadcast %64 : vector<16x1xf32> to vector<16x128xf32>
    %66 = arith.mulf %61, %65 : vector<16x128xf32>
    %67 = vector.broadcast %47 : vector<1x128xf32> to vector<16x128xf32>
    %68 = arith.mulf %66, %67 : vector<16x128xf32>
    %69 = vector.broadcast %48 : vector<1x128xf32> to vector<16x128xf32>
    %70 = arith.addf %68, %69 : vector<16x128xf32>
    %c0_30 = arith.constant 0 : index
    %c0_31 = arith.constant 0 : index
    %71 = vector.load %arg10[%c0_30, %c0_31] : memref<16x128xf32, #tpu.memory_space<vmem>>, vector<16x128xf32>
    tpu.vector_store %arg10[%c0_30, %c0_31], %70 {strides = array<i32>} : memref<16x128xf32, #tpu.memory_space<vmem>>, vector<16x128xf32>,
    return
  }
  func.func @transform_0(%arg0: i32) -> (i32, i32) {
    %c0_i32 = arith.constant 0 : i32
    %c0_i32_0 = arith.constant 0 : i32
    return %arg0, %c0_i32 : i32, i32
  }
  func.func @transform_1(%arg0: i32) -> (i32, i32) {
    %c0_i32 = arith.constant 0 : i32
    %c0_i32_0 = arith.constant 0 : i32
    %c0_i32_1 = arith.constant 0 : i32
    return %c0_i32, %c0_i32_0 : i32, i32
  }
  func.func @transform_2(%arg0: i32) -> (i32, i32) {
    %c0_i32 = arith.constant 0 : i32
    %c0_i32_0 = arith.constant 0 : i32
    %c0_i32_1 = arith.constant 0 : i32
    return %c0_i32, %c0_i32_0 : i32, i32
  }
  func.func @transform_3(%arg0: i32) -> (i32, i32) {
    %c0_i32 = arith.constant 0 : i32
    %c0_i32_0 = arith.constant 0 : i32
    %c0_i32_1 = arith.constant 0 : i32
    return %c0_i32, %c0_i32_0 : i32, i32
  }
  func.func @transform_4(%arg0: i32) -> (i32, i32) {
    %c0_i32 = arith.constant 0 : i32
    %c0_i32_0 = arith.constant 0 : i32
    %c0_i32_1 = arith.constant 0 : i32
    return %c0_i32, %c0_i32_0 : i32, i32
  }
  func.func @transform_5(%arg0: i32) -> (i32, i32) {
    %c0_i32 = arith.constant 0 : i32
    %c0_i32_0 = arith.constant 0 : i32
    %c0_i32_1 = arith.constant 0 : i32
    return %c0_i32, %c0_i32_0 : i32, i32
  }
  func.func @transform_6(%arg0: i32) -> (i32, i32) {
    %c0_i32 = arith.constant 0 : i32
    %c0_i32_0 = arith.constant 0 : i32
    %c0_i32_1 = arith.constant 0 : i32
    return %c0_i32, %c0_i32_0 : i32, i32
  }
  func.func @transform_7(%arg0: i32) -> (i32, i32) {
    %c0_i32 = arith.constant 0 : i32
    %c0_i32_0 = arith.constant 0 : i32
    %c0_i32_1 = arith.constant 0 : i32
    return %c0_i32, %c0_i32_0 : i32, i32
  }
  func.func @transform_8(%arg0: i32) -> (i32, i32) {
    %c0_i32 = arith.constant 0 : i32
    %c0_i32_0 = arith.constant 0 : i32
    %c0_i32_1 = arith.constant 0 : i32
    return %c0_i32, %c0_i32_0 : i32, i32
  }
  func.func @transform_9(%arg0: i32) -> (i32, i32) {
    %c0_i32 = arith.constant 0 : i32
    %c0_i32_0 = arith.constant 0 : i32
    return %arg0, %c0_i32 : i32, i32
  }
}

module attributes {stable_mosaic.version = 11 : i64} {
  func.func @_attn_kernel(%arg0: i32, %arg1: i32, %arg2: memref<1x8x128xbf16, #tpu.memory_space<vmem>>, %arg3: memref<1x128xf32, #tpu.memory_space<vmem>>, %arg4: memref<1x128xf32, #tpu.memory_space<vmem>>, %arg5: memref<2x3x128x64xbf16, #tpu.memory_space<vmem>>, %arg6: memref<2x3x1x64xf32, #tpu.memory_space<vmem>>, %arg7: memref<128x128xbf16, #tpu.memory_space<vmem>>, %arg8: memref<1x128xf32, #tpu.memory_space<vmem>>, %arg9: memref<1x8x128xbf16, #tpu.memory_space<vmem>>, %arg10: memref<8x128xbf16, #tpu.memory_space<vmem>>, %arg11: memref<8x128xf32, #tpu.memory_space<vmem>>) attributes {dimension_semantics = [#tpu.dimension_semantics<parallel>, #tpu.dimension_semantics<arbitrary>], iteration_bounds = array<i64: 2, 1>, scalar_prefetch = 0 : i64, scratch_operands = 2 : i64, tpu.core_type = #tpu.core_type<tc>, window_params = [{transform_indices = @transform_0, window_bounds = array<i64: 1, 8, 128>}, {pipeline_mode = #tpu.pipeline_mode<synchronous>, transform_indices = @transform_1, window_bounds = array<i64: 1, 128>}, {pipeline_mode = #tpu.pipeline_mode<synchronous>, transform_indices = @transform_2, window_bounds = array<i64: 1, 128>}, {transform_indices = @transform_3, window_bounds = array<i64: 2, 3, 128, 64>}, {transform_indices = @transform_4, window_bounds = array<i64: 2, 3, 1, 64>}, {transform_indices = @transform_5, window_bounds = array<i64: 128, 128>}, {pipeline_mode = #tpu.pipeline_mode<synchronous>, transform_indices = @transform_6, window_bounds = array<i64: 1, 128>}, {transform_indices = @transform_7, window_bounds = array<i64: 1, 8, 128>}]} {
    %c0 = arith.constant 0 : index
    %c0_0 = arith.constant 0 : index
    %c0_1 = arith.constant 0 : index
    %0 = vector.load %arg2[%c0, %c0_0, %c0_1] : memref<1x8x128xbf16, #tpu.memory_space<vmem>>, vector<1x8x128xbf16>
    %1 = vector.shape_cast %0 : vector<1x8x128xbf16> to vector<8x128xbf16>
    %2 = arith.extf %1 : vector<8x128xbf16> to vector<8x128xf32>
    %c0_2 = arith.constant 0 : index
    %c0_3 = arith.constant 0 : index
    %3 = vector.load %arg3[%c0_2, %c0_3] : memref<1x128xf32, #tpu.memory_space<vmem>>, vector<1x128xf32>
    %c0_4 = arith.constant 0 : index
    %c0_5 = arith.constant 0 : index
    %4 = vector.load %arg4[%c0_4, %c0_5] : memref<1x128xf32, #tpu.memory_space<vmem>>, vector<1x128xf32>
    %cst = arith.constant dense<0.000000e+00> : vector<8xf32>
    %5 = vector.multi_reduction <add>, %2, %cst [1] : vector<8x128xf32> to vector<8xf32>
    %6 = vector.shape_cast %5 : vector<8xf32> to vector<8x1xf32>
    %cst_6 = arith.constant 1.280000e+02 : f32
    %7 = vector.broadcast %cst_6 : f32 to vector<8x1xf32>
    %8 = arith.divf %6, %7 : vector<8x1xf32>
    %9 = vector.broadcast %8 : vector<8x1xf32> to vector<8x128xf32>
    %10 = arith.subf %2, %9 : vector<8x128xf32>
    %11 = arith.mulf %10, %10 : vector<8x128xf32>
    %cst_7 = arith.constant dense<0.000000e+00> : vector<8xf32>
    %12 = vector.multi_reduction <add>, %11, %cst_7 [1] : vector<8x128xf32> to vector<8xf32>
    %13 = vector.shape_cast %12 : vector<8xf32> to vector<8x1xf32>
    %cst_8 = arith.constant 1.280000e+02 : f32
    %14 = vector.broadcast %cst_8 : f32 to vector<8x1xf32>
    %15 = arith.divf %13, %14 : vector<8x1xf32>
    %16 = vector.broadcast %8 : vector<8x1xf32> to vector<8x128xf32>
    %17 = arith.subf %2, %16 : vector<8x128xf32>
    %cst_9 = arith.constant 9.99999974E-6 : f32
    %18 = vector.broadcast %cst_9 : f32 to vector<8x1xf32>
    %19 = arith.addf %15, %18 : vector<8x1xf32>
    %20 = math.rsqrt %19 : vector<8x1xf32>
    %21 = vector.broadcast %20 : vector<8x1xf32> to vector<8x128xf32>
    %22 = arith.mulf %17, %21 : vector<8x128xf32>
    %23 = vector.broadcast %3 : vector<1x128xf32> to vector<8x128xf32>
    %24 = arith.mulf %22, %23 : vector<8x128xf32>
    %25 = vector.broadcast %4 : vector<1x128xf32> to vector<8x128xf32>
    %26 = arith.addf %24, %25 : vector<8x128xf32>
    %27 = arith.truncf %26 : vector<8x128xf32> to vector<8x128xbf16>
    %28 = tpu.iota {dimensions = array<i32: 0>} : vector<8x8xi32>
    %29 = tpu.iota {dimensions = array<i32: 1>} : vector<8x8xi32>
    %30 = arith.cmpi sle, %29, %28 : vector<8x8xi32>
    %cst_10 = arith.constant 0.000000e+00 : f32
    %cst_11 = arith.constant -1.000000e+09 : f32
    %31 = vector.broadcast %cst_10 : f32 to vector<8x8xf32>
    %32 = vector.broadcast %cst_11 : f32 to vector<8x8xf32>
    %33 = arith.select %30, %31, %32 : vector<8x8xi1>, vector<8x8xf32>
    %c0_12 = arith.constant 0 : index
    %c0_13 = arith.constant 0 : index
    %c0_14 = arith.constant 0 : index
    %c0_15 = arith.constant 0 : index
    %34 = vector.load %arg5[%c0_12, %c0_13, %c0_14, %c0_15] : memref<2x3x128x64xbf16, #tpu.memory_space<vmem>>, vector<1x1x128x64xbf16>
    %35 = vector.shape_cast %34 : vector<1x1x128x64xbf16> to vector<128x64xbf16>
    %cst_16 = arith.constant dense<0.000000e+00> : vector<8x64xf32>
    %36 = tpu.matmul %27, %35, %cst_16 {dimension_numbers = #tpu.dot_dimension_numbers<[1], [0], [0], [1], [0, 0, 1, 1], [], []>} : vector<8x128xbf16>, vector<128x64xbf16>, vector<8x64xf32> -> vector<8x64xf32>
    %c0_17 = arith.constant 0 : index
    %c0_18 = arith.constant 0 : index
    %c0_19 = arith.constant 0 : index
    %c0_20 = arith.constant 0 : index
    %37 = vector.load %arg6[%c0_17, %c0_18, %c0_19, %c0_20] : memref<2x3x1x64xf32, #tpu.memory_space<vmem>>, vector<1x1x1x64xf32>
    %38 = vector.shape_cast %37 : vector<1x1x1x64xf32> to vector<1x64xf32>
    %39 = vector.broadcast %38 : vector<1x64xf32> to vector<8x64xf32>
    %40 = arith.addf %36, %39 : vector<8x64xf32>
    %c0_21 = arith.constant 0 : index
    %c1 = arith.constant 1 : index
    %c0_22 = arith.constant 0 : index
    %c0_23 = arith.constant 0 : index
    %41 = vector.load %arg5[%c0_21, %c1, %c0_22, %c0_23] : memref<2x3x128x64xbf16, #tpu.memory_space<vmem>>, vector<1x1x128x64xbf16>
    %42 = vector.shape_cast %41 : vector<1x1x128x64xbf16> to vector<128x64xbf16>
    %cst_24 = arith.constant dense<0.000000e+00> : vector<8x64xf32>
    %43 = tpu.matmul %27, %42, %cst_24 {dimension_numbers = #tpu.dot_dimension_numbers<[1], [0], [0], [1], [0, 0, 1, 1], [], []>} : vector<8x128xbf16>, vector<128x64xbf16>, vector<8x64xf32> -> vector<8x64xf32>
    %c0_25 = arith.constant 0 : index
    %c1_26 = arith.constant 1 : index
    %c0_27 = arith.constant 0 : index
    %c0_28 = arith.constant 0 : index
    %44 = vector.load %arg6[%c0_25, %c1_26, %c0_27, %c0_28] : memref<2x3x1x64xf32, #tpu.memory_space<vmem>>, vector<1x1x1x64xf32>
    %45 = vector.shape_cast %44 : vector<1x1x1x64xf32> to vector<1x64xf32>
    %46 = vector.broadcast %45 : vector<1x64xf32> to vector<8x64xf32>
    %47 = arith.addf %43, %46 : vector<8x64xf32>
    %c0_29 = arith.constant 0 : index
    %c2 = arith.constant 2 : index
    %c0_30 = arith.constant 0 : index
    %c0_31 = arith.constant 0 : index
    %48 = vector.load %arg5[%c0_29, %c2, %c0_30, %c0_31] : memref<2x3x128x64xbf16, #tpu.memory_space<vmem>>, vector<1x1x128x64xbf16>
    %49 = vector.shape_cast %48 : vector<1x1x128x64xbf16> to vector<128x64xbf16>
    %cst_32 = arith.constant dense<0.000000e+00> : vector<8x64xf32>
    %50 = tpu.matmul %27, %49, %cst_32 {dimension_numbers = #tpu.dot_dimension_numbers<[1], [0], [0], [1], [0, 0, 1, 1], [], []>} : vector<8x128xbf16>, vector<128x64xbf16>, vector<8x64xf32> -> vector<8x64xf32>
    %c0_33 = arith.constant 0 : index
    %c2_34 = arith.constant 2 : index
    %c0_35 = arith.constant 0 : index
    %c0_36 = arith.constant 0 : index
    %51 = vector.load %arg6[%c0_33, %c2_34, %c0_35, %c0_36] : memref<2x3x1x64xf32, #tpu.memory_space<vmem>>, vector<1x1x1x64xf32>
    %52 = vector.shape_cast %51 : vector<1x1x1x64xf32> to vector<1x64xf32>
    %53 = vector.broadcast %52 : vector<1x64xf32> to vector<8x64xf32>
    %54 = arith.addf %50, %53 : vector<8x64xf32>
    %55 = arith.truncf %40 : vector<8x64xf32> to vector<8x64xbf16>
    %56 = arith.truncf %47 : vector<8x64xf32> to vector<8x64xbf16>
    %cst_37 = arith.constant dense<0.000000e+00> : vector<8x8xf32>
    %57 = tpu.matmul %55, %56, %cst_37 {dimension_numbers = #tpu.dot_dimension_numbers<[1], [1], [0], [0], [0, 0, 1, 0], [], []>} : vector<8x64xbf16>, vector<8x64xbf16>, vector<8x8xf32> -> vector<8x8xf32>
    %cst_38 = arith.constant 1.250000e-01 : f32
    %58 = vector.broadcast %cst_38 : f32 to vector<8x8xf32>
    %59 = arith.mulf %57, %58 : vector<8x8xf32>
    %60 = arith.addf %59, %33 : vector<8x8xf32>
    %cst_39 = arith.constant dense<0xFF800000> : vector<8xf32>
    %61 = vector.multi_reduction <maximumf>, %60, %cst_39 [1] : vector<8x8xf32> to vector<8xf32>
    %62 = vector.shape_cast %61 : vector<8xf32> to vector<8x1xf32>
    %63 = vector.broadcast %62 : vector<8x1xf32> to vector<8x8xf32>
    %64 = arith.subf %60, %63 : vector<8x8xf32>
    %65 = math.exp %64 : vector<8x8xf32>
    %cst_40 = arith.constant dense<0.000000e+00> : vector<8xf32>
    %66 = vector.multi_reduction <add>, %65, %cst_40 [1] : vector<8x8xf32> to vector<8xf32>
    %67 = vector.shape_cast %66 : vector<8xf32> to vector<8x1xf32>
    %68 = tpu.reciprocal %67 {approx = true} : vector<8x1xf32> -> vector<8x1xf32>
    %69 = vector.broadcast %68 : vector<8x1xf32> to vector<8x8xf32>
    %70 = arith.mulf %65, %69 : vector<8x8xf32>
    %71 = arith.truncf %70 : vector<8x8xf32> to vector<8x8xbf16>
    %72 = arith.truncf %54 : vector<8x64xf32> to vector<8x64xbf16>
    %cst_41 = arith.constant dense<0.000000e+00> : vector<8x64xf32>
    %73 = tpu.matmul %71, %72, %cst_41 {dimension_numbers = #tpu.dot_dimension_numbers<[1], [0], [0], [1], [0, 0, 1, 1], [], []>} : vector<8x8xbf16>, vector<8x64xbf16>, vector<8x64xf32> -> vector<8x64xf32>
    %74 = arith.truncf %73 : vector<8x64xf32> to vector<8x64xbf16>
    %c0_42 = arith.constant 0 : index
    %c0_43 = arith.constant 0 : index
    %75 = vector.load %arg10[%c0_42, %c0_43] : memref<8x128xbf16, #tpu.memory_space<vmem>>, vector<8x64xbf16>
    tpu.vector_store %arg10[%c0_42, %c0_43], %74 {strides = array<i32>} : memref<8x128xbf16, #tpu.memory_space<vmem>>, vector<8x64xbf16>,
    %c1_44 = arith.constant 1 : index
    %c0_45 = arith.constant 0 : index
    %c0_46 = arith.constant 0 : index
    %c0_47 = arith.constant 0 : index
    %76 = vector.load %arg5[%c1_44, %c0_45, %c0_46, %c0_47] : memref<2x3x128x64xbf16, #tpu.memory_space<vmem>>, vector<1x1x128x64xbf16>
    %77 = vector.shape_cast %76 : vector<1x1x128x64xbf16> to vector<128x64xbf16>
    %cst_48 = arith.constant dense<0.000000e+00> : vector<8x64xf32>
    %78 = tpu.matmul %27, %77, %cst_48 {dimension_numbers = #tpu.dot_dimension_numbers<[1], [0], [0], [1], [0, 0, 1, 1], [], []>} : vector<8x128xbf16>, vector<128x64xbf16>, vector<8x64xf32> -> vector<8x64xf32>
    %c1_49 = arith.constant 1 : index
    %c0_50 = arith.constant 0 : index
    %c0_51 = arith.constant 0 : index
    %c0_52 = arith.constant 0 : index
    %79 = vector.load %arg6[%c1_49, %c0_50, %c0_51, %c0_52] : memref<2x3x1x64xf32, #tpu.memory_space<vmem>>, vector<1x1x1x64xf32>
    %80 = vector.shape_cast %79 : vector<1x1x1x64xf32> to vector<1x64xf32>
    %81 = vector.broadcast %80 : vector<1x64xf32> to vector<8x64xf32>
    %82 = arith.addf %78, %81 : vector<8x64xf32>
    %c1_53 = arith.constant 1 : index
    %c1_54 = arith.constant 1 : index
    %c0_55 = arith.constant 0 : index
    %c0_56 = arith.constant 0 : index
    %83 = vector.load %arg5[%c1_53, %c1_54, %c0_55, %c0_56] : memref<2x3x128x64xbf16, #tpu.memory_space<vmem>>, vector<1x1x128x64xbf16>
    %84 = vector.shape_cast %83 : vector<1x1x128x64xbf16> to vector<128x64xbf16>
    %cst_57 = arith.constant dense<0.000000e+00> : vector<8x64xf32>
    %85 = tpu.matmul %27, %84, %cst_57 {dimension_numbers = #tpu.dot_dimension_numbers<[1], [0], [0], [1], [0, 0, 1, 1], [], []>} : vector<8x128xbf16>, vector<128x64xbf16>, vector<8x64xf32> -> vector<8x64xf32>
    %c1_58 = arith.constant 1 : index
    %c1_59 = arith.constant 1 : index
    %c0_60 = arith.constant 0 : index
    %c0_61 = arith.constant 0 : index
    %86 = vector.load %arg6[%c1_58, %c1_59, %c0_60, %c0_61] : memref<2x3x1x64xf32, #tpu.memory_space<vmem>>, vector<1x1x1x64xf32>
    %87 = vector.shape_cast %86 : vector<1x1x1x64xf32> to vector<1x64xf32>
    %88 = vector.broadcast %87 : vector<1x64xf32> to vector<8x64xf32>
    %89 = arith.addf %85, %88 : vector<8x64xf32>
    %c1_62 = arith.constant 1 : index
    %c2_63 = arith.constant 2 : index
    %c0_64 = arith.constant 0 : index
    %c0_65 = arith.constant 0 : index
    %90 = vector.load %arg5[%c1_62, %c2_63, %c0_64, %c0_65] : memref<2x3x128x64xbf16, #tpu.memory_space<vmem>>, vector<1x1x128x64xbf16>
    %91 = vector.shape_cast %90 : vector<1x1x128x64xbf16> to vector<128x64xbf16>
    %cst_66 = arith.constant dense<0.000000e+00> : vector<8x64xf32>
    %92 = tpu.matmul %27, %91, %cst_66 {dimension_numbers = #tpu.dot_dimension_numbers<[1], [0], [0], [1], [0, 0, 1, 1], [], []>} : vector<8x128xbf16>, vector<128x64xbf16>, vector<8x64xf32> -> vector<8x64xf32>
    %c1_67 = arith.constant 1 : index
    %c2_68 = arith.constant 2 : index
    %c0_69 = arith.constant 0 : index
    %c0_70 = arith.constant 0 : index
    %93 = vector.load %arg6[%c1_67, %c2_68, %c0_69, %c0_70] : memref<2x3x1x64xf32, #tpu.memory_space<vmem>>, vector<1x1x1x64xf32>
    %94 = vector.shape_cast %93 : vector<1x1x1x64xf32> to vector<1x64xf32>
    %95 = vector.broadcast %94 : vector<1x64xf32> to vector<8x64xf32>
    %96 = arith.addf %92, %95 : vector<8x64xf32>
    %97 = arith.truncf %82 : vector<8x64xf32> to vector<8x64xbf16>
    %98 = arith.truncf %89 : vector<8x64xf32> to vector<8x64xbf16>
    %cst_71 = arith.constant dense<0.000000e+00> : vector<8x8xf32>
    %99 = tpu.matmul %97, %98, %cst_71 {dimension_numbers = #tpu.dot_dimension_numbers<[1], [1], [0], [0], [0, 0, 1, 0], [], []>} : vector<8x64xbf16>, vector<8x64xbf16>, vector<8x8xf32> -> vector<8x8xf32>
    %cst_72 = arith.constant 1.250000e-01 : f32
    %100 = vector.broadcast %cst_72 : f32 to vector<8x8xf32>
    %101 = arith.mulf %99, %100 : vector<8x8xf32>
    %102 = arith.addf %101, %33 : vector<8x8xf32>
    %cst_73 = arith.constant dense<0xFF800000> : vector<8xf32>
    %103 = vector.multi_reduction <maximumf>, %102, %cst_73 [1] : vector<8x8xf32> to vector<8xf32>
    %104 = vector.shape_cast %103 : vector<8xf32> to vector<8x1xf32>
    %105 = vector.broadcast %104 : vector<8x1xf32> to vector<8x8xf32>
    %106 = arith.subf %102, %105 : vector<8x8xf32>
    %107 = math.exp %106 : vector<8x8xf32>
    %cst_74 = arith.constant dense<0.000000e+00> : vector<8xf32>
    %108 = vector.multi_reduction <add>, %107, %cst_74 [1] : vector<8x8xf32> to vector<8xf32>
    %109 = vector.shape_cast %108 : vector<8xf32> to vector<8x1xf32>
    %110 = tpu.reciprocal %109 {approx = true} : vector<8x1xf32> -> vector<8x1xf32>
    %111 = vector.broadcast %110 : vector<8x1xf32> to vector<8x8xf32>
    %112 = arith.mulf %107, %111 : vector<8x8xf32>
    %113 = arith.truncf %112 : vector<8x8xf32> to vector<8x8xbf16>
    %114 = arith.truncf %96 : vector<8x64xf32> to vector<8x64xbf16>
    %cst_75 = arith.constant dense<0.000000e+00> : vector<8x64xf32>
    %115 = tpu.matmul %113, %114, %cst_75 {dimension_numbers = #tpu.dot_dimension_numbers<[1], [0], [0], [1], [0, 0, 1, 1], [], []>} : vector<8x8xbf16>, vector<8x64xbf16>, vector<8x64xf32> -> vector<8x64xf32>
    %116 = arith.truncf %115 : vector<8x64xf32> to vector<8x64xbf16>
    %c0_76 = arith.constant 0 : index
    %c64 = arith.constant 64 : index
    %117 = vector.load %arg10[%c0_76, %c64] : memref<8x128xbf16, #tpu.memory_space<vmem>>, vector<8x64xbf16>
    tpu.vector_store %arg10[%c0_76, %c64], %116 {strides = array<i32>} : memref<8x128xbf16, #tpu.memory_space<vmem>>, vector<8x64xbf16>,
    %c0_i32 = arith.constant 0 : i32
    %118 = arith.cmpi eq, %arg1, %c0_i32 : i32
    %119 = arith.extui %118 : i1 to i32
    %c0_i32_77 = arith.constant 0 : i32
    %120 = arith.cmpi ne, %119, %c0_i32_77 : i32
    scf.if %120 {
      %c0_89 = arith.constant 0 : index
      %c0_90 = arith.constant 0 : index
      %130 = vector.load %arg8[%c0_89, %c0_90] : memref<1x128xf32, #tpu.memory_space<vmem>>, vector<1x128xf32>
      %131 = vector.broadcast %130 : vector<1x128xf32> to vector<8x128xf32>
      %132 = arith.addf %2, %131 : vector<8x128xf32>
      %c0_91 = arith.constant 0 : index
      %c0_92 = arith.constant 0 : index
      %133 = vector.load %arg11[%c0_91, %c0_92] : memref<8x128xf32, #tpu.memory_space<vmem>>, vector<8x128xf32>
      tpu.vector_store %arg11[%c0_91, %c0_92], %132 {strides = array<i32>} : memref<8x128xf32, #tpu.memory_space<vmem>>, vector<8x128xf32>,
    } else {
    }
    %c0_78 = arith.constant 0 : index
    %c0_79 = arith.constant 0 : index
    %121 = vector.load %arg11[%c0_78, %c0_79] : memref<8x128xf32, #tpu.memory_space<vmem>>, vector<8x128xf32>
    %c0_80 = arith.constant 0 : index
    %c0_81 = arith.constant 0 : index
    %122 = vector.load %arg10[%c0_80, %c0_81] : memref<8x128xbf16, #tpu.memory_space<vmem>>, vector<8x128xbf16>
    %c0_82 = arith.constant 0 : index
    %c0_83 = arith.constant 0 : index
    %123 = vector.load %arg7[%c0_82, %c0_83] : memref<128x128xbf16, #tpu.memory_space<vmem>>, vector<128x128xbf16>
    %cst_84 = arith.constant dense<0.000000e+00> : vector<8x128xf32>
    %124 = tpu.matmul %122, %123, %cst_84 {dimension_numbers = #tpu.dot_dimension_numbers<[1], [0], [0], [1], [0, 0, 1, 1], [], []>} : vector<8x128xbf16>, vector<128x128xbf16>, vector<8x128xf32> -> vector<8x128xf32>
    %125 = arith.addf %121, %124 : vector<8x128xf32>
    %c0_85 = arith.constant 0 : index
    %c0_86 = arith.constant 0 : index
    %126 = vector.load %arg11[%c0_85, %c0_86] : memref<8x128xf32, #tpu.memory_space<vmem>>, vector<8x128xf32>
    tpu.vector_store %arg11[%c0_85, %c0_86], %125 {strides = array<i32>} : memref<8x128xf32, #tpu.memory_space<vmem>>, vector<8x128xf32>,
    %c0_i32_87 = arith.constant 0 : i32
    %127 = arith.cmpi eq, %arg1, %c0_i32_87 : i32
    %128 = arith.extui %127 : i1 to i32
    %c0_i32_88 = arith.constant 0 : i32
    %129 = arith.cmpi ne, %128, %c0_i32_88 : i32
    scf.if %129 {
      %c0_89 = arith.constant 0 : index
      %c0_90 = arith.constant 0 : index
      %130 = vector.load %arg11[%c0_89, %c0_90] : memref<8x128xf32, #tpu.memory_space<vmem>>, vector<8x128xf32>
      %131 = arith.truncf %130 : vector<8x128xf32> to vector<8x128xbf16>
      %c0_91 = arith.constant 0 : index
      %c0_92 = arith.constant 0 : index
      %c0_93 = arith.constant 0 : index
      %132 = vector.load %arg9[%c0_91, %c0_92, %c0_93] : memref<1x8x128xbf16, #tpu.memory_space<vmem>>, vector<1x8x128xbf16>
      %133 = vector.shape_cast %132 : vector<1x8x128xbf16> to vector<8x128xbf16>
      %134 = vector.shape_cast %131 : vector<8x128xbf16> to vector<1x8x128xbf16>
      tpu.vector_store %arg9[%c0_91, %c0_92, %c0_93], %134 {strides = array<i32>} : memref<1x8x128xbf16, #tpu.memory_space<vmem>>, vector<1x8x128xbf16>,
    } else {
    }
    return
  }
  func.func @transform_0(%arg0: i32, %arg1: i32) -> (i32, i32, i32) {
    %c0_i32 = arith.constant 0 : i32
    %c0_i32_0 = arith.constant 0 : i32
    %c0_i32_1 = arith.constant 0 : i32
    return %arg0, %c0_i32, %c0_i32_0 : i32, i32, i32
  }
  func.func @transform_1(%arg0: i32, %arg1: i32) -> (i32, i32) {
    %c0_i32 = arith.constant 0 : i32
    %c0_i32_0 = arith.constant 0 : i32
    %c0_i32_1 = arith.constant 0 : i32
    return %c0_i32, %c0_i32_0 : i32, i32
  }
  func.func @transform_2(%arg0: i32, %arg1: i32) -> (i32, i32) {
    %c0_i32 = arith.constant 0 : i32
    %c0_i32_0 = arith.constant 0 : i32
    %c0_i32_1 = arith.constant 0 : i32
    return %c0_i32, %c0_i32_0 : i32, i32
  }
  func.func @transform_3(%arg0: i32, %arg1: i32) -> (i32, i32, i32, i32) {
    %c0_i32 = arith.constant 0 : i32
    %c0_i32_0 = arith.constant 0 : i32
    %c0_i32_1 = arith.constant 0 : i32
    %c0_i32_2 = arith.constant 0 : i32
    return %arg1, %c0_i32, %c0_i32_0, %c0_i32_1 : i32, i32, i32, i32
  }
  func.func @transform_4(%arg0: i32, %arg1: i32) -> (i32, i32, i32, i32) {
    %c0_i32 = arith.constant 0 : i32
    %c0_i32_0 = arith.constant 0 : i32
    %c0_i32_1 = arith.constant 0 : i32
    %c0_i32_2 = arith.constant 0 : i32
    return %arg1, %c0_i32, %c0_i32_0, %c0_i32_1 : i32, i32, i32, i32
  }
  func.func @transform_5(%arg0: i32, %arg1: i32) -> (i32, i32) {
    %c0_i32 = arith.constant 0 : i32
    %c0_i32_0 = arith.constant 0 : i32
    return %arg1, %c0_i32 : i32, i32
  }
  func.func @transform_6(%arg0: i32, %arg1: i32) -> (i32, i32) {
    %c0_i32 = arith.constant 0 : i32
    %c0_i32_0 = arith.constant 0 : i32
    %c0_i32_1 = arith.constant 0 : i32
    return %c0_i32, %c0_i32_0 : i32, i32
  }
  func.func @transform_7(%arg0: i32, %arg1: i32) -> (i32, i32, i32) {
    %c0_i32 = arith.constant 0 : i32
    %c0_i32_0 = arith.constant 0 : i32
    %c0_i32_1 = arith.constant 0 : i32
    return %arg0, %c0_i32, %c0_i32_0 : i32, i32, i32
  }
}

</mosaic_0001>

<llo_original>
// kernel: clip_text_forward.5
$region0: #{clip_text_forward.5}
  #allocation0 [shape = 'u32[]', space=smem, size = 0x4, offset = 0x4, fixed_abs, tag = 'smem constant byte address 0x4 - core index']
  #allocation1 [shape = 'u32[144,128]{1,0:T(1,128)}', space=vmem, size = 0x12000, scoped, tag = 'internal scratch']
  %s0 = inlined_call_operand.vmem [shape: bf16[16,128], index: 0, kind: input, shape index: {}]
  %s1 = inlined_call_operand.vmem [shape: f32[1,128], index: 1, kind: input, shape index: {}]
  %s2 = inlined_call_operand.vmem [shape: f32[1,128], index: 2, kind: input, shape index: {}]
  %s3 = inlined_call_operand.vmem [shape: bf16[128,512], index: 3, kind: input, shape index: {}]
  %s4 = inlined_call_operand.vmem [shape: f32[1,512], index: 4, kind: input, shape index: {}]
  %s5 = inlined_call_operand.vmem [shape: bf16[512,128], index: 5, kind: input, shape index: {}]
  %s6 = inlined_call_operand.vmem [shape: f32[1,128], index: 6, kind: input, shape index: {}]
  %s7 = inlined_call_operand.vmem [shape: bf16[16,128], index: 7, kind: output, shape index: {}]
  %s8 = sld [smem:[#allocation0]]
  $region38: #{clip_text_forward.5} parent=0
    _
  %s10 = ssub.s32 1, %s8
  %s11 = scalar_select 0, %s10, %s8
  // Predicated region
  $region2: #{clip_text_forward.5} parent=0 // pred_check
    _
  $region3: #{clip_text_forward.5} parent=0 // pred_check_branch
    %13 = sbr.rel (0) target = $region5
  $region4: #{clip_text_forward.5} parent=0 // pred_region
    _
  $region5: #{clip_text_forward.5} parent=0 // pred_fallthru
    _
  // Predicated region
  $region6: #{clip_text_forward.5} parent=0 // pred_check
    _
  $region7: #{clip_text_forward.5} parent=0 // pred_check_branch
    %15 = sbr.rel (0) target = $region9
  $region8: #{clip_text_forward.5} parent=0 // pred_region
    _
  $region9: #{clip_text_forward.5} parent=0 // pred_fallthru
    _
  // Predicated region
  $region10: #{clip_text_forward.5} parent=0 // pred_check
    _
  $region11: #{clip_text_forward.5} parent=0 // pred_check_branch
    %17 = sbr.rel (0) target = $region13
  $region12: #{clip_text_forward.5} parent=0 // pred_region
    _
  $region13: #{clip_text_forward.5} parent=0 // pred_fallthru
    _
  // Predicated region
  $region14: #{clip_text_forward.5} parent=0 // pred_check
    _
  $region15: #{clip_text_forward.5} parent=0 // pred_check_branch
    %19 = sbr.rel (0) target = $region17
  $region16: #{clip_text_forward.5} parent=0 // pred_region
    _
  $region17: #{clip_text_forward.5} parent=0 // pred_fallthru
    _
  // Predicated region
  $region18: #{clip_text_forward.5} parent=0 // pred_check
    _
  $region19: #{clip_text_forward.5} parent=0 // pred_check_branch
    %21 = sbr.rel (0) target = $region21
  $region20: #{clip_text_forward.5} parent=0 // pred_region
    _
  $region21: #{clip_text_forward.5} parent=0 // pred_fallthru
    _
  // Predicated region
  $region22: #{clip_text_forward.5} parent=0 // pred_check
    _
  $region23: #{clip_text_forward.5} parent=0 // pred_check_branch
    %23 = sbr.rel (0) target = $region25
  $region24: #{clip_text_forward.5} parent=0 // pred_region
    _
  $region25: #{clip_text_forward.5} parent=0 // pred_fallthru
    _
  // Predicated region
  $region26: #{clip_text_forward.5} parent=0 // pred_check
    _
  $region27: #{clip_text_forward.5} parent=0 // pred_check_branch
    %25 = sbr.rel (0) target = $region29
  $region28: #{clip_text_forward.5} parent=0 // pred_region
    _
  $region29: #{clip_text_forward.5} parent=0 // pred_fallthru
    _
  %v27 = vld [vmem:[%s0] sm:$0xf]
  %v28 = vld [vmem:[%s0 + $0x4] sm:$0xf]
  %v29 = vunpack.c.l.bf16 %v27
  %v30 = vunpack.c.l.bf16 %v28
  %v31 = vld [vmem:[%s1] sm:$0x1]
  %v32 = vld [vmem:[%s2] sm:$0x1]
  %33 = vadd.xlane.f32.xlu0 %v29
  %v34 = vpop.xlane.xlu0 %33
  %35 = vadd.xlane.f32.xlu0 %v30
  %v36 = vpop.xlane.xlu0 %35
  %v37 = vrcp.pop 128.0
  %v38 = vmul.f32 %v34, %v37
  %v39 = vmul.f32 %v36, %v37
  %v40 = vsub.f32 %v29, %v38
  %v41 = vsub.f32 %v30, %v39
  %v42 = vmul.f32 %v40, %v40
  %v43 = vmul.f32 %v41, %v41
  %44 = vadd.xlane.f32.xlu0 %v42
  %v45 = vpop.xlane.xlu0 %44
  %46 = vadd.xlane.f32.xlu0 %v43
  %v47 = vpop.xlane.xlu0 %46
  %v48 = vmul.f32 %v45, %v37
  %v49 = vmul.f32 %v47, %v37
  %v50 = vadd.f32 %v48, 1e-05
  %v51 = vadd.f32 %v49, 1e-05
  %v52 = vrsqrt.pop %v50
  %v53 = vrsqrt.pop %v51
  %v54 = vmul.f32 %v40, %v52
  %v55 = vmul.f32 %v41, %v53
  %v57 = vlaneseq
  %v58 = vshrl.u32 %v57, 7
  %v59 = vsub.s32 0, %v58
  %v60 = vrot.slane %v31, %v59
  %v62 = vmul.f32 %v54, %v60
  %v63 = vmul.f32 %v55, %v60
  %v65 = vlaneseq
  %v66 = vshrl.u32 %v65, 7
  %v67 = vsub.s32 0, %v66
  %v68 = vrot.slane %v32, %v67
  %v70 = vadd.f32 %v62, %v68
  %v71 = vadd.f32 %v63, %v68
  %v72 = vpack.c.bf16 %v71, %v70
  %v73 = vld [vmem:[%s3] sm:$0xff]
  %v74 = vld [vmem:[%s3 + $0x8] sm:$0xff]
  %v75 = vld [vmem:[%s3 + $0x10] sm:$0xff]
  %v76 = vld [vmem:[%s3 + $0x18] sm:$0xff]
  %v77 = vld [vmem:[%s3 + $0x20] sm:$0xff]
  %v78 = vld [vmem:[%s3 + $0x28] sm:$0xff]
  %v79 = vld [vmem:[%s3 + $0x30] sm:$0xff]
  %v80 = vld [vmem:[%s3 + $0x38] sm:$0xff]
  %v81 = vld [vmem:[%s3 + $0x40] sm:$0xff]
  %v82 = vld [vmem:[%s3 + $0x48] sm:$0xff]
  %v83 = vld [vmem:[%s3 + $0x50] sm:$0xff]
  %v84 = vld [vmem:[%s3 + $0x58] sm:$0xff]
  %v85 = vld [vmem:[%s3 + $0x60] sm:$0xff]
  %v86 = vld [vmem:[%s3 + $0x68] sm:$0xff]
  %v87 = vld [vmem:[%s3 + $0x70] sm:$0xff]
  %v88 = vld [vmem:[%s3 + $0x78] sm:$0xff]
  %v89 = vld [vmem:[%s3 + $0x80] sm:$0xff]
  %v90 = vld [vmem:[%s3 + $0x88] sm:$0xff]
  %v91 = vld [vmem:[%s3 + $0x90] sm:$0xff]
  %v92 = vld [vmem:[%s3 + $0x98] sm:$0xff]
  %v93 = vld [vmem:[%s3 + $0xa0] sm:$0xff]
  %v94 = vld [vmem:[%s3 + $0xa8] sm:$0xff]
  %v95 = vld [vmem:[%s3 + $0xb0] sm:$0xff]
  %v96 = vld [vmem:[%s3 + $0xb8] sm:$0xff]
  %v97 = vld [vmem:[%s3 + $0xc0] sm:$0xff]
  %v98 = vld [vmem:[%s3 + $0xc8] sm:$0xff]
  %v99 = vld [vmem:[%s3 + $0xd0] sm:$0xff]
  %v100 = vld [vmem:[%s3 + $0xd8] sm:$0xff]
  %v101 = vld [vmem:[%s3 + $0xe0] sm:$0xff]
  %v102 = vld [vmem:[%s3 + $0xe8] sm:$0xff]
  %v103 = vld [vmem:[%s3 + $0xf0] sm:$0xff]
  %v104 = vld [vmem:[%s3 + $0xf8] sm:$0xff]
  %v105 = vld [vmem:[%s4] sm:$0xf]
  %v107 = vlaneseq
  %v108 = vshrl.u32 %v107, 7
  %v109 = vsub.s32 0, %v108
  %v110 = vrot.slane %v105, %v109
  %v111 = vlaneseq
  %v112 = vshrl.u32 %v111, 7
  %v113 = vsub.s32 1, %v112
  %v114 = vrot.slane %v105, %v113
  %v115 = vlaneseq
  %v116 = vshrl.u32 %v115, 7
  %v117 = vsub.s32 2, %v116
  %v118 = vrot.slane %v105, %v117
  %v119 = vlaneseq
  %v120 = vshrl.u32 %v119, 7
  %v121 = vsub.s32 3, %v120
  %v122 = vrot.slane %v105, %v121
  %v159 = vunpack.c.l.b16 %v73
  %v160 = vunpack.c.h.b16 %v73
  %v161 = vunpack.c.l.b16 %v74
  %v162 = vunpack.c.h.b16 %v74
  %v163 = vunpack.c.l.b16 %v75
  %v164 = vunpack.c.h.b16 %v75
  %v165 = vunpack.c.l.b16 %v76
  %v166 = vunpack.c.h.b16 %v76
  %v167 = vunpack.c.l.b16 %v77
  %v168 = vunpack.c.h.b16 %v77
  %v169 = vunpack.c.l.b16 %v78
  %v170 = vunpack.c.h.b16 %v78
  %v171 = vunpack.c.l.b16 %v79
  %v172 = vunpack.c.h.b16 %v79
  %v173 = vunpack.c.l.b16 %v80
  %v174 = vunpack.c.h.b16 %v80
  %v175 = vunpack.c.l.b16 %v81
  %v176 = vunpack.c.h.b16 %v81
  %v177 = vunpack.c.l.b16 %v82
  %v178 = vunpack.c.h.b16 %v82
  %v179 = vunpack.c.l.b16 %v83
  %v180 = vunpack.c.h.b16 %v83
  %v181 = vunpack.c.l.b16 %v84
  %v182 = vunpack.c.h.b16 %v84
  %v183 = vunpack.c.l.b16 %v85
  %v184 = vunpack.c.h.b16 %v85
  %v185 = vunpack.c.l.b16 %v86
  %v186 = vunpack.c.h.b16 %v86
  %v187 = vunpack.c.l.b16 %v87
  %v188 = vunpack.c.h.b16 %v87
  %v189 = vunpack.c.l.b16 %v88
  %v190 = vunpack.c.h.b16 %v88
  %v191 = vunpack.c.l.b16 %v89
  %v192 = vunpack.c.h.b16 %v89
  %v193 = vunpack.c.l.b16 %v90
  %v194 = vunpack.c.h.b16 %v90
  %v195 = vunpack.c.l.b16 %v91
  %v196 = vunpack.c.h.b16 %v91
  %v197 = vunpack.c.l.b16 %v92
  %v198 = vunpack.c.h.b16 %v92
  %v199 = vunpack.c.l.b16 %v93
  %v200 = vunpack.c.h.b16 %v93
  %v201 = vunpack.c.l.b16 %v94
  %v202 = vunpack.c.h.b16 %v94
  %v203 = vunpack.c.l.b16 %v95
  %v204 = vunpack.c.h.b16 %v95
  %v205 = vunpack.c.l.b16 %v96
  %v206 = vunpack.c.h.b16 %v96
  %v207 = vunpack.c.l.b16 %v97
  %v208 = vunpack.c.h.b16 %v97
  %v209 = vunpack.c.l.b16 %v98
  %v210 = vunpack.c.h.b16 %v98
  %v211 = vunpack.c.l.b16 %v99
  %v212 = vunpack.c.h.b16 %v99
  %v213 = vunpack.c.l.b16 %v100
  %v214 = vunpack.c.h.b16 %v100
  %v215 = vunpack.c.l.b16 %v101
  %v216 = vunpack.c.h.b16 %v101
  %v217 = vunpack.c.l.b16 %v102
  %v218 = vunpack.c.h.b16 %v102
  %v219 = vunpack.c.l.b16 %v103
  %v220 = vunpack.c.h.b16 %v103
  %v221 = vunpack.c.l.b16 %v104
  %v222 = vunpack.c.h.b16 %v104
  %v223 = vpack.c.b16 %v163, %v159
  %v224 = vpack.c.b16 %v164, %v160
  %v225 = vpack.c.b16 %v165, %v161
  %v226 = vpack.c.b16 %v166, %v162
  %v227 = vpack.c.b16 %v171, %v167
  %v228 = vpack.c.b16 %v172, %v168
  %v229 = vpack.c.b16 %v173, %v169
  %v230 = vpack.c.b16 %v174, %v170
  %v231 = vpack.c.b16 %v179, %v175
  %v232 = vpack.c.b16 %v180, %v176
  %v233 = vpack.c.b16 %v181, %v177
  %v234 = vpack.c.b16 %v182, %v178
  %v235 = vpack.c.b16 %v187, %v183
  %v236 = vpack.c.b16 %v188, %v184
  %v237 = vpack.c.b16 %v189, %v185
  %v238 = vpack.c.b16 %v190, %v186
  %v239 = vpack.c.b16 %v195, %v191
  %v240 = vpack.c.b16 %v196, %v192
  %v241 = vpack.c.b16 %v197, %v193
  %v242 = vpack.c.b16 %v198, %v194
  %v243 = vpack.c.b16 %v203, %v199
  %v244 = vpack.c.b16 %v204, %v200
  %v245 = vpack.c.b16 %v205, %v201
  %v246 = vpack.c.b16 %v206, %v202
  %v247 = vpack.c.b16 %v211, %v207
  %v248 = vpack.c.b16 %v212, %v208
  %v249 = vpack.c.b16 %v213, %v209
  %v250 = vpack.c.b16 %v214, %v210
  %v251 = vpack.c.b16 %v219, %v215
  %v252 = vpack.c.b16 %v220, %v216
  %v253 = vpack.c.b16 %v221, %v217
  %v254 = vpack.c.b16 %v222, %v218
  %287 = vmatprep.subr.bf16.mxu0 %v224
  %288 = vmatpush1.bf16.msra.mxu0 %v223
  %289 = vmatprep.subr.bf16.mxu0 %v228
  %290 = vmatpush1.bf16.msra.mxu0 %v227
  %291 = vmatprep.subr.bf16.mxu0 %v232
  %292 = vmatpush1.bf16.msra.mxu0 %v231
  %293 = vmatprep.subr.bf16.mxu0 %v236
  %294 = vmatpush1.bf16.msra.mxu0 %v235
  %295 = vmatprep.subr.bf16.mxu0 %v240
  %296 = vmatpush1.bf16.msra.mxu0 %v239
  %297 = vmatprep.subr.bf16.mxu0 %v244
  %298 = vmatpush1.bf16.msra.mxu0 %v243
  %299 = vmatprep.subr.bf16.mxu0 %v248
  %300 = vmatpush1.bf16.msra.mxu0 %v247
  %301 = vmatprep.subr.bf16.mxu0 %v252
  %302 = vmatpush1.bf16.msra.mxu0 %v251
  %303 = vmatprep.subr.bf16.mxu0 0
  %304 = vmatpush1.bf16.msra.mxu0 0
  %305 = vmatprep.subr.bf16.mxu0 0
  %306 = vmatpush1.bf16.msra.mxu0 0
  %307 = vmatprep.subr.bf16.mxu0 0
  %308 = vmatpush1.bf16.msra.mxu0 0
  %309 = vmatprep.subr.bf16.mxu0 0
  %310 = vmatpush1.bf16.msra.mxu0 0
  %311 = vmatprep.subr.bf16.mxu0 0
  %312 = vmatpush1.bf16.msra.mxu0 0
  %313 = vmatprep.subr.bf16.mxu0 0
  %314 = vmatpush1.bf16.msra.mxu0 0
  %315 = vmatprep.subr.bf16.mxu0 0
  %316 = vmatpush1.bf16.msra.mxu0 0
  %317 = vmatprep.subr.bf16.mxu0 0
  %318 = vmatpush1.bf16.msra.mxu0 0
  %319 = vmatprep.mubr.bf16.mxu0 0
  %320 = vmatmul.mubr.bf16.gmra.mrb[0].mxu0 %v72
  %v321 = vpop.f32.mrb[0].mxu0
  %v322 = vadd.f32 %v110, %v321
  %v323 = vpop.f32.mrb[0].mxu0
  %v324 = vadd.f32 %v114, %v323
  %v325 = vpop.f32.mrb[0].mxu0
  %v326 = vadd.f32 %v110, %v325
  %v327 = vpop.f32.mrb[0].mxu0
  %v328 = vadd.f32 %v114, %v327
  %329 = vdwg.mxu0
  %330 = vmatprep.subr.bf16.mxu0 %v226
  %331 = vmatpush1.bf16.msra.mxu0 %v225
  %332 = vmatprep.subr.bf16.mxu0 %v230
  %333 = vmatpush1.bf16.msra.mxu0 %v229
  %334 = vmatprep.subr.bf16.mxu0 %v234
  %335 = vmatpush1.bf16.msra.mxu0 %v233
  %336 = vmatprep.subr.bf16.mxu0 %v238
  %337 = vmatpush1.bf16.msra.mxu0 %v237
  %338 = vmatprep.subr.bf16.mxu0 %v242
  %339 = vmatpush1.bf16.msra.mxu0 %v241
  %340 = vmatprep.subr.bf16.mxu0 %v246
  %341 = vmatpush1.bf16.msra.mxu0 %v245
  %342 = vmatprep.subr.bf16.mxu0 %v250
  %343 = vmatpush1.bf16.msra.mxu0 %v249
  %344 = vmatprep.subr.bf16.mxu0 %v254
  %345 = vmatpush1.bf16.msra.mxu0 %v253
  %346 = vmatprep.subr.bf16.mxu0 0
  %347 = vmatpush1.bf16.msra.mxu0 0
  %348 = vmatprep.subr.bf16.mxu0 0
  %349 = vmatpush1.bf16.msra.mxu0 0
  %350 = vmatprep.subr.bf16.mxu0 0
  %351 = vmatpush1.bf16.msra.mxu0 0
  %352 = vmatprep.subr.bf16.mxu0 0
  %353 = vmatpush1.bf16.msra.mxu0 0
  %354 = vmatprep.subr.bf16.mxu0 0
  %355 = vmatpush1.bf16.msra.mxu0 0
  %356 = vmatprep.subr.bf16.mxu0 0
  %357 = vmatpush1.bf16.msra.mxu0 0
  %358 = vmatprep.subr.bf16.mxu0 0
  %359 = vmatpush1.bf16.msra.mxu0 0
  %360 = vmatprep.subr.bf16.mxu0 0
  %361 = vmatpush1.bf16.msra.mxu0 0
  %362 = vmatprep.mubr.bf16.mxu0 0
  %363 = vmatmul.mubr.bf16.gmra.mrb[0].mxu0 %v72
  %v364 = vpop.f32.mrb[0].mxu0
  %v365 = vadd.f32 %v118, %v364
  %v366 = vpop.f32.mrb[0].mxu0
  %v367 = vadd.f32 %v122, %v366
  %v368 = vpop.f32.mrb[0].mxu0
  %v369 = vadd.f32 %v118, %v368
  %v370 = vpop.f32.mrb[0].mxu0
  %v371 = vadd.f32 %v122, %v370
  %372 = vdwg.mxu0
  %v373 = vmul.f32 %v322, 1.702
  %v374 = vmul.f32 %v324, 1.702
  %v375 = vmul.f32 %v365, 1.702
  %v376 = vmul.f32 %v367, 1.702
  %v377 = vmul.f32 %v326, 1.702
  %v378 = vmul.f32 %v328, 1.702
  %v379 = vmul.f32 %v369, 1.702
  %v380 = vmul.f32 %v371, 1.702
  %v381 = vxor.u32 %v373, 2147483648
  %v382 = vxor.u32 %v374, 2147483648
  %v383 = vxor.u32 %v375, 2147483648
  %v384 = vxor.u32 %v376, 2147483648
  %v385 = vxor.u32 %v377, 2147483648
  %v386 = vxor.u32 %v378, 2147483648
  %v387 = vxor.u32 %v379, 2147483648
  %v388 = vxor.u32 %v380, 2147483648
  %v389 = vmul.f32 %v381, 1.442695
  %v390 = vpow.pop %v389
  %v391 = vmul.f32 %v382, 1.442695
  %v392 = vpow.pop %v391
  %v393 = vmul.f32 %v383, 1.442695
  %v394 = vpow.pop %v393
  %v395 = vmul.f32 %v384, 1.442695
  %v396 = vpow.pop %v395
  %v397 = vmul.f32 %v385, 1.442695
  %v398 = vpow.pop %v397
  %v399 = vmul.f32 %v386, 1.442695
  %v400 = vpow.pop %v399
  %v401 = vmul.f32 %v387, 1.442695
  %v402 = vpow.pop %v401
  %v403 = vmul.f32 %v388, 1.442695
  %v404 = vpow.pop %v403
  %v405 = vadd.f32 %v390, 1.0
  %v406 = vadd.f32 %v392, 1.0
  %v407 = vadd.f32 %v394, 1.0
  %v408 = vadd.f32 %v396, 1.0
  %v409 = vadd.f32 %v398, 1.0
  %v410 = vadd.f32 %v400, 1.0
  %v411 = vadd.f32 %v402, 1.0
  %v412 = vadd.f32 %v404, 1.0
  %v413 = vrcp.pop %v405
  %v414 = vmul.f32 1.0, %v413
  %v415 = vrcp.pop %v406
  %v416 = vmul.f32 1.0, %v415
  %v417 = vrcp.pop %v407
  %v418 = vmul.f32 1.0, %v417
  %v419 = vrcp.pop %v408
  %v420 = vmul.f32 1.0, %v419
  %v421 = vrcp.pop %v409
  %v422 = vmul.f32 1.0, %v421
  %v423 = vrcp.pop %v410
  %v424 = vmul.f32 1.0, %v423
  %v425 = vrcp.pop %v411
  %v426 = vmul.f32 1.0, %v425
  %v427 = vrcp.pop %v412
  %v428 = vmul.f32 1.0, %v427
  %v429 = vmul.f32 %v322, %v414
  %v430 = vmul.f32 %v324, %v416
  %v431 = vmul.f32 %v365, %v418
  %v432 = vmul.f32 %v367, %v420
  %v433 = vmul.f32 %v326, %v422
  %v434 = vmul.f32 %v328, %v424
  %v435 = vmul.f32 %v369, %v426
  %v436 = vmul.f32 %v371, %v428
  %v437 = vpack.c.bf16 %v433, %v429
  %v438 = vpack.c.bf16 %v434, %v430
  %v439 = vpack.c.bf16 %v435, %v431
  %v440 = vpack.c.bf16 %v436, %v432
  %v441 = vld [vmem:[%s5] sm:$0xf]
  %v442 = vld [vmem:[%s5 + $0x4] sm:$0xf]
  %v443 = vld [vmem:[%s5 + $0x8] sm:$0xf]
  %v444 = vld [vmem:[%s5 + $0xc] sm:$0xf]
  %v445 = vld [vmem:[%s5 + $0x10] sm:$0xf]
  %v446 = vld [vmem:[%s5 + $0x14] sm:$0xf]
  %v447 = vld [vmem:[%s5 + $0x18] sm:$0xf]
  %v448 = vld [vmem:[%s5 + $0x1c] sm:$0xf]
  %v449 = vld [vmem:[%s5 + $0x20] sm:$0xf]
  %v450 = vld [vmem:[%s5 + $0x24] sm:$0xf]
  %v451 = vld [vmem:[%s5 + $0x28] sm:$0xf]
  %v452 = vld [vmem:[%s5 + $0x2c] sm:$0xf]
  %v453 = vld [vmem:[%s5 + $0x30] sm:$0xf]
  %v454 = vld [vmem:[%s5 + $0x34] sm:$0xf]
  %v455 = vld [vmem:[%s5 + $0x38] sm:$0xf]
  %v456 = vld [vmem:[%s5 + $0x3c] sm:$0xf]
  %v457 = vld [vmem:[%s5 + $0x40] sm:$0xf]
  %v458 = vld [vmem:[%s5 + $0x44] sm:$0xf]
  %v459 = vld [vmem:[%s5 + $0x48] sm:$0xf]
  %v460 = vld [vmem:[%s5 + $0x4c] sm:$0xf]
  %v461 = vld [vmem:[%s5 + $0x50] sm:$0xf]
  %v462 = vld [vmem:[%s5 + $0x54] sm:$0xf]
  %v463 = vld [vmem:[%s5 + $0x58] sm:$0xf]
  %v464 = vld [vmem:[%s5 + $0x5c] sm:$0xf]
  %v465 = vld [vmem:[%s5 + $0x60] sm:$0xf]
  %v466 = vld [vmem:[%s5 + $0x64] sm:$0xf]
  %v467 = vld [vmem:[%s5 + $0x68] sm:$0xf]
  %v468 = vld [vmem:[%s5 + $0x6c] sm:$0xf]
  %v469 = vld [vmem:[%s5 + $0x70] sm:$0xf]
  %v470 = vld [vmem:[%s5 + $0x74] sm:$0xf]
  %v471 = vld [vmem:[%s5 + $0x78] sm:$0xf]
  %v472 = vld [vmem:[%s5 + $0x7c] sm:$0xf]
  %v473 = vld [vmem:[%s5 + $0x80] sm:$0xf]
  %v474 = vld [vmem:[%s5 + $0x84] sm:$0xf]
  %v475 = vld [vmem:[%s5 + $0x88] sm:$0xf]
  %v476 = vld [vmem:[%s5 + $0x8c] sm:$0xf]
  %v477 = vld [vmem:[%s5 + $0x90] sm:$0xf]
  %v478 = vld [vmem:[%s5 + $0x94] sm:$0xf]
  %v479 = vld [vmem:[%s5 + $0x98] sm:$0xf]
  %v480 = vld [vmem:[%s5 + $0x9c] sm:$0xf]
  %v481 = vld [vmem:[%s5 + $0xa0] sm:$0xf]
  %v482 = vld [vmem:[%s5 + $0xa4] sm:$0xf]
  %v483 = vld [vmem:[%s5 + $0xa8] sm:$0xf]
  %v484 = vld [vmem:[%s5 + $0xac] sm:$0xf]
  %v485 = vld [vmem:[%s5 + $0xb0] sm:$0xf]
  %v486 = vld [vmem:[%s5 + $0xb4] sm:$0xf]
  %v487 = vld [vmem:[%s5 + $0xb8] sm:$0xf]
  %v488 = vld [vmem:[%s5 + $0xbc] sm:$0xf]
  %v489 = vld [vmem:[%s5 + $0xc0] sm:$0xf]
  %v490 = vld [vmem:[%s5 + $0xc4] sm:$0xf]
  %v491 = vld [vmem:[%s5 + $0xc8] sm:$0xf]
  %v492 = vld [vmem:[%s5 + $0xcc] sm:$0xf]
  %v493 = vld [vmem:[%s5 + $0xd0] sm:$0xf]
  %v494 = vld [vmem:[%s5 + $0xd4] sm:$0xf]
  %v495 = vld [vmem:[%s5 + $0xd8] sm:$0xf]
  %v496 = vld [vmem:[%s5 + $0xdc] sm:$0xf]
  %v497 = vld [vmem:[%s5 + $0xe0] sm:$0xf]
  %v498 = vld [vmem:[%s5 + $0xe4] sm:$0xf]
  %v499 = vld [vmem:[%s5 + $0xe8] sm:$0xf]
  %v500 = vld [vmem:[%s5 + $0xec] sm:$0xf]
  %v501 = vld [vmem:[%s5 + $0xf0] sm:$0xf]
  %v502 = vld [vmem:[%s5 + $0xf4] sm:$0xf]
  %v503 = vld [vmem:[%s5 + $0xf8] sm:$0xf]
  %v504 = vld [vmem:[%s5 + $0xfc] sm:$0xf]
  %v505 = vld [vmem:[%s6] sm:$0x1]
  %v507 = vlaneseq
  %v508 = vshrl.u32 %v507, 7
  %v509 = vsub.s32 0, %v508
  %v510 = vrot.slane %v505, %v509
  %v576 = vunpack.c.l.b16 %v441
  %v577 = vunpack.c.l.b16 %v442
  %v578 = vunpack.c.l.b16 %v443
  %v579 = vunpack.c.l.b16 %v444
  %v580 = vunpack.c.l.b16 %v445
  %v581 = vunpack.c.l.b16 %v446
  %v582 = vunpack.c.l.b16 %v447
  %v583 = vunpack.c.l.b16 %v448
  %v584 = vunpack.c.l.b16 %v449
  %v585 = vunpack.c.l.b16 %v450
  %v586 = vunpack.c.l.b16 %v451
  %v587 = vunpack.c.l.b16 %v452
  %v588 = vunpack.c.l.b16 %v453
  %v589 = vunpack.c.l.b16 %v454
  %v590 = vunpack.c.l.b16 %v455
  %v591 = vunpack.c.l.b16 %v456
  %v592 = vunpack.c.l.b16 %v457
  %v593 = vunpack.c.l.b16 %v458
  %v594 = vunpack.c.l.b16 %v459
  %v595 = vunpack.c.l.b16 %v460
  %v596 = vunpack.c.l.b16 %v461
  %v597 = vunpack.c.l.b16 %v462
  %v598 = vunpack.c.l.b16 %v463
  %v599 = vunpack.c.l.b16 %v464
  %v600 = vunpack.c.l.b16 %v465
  %v601 = vunpack.c.l.b16 %v466
  %v602 = vunpack.c.l.b16 %v467
  %v603 = vunpack.c.l.b16 %v468
  %v604 = vunpack.c.l.b16 %v469
  %v605 = vunpack.c.l.b16 %v470
  %v606 = vunpack.c.l.b16 %v471
  %v607 = vunpack.c.l.b16 %v472
  %v608 = vunpack.c.l.b16 %v473
  %v609 = vunpack.c.l.b16 %v474
  %v610 = vunpack.c.l.b16 %v475
  %v611 = vunpack.c.l.b16 %v476
  %v612 = vunpack.c.l.b16 %v477
  %v613 = vunpack.c.l.b16 %v478
  %v614 = vunpack.c.l.b16 %v479
  %v615 = vunpack.c.l.b16 %v480
  %v616 = vunpack.c.l.b16 %v481
  %v617 = vunpack.c.l.b16 %v482
  %v618 = vunpack.c.l.b16 %v483
  %v619 = vunpack.c.l.b16 %v484
  %v620 = vunpack.c.l.b16 %v485
  %v621 = vunpack.c.l.b16 %v486
  %v622 = vunpack.c.l.b16 %v487
  %v623 = vunpack.c.l.b16 %v488
  %v624 = vunpack.c.l.b16 %v489
  %v625 = vunpack.c.l.b16 %v490
  %v626 = vunpack.c.l.b16 %v491
  %v627 = vunpack.c.l.b16 %v492
  %v628 = vunpack.c.l.b16 %v493
  %v629 = vunpack.c.l.b16 %v494
  %v630 = vunpack.c.l.b16 %v495
  %v631 = vunpack.c.l.b16 %v496
  %v632 = vunpack.c.l.b16 %v497
  %v633 = vunpack.c.l.b16 %v498
  %v634 = vunpack.c.l.b16 %v499
  %v635 = vunpack.c.l.b16 %v500
  %v636 = vunpack.c.l.b16 %v501
  %v637 = vunpack.c.l.b16 %v502
  %v638 = vunpack.c.l.b16 %v503
  %v639 = vunpack.c.l.b16 %v504
  %v640 = vpack.c.b16 %v577, %v576
  %v641 = vpack.c.b16 %v579, %v578
  %v642 = vpack.c.b16 %v581, %v580
  %v643 = vpack.c.b16 %v583, %v582
  %v644 = vpack.c.b16 %v585, %v584
  %v645 = vpack.c.b16 %v587, %v586
  %v646 = vpack.c.b16 %v589, %v588
  %v647 = vpack.c.b16 %v591, %v590
  %v648 = vpack.c.b16 %v593, %v592
  %v649 = vpack.c.b16 %v595, %v594
  %v650 = vpack.c.b16 %v597, %v596
  %v651 = vpack.c.b16 %v599, %v598
  %v652 = vpack.c.b16 %v601, %v600
  %v653 = vpack.c.b16 %v603, %v602
  %v654 = vpack.c.b16 %v605, %v604
  %v655 = vpack.c.b16 %v607, %v606
  %v656 = vpack.c.b16 %v609, %v608
  %v657 = vpack.c.b16 %v611, %v610
  %v658 = vpack.c.b16 %v613, %v612
  %v659 = vpack.c.b16 %v615, %v614
  %v660 = vpack.c.b16 %v617, %v616
  %v661 = vpack.c.b16 %v619, %v618
  %v662 = vpack.c.b16 %v621, %v620
  %v663 = vpack.c.b16 %v623, %v622
  %v664 = vpack.c.b16 %v625, %v624
  %v665 = vpack.c.b16 %v627, %v626
  %v666 = vpack.c.b16 %v629, %v628
  %v667 = vpack.c.b16 %v631, %v630
  %v668 = vpack.c.b16 %v633, %v632
  %v669 = vpack.c.b16 %v635, %v634
  %v670 = vpack.c.b16 %v637, %v636
  %v671 = vpack.c.b16 %v639, %v638
  %704 = vmatprep.subr.bf16.mxu0 0
  %705 = vmatpush1.bf16.msra.mxu0 %v640
  %706 = vmatprep.subr.bf16.mxu0 0
  %707 = vmatpush1.bf16.msra.mxu0 %v641
  %708 = vmatprep.subr.bf16.mxu0 0
  %709 = vmatpush1.bf16.msra.mxu0 %v642
  %710 = vmatprep.subr.bf16.mxu0 0
  %711 = vmatpush1.bf16.msra.mxu0 %v643
  %712 = vmatprep.subr.bf16.mxu0 0
  %713 = vmatpush1.bf16.msra.mxu0 %v644
  %714 = vmatprep.subr.bf16.mxu0 0
  %715 = vmatpush1.bf16.msra.mxu0 %v645
  %716 = vmatprep.subr.bf16.mxu0 0
  %717 = vmatpush1.bf16.msra.mxu0 %v646
  %718 = vmatprep.subr.bf16.mxu0 0
  %719 = vmatpush1.bf16.msra.mxu0 %v647
  %720 = vmatprep.subr.bf16.mxu0 0
  %721 = vmatpush1.bf16.msra.mxu0 %v648
  %722 = vmatprep.subr.bf16.mxu0 0
  %723 = vmatpush1.bf16.msra.mxu0 %v649
  %724 = vmatprep.subr.bf16.mxu0 0
  %725 = vmatpush1.bf16.msra.mxu0 %v650
  %726 = vmatprep.subr.bf16.mxu0 0
  %727 = vmatpush1.bf16.msra.mxu0 %v651
  %728 = vmatprep.subr.bf16.mxu0 0
  %729 = vmatpush1.bf16.msra.mxu0 %v652
  %730 = vmatprep.subr.bf16.mxu0 0
  %731 = vmatpush1.bf16.msra.mxu0 %v653
  %732 = vmatprep.subr.bf16.mxu0 0
  %733 = vmatpush1.bf16.msra.mxu0 %v654
  %734 = vmatprep.subr.bf16.mxu0 0
  %735 = vmatpush1.bf16.msra.mxu0 %v655
  %736 = vmatprep.mubr.bf16.mxu0 %v438
  %737 = vmatmul.mubr.bf16.gmra.mrb[0].mxu0 %v437
  %v738 = vpop.f32.mrb[0].mxu0
  %v739 = vadd.f32 %v510, %v738
  %v740 = vpop.f32.mrb[0].mxu0
  %v741 = vpop.f32.mrb[0].mxu0
  %v742 = vadd.f32 %v510, %v741
  %v743 = vpop.f32.mrb[0].mxu0
  %744 = vdwg.mxu0
  %745 = vmatprep.subr.bf16.mxu0 0
  %746 = vmatpush1.bf16.msra.mxu0 %v656
  %747 = vmatprep.subr.bf16.mxu0 0
  %748 = vmatpush1.bf16.msra.mxu0 %v657
  %749 = vmatprep.subr.bf16.mxu0 0
  %750 = vmatpush1.bf16.msra.mxu0 %v658
  %751 = vmatprep.subr.bf16.mxu0 0
  %752 = vmatpush1.bf16.msra.mxu0 %v659
  %753 = vmatprep.subr.bf16.mxu0 0
  %754 = vmatpush1.bf16.msra.mxu0 %v660
  %755 = vmatprep.subr.bf16.mxu0 0
  %756 = vmatpush1.bf16.msra.mxu0 %v661
  %757 = vmatprep.subr.bf16.mxu0 0
  %758 = vmatpush1.bf16.msra.mxu0 %v662
  %759 = vmatprep.subr.bf16.mxu0 0
  %760 = vmatpush1.bf16.msra.mxu0 %v663
  %761 = vmatprep.subr.bf16.mxu0 0
  %762 = vmatpush1.bf16.msra.mxu0 %v664
  %763 = vmatprep.subr.bf16.mxu0 0
  %764 = vmatpush1.bf16.msra.mxu0 %v665
  %765 = vmatprep.subr.bf16.mxu0 0
  %766 = vmatpush1.bf16.msra.mxu0 %v666
  %767 = vmatprep.subr.bf16.mxu0 0
  %768 = vmatpush1.bf16.msra.mxu0 %v667
  %769 = vmatprep.subr.bf16.mxu0 0
  %770 = vmatpush1.bf16.msra.mxu0 %v668
  %771 = vmatprep.subr.bf16.mxu0 0
  %772 = vmatpush1.bf16.msra.mxu0 %v669
  %773 = vmatprep.subr.bf16.mxu0 0
  %774 = vmatpush1.bf16.msra.mxu0 %v670
  %775 = vmatprep.subr.bf16.mxu0 0
  %776 = vmatpush1.bf16.msra.mxu0 %v671
  %777 = vmatprep.mubr.bf16.mxu0 %v440
  %778 = vmatmul.mubr.bf16.gmra.mrb[0].mxu0 %v439
  %v779 = vpop.f32.mrb[0].mxu0
  %v780 = vadd.f32 %v739, %v779
  %v781 = vpop.f32.mrb[0].mxu0
  %v782 = vpop.f32.mrb[0].mxu0
  %v783 = vadd.f32 %v742, %v782
  %v784 = vpop.f32.mrb[0].mxu0
  %785 = vdwg.mxu0
  %v786 = vadd.f32 %v29, %v780
  %v787 = vadd.f32 %v30, %v783
  %v788 = vpack.c.bf16 %v787, %v786
  %v790 = vunpack.c.l.b16 %v788
  %v791 = vunpack.c.h.b16 %v788
  %v792 = vpack.c.b16 %v790, %v790
  %v793 = vpack.c.b16 %v791, %v791
  %796 = vst [vmem:[%s7] sm:$0xf] %v792
  %797 = vst [vmem:[%s7 + $0x4] sm:$0xf] %v793
  // Predicated region
  $region30: #{clip_text_forward.5} parent=0 // pred_check
    _
  $region31: #{clip_text_forward.5} parent=0 // pred_check_branch
    %799 = sbr.rel (0) target = $region33
  $region32: #{clip_text_forward.5} parent=0 // pred_region
    _
  $region33: #{clip_text_forward.5} parent=0 // pred_fallthru
    _
  // Predicated region
  $region34: #{clip_text_forward.5} parent=0 // pred_check
    _
  $region35: #{clip_text_forward.5} parent=0 // pred_check_branch
    %801 = sbr.rel (0) target = $region37
  $region36: #{clip_text_forward.5} parent=0 // pred_region
    _
  $region37: #{clip_text_forward.5} parent=0 // pred_fallthru
    _

// kernel: clip_text_forward.7
$region0: #{clip_text_forward.7}
  #allocation0 [shape = 'u32[]', space=smem, size = 0x4, offset = 0x4, fixed_abs, tag = 'smem constant byte address 0x4 - core index']
  #allocation1 [shape = 'u32[144,128]{1,0:T(1,128)}', space=vmem, size = 0x12000, scoped, tag = 'internal scratch']
  %s0 = inlined_call_operand.vmem [shape: bf16[16,128], index: 0, kind: input, shape index: {}]
  %s1 = inlined_call_operand.vmem [shape: f32[1,128], index: 1, kind: input, shape index: {}]
  %s2 = inlined_call_operand.vmem [shape: f32[1,128], index: 2, kind: input, shape index: {}]
  %s3 = inlined_call_operand.vmem [shape: bf16[128,512], index: 3, kind: input, shape index: {}]
  %s4 = inlined_call_operand.vmem [shape: f32[1,512], index: 4, kind: input, shape index: {}]
  %s5 = inlined_call_operand.vmem [shape: bf16[512,128], index: 5, kind: input, shape index: {}]
  %s6 = inlined_call_operand.vmem [shape: f32[1,128], index: 6, kind: input, shape index: {}]
  %s7 = inlined_call_operand.vmem [shape: f32[1,128], index: 7, kind: input, shape index: {}]
  %s8 = inlined_call_operand.vmem [shape: f32[1,128], index: 8, kind: input, shape index: {}]
  %s9 = inlined_call_operand.vmem [shape: f32[16,128], index: 9, kind: output, shape index: {}]
  %s10 = sld [smem:[#allocation0]]
  $region46: #{clip_text_forward.7} parent=0
    _
  %s12 = ssub.s32 1, %s10
  %s13 = scalar_select 0, %s12, %s10
  // Predicated region
  $region2: #{clip_text_forward.7} parent=0 // pred_check
    _
  $region3: #{clip_text_forward.7} parent=0 // pred_check_branch
    %15 = sbr.rel (0) target = $region5
  $region4: #{clip_text_forward.7} parent=0 // pred_region
    _
  $region5: #{clip_text_forward.7} parent=0 // pred_fallthru
    _
  // Predicated region
  $region6: #{clip_text_forward.7} parent=0 // pred_check
    _
  $region7: #{clip_text_forward.7} parent=0 // pred_check_branch
    %17 = sbr.rel (0) target = $region9
  $region8: #{clip_text_forward.7} parent=0 // pred_region
    _
  $region9: #{clip_text_forward.7} parent=0 // pred_fallthru
    _
  // Predicated region
  $region10: #{clip_text_forward.7} parent=0 // pred_check
    _
  $region11: #{clip_text_forward.7} parent=0 // pred_check_branch
    %19 = sbr.rel (0) target = $region13
  $region12: #{clip_text_forward.7} parent=0 // pred_region
    _
  $region13: #{clip_text_forward.7} parent=0 // pred_fallthru
    _
  // Predicated region
  $region14: #{clip_text_forward.7} parent=0 // pred_check
    _
  $region15: #{clip_text_forward.7} parent=0 // pred_check_branch
    %21 = sbr.rel (0) target = $region17
  $region16: #{clip_text_forward.7} parent=0 // pred_region
    _
  $region17: #{clip_text_forward.7} parent=0 // pred_fallthru
    _
  // Predicated region
  $region18: #{clip_text_forward.7} parent=0 // pred_check
    _
  $region19: #{clip_text_forward.7} parent=0 // pred_check_branch
    %23 = sbr.rel (0) target = $region21
  $region20: #{clip_text_forward.7} parent=0 // pred_region
    _
  $region21: #{clip_text_forward.7} parent=0 // pred_fallthru
    _
  // Predicated region
  $region22: #{clip_text_forward.7} parent=0 // pred_check
    _
  $region23: #{clip_text_forward.7} parent=0 // pred_check_branch
    %25 = sbr.rel (0) target = $region25
  $region24: #{clip_text_forward.7} parent=0 // pred_region
    _
  $region25: #{clip_text_forward.7} parent=0 // pred_fallthru
    _
  // Predicated region
  $region26: #{clip_text_forward.7} parent=0 // pred_check
    _
  $region27: #{clip_text_forward.7} parent=0 // pred_check_branch
    %27 = sbr.rel (0) target = $region29
  $region28: #{clip_text_forward.7} parent=0 // pred_region
    _
  $region29: #{clip_text_forward.7} parent=0 // pred_fallthru
    _
  // Predicated region
  $region30: #{clip_text_forward.7} parent=0 // pred_check
    _
  $region31: #{clip_text_forward.7} parent=0 // pred_check_branch
    %29 = sbr.rel (0) target = $region33
  $region32: #{clip_text_forward.7} parent=0 // pred_region
    _
  $region33: #{clip_text_forward.7} parent=0 // pred_fallthru
    _
  // Predicated region
  $region34: #{clip_text_forward.7} parent=0 // pred_check
    _
  $region35: #{clip_text_forward.7} parent=0 // pred_check_branch
    %31 = sbr.rel (0) target = $region37
  $region36: #{clip_text_forward.7} parent=0 // pred_region
    _
  $region37: #{clip_text_forward.7} parent=0 // pred_fallthru
    _
  %v33 = vld [vmem:[%s0] sm:$0xf]
  %v34 = vld [vmem:[%s0 + $0x4] sm:$0xf]
  %v35 = vunpack.c.l.bf16 %v33
  %v36 = vunpack.c.l.bf16 %v34
  %v37 = vld [vmem:[%s1] sm:$0x1]
  %v38 = vld [vmem:[%s2] sm:$0x1]
  %39 = vadd.xlane.f32.xlu0 %v35
  %v40 = vpop.xlane.xlu0 %39
  %41 = vadd.xlane.f32.xlu0 %v36
  %v42 = vpop.xlane.xlu0 %41
  %v43 = vrcp.pop 128.0
  %v44 = vmul.f32 %v40, %v43
  %v45 = vmul.f32 %v42, %v43
  %v46 = vsub.f32 %v35, %v44
  %v47 = vsub.f32 %v36, %v45
  %v48 = vmul.f32 %v46, %v46
  %v49 = vmul.f32 %v47, %v47
  %50 = vadd.xlane.f32.xlu0 %v48
  %v51 = vpop.xlane.xlu0 %50
  %52 = vadd.xlane.f32.xlu0 %v49
  %v53 = vpop.xlane.xlu0 %52
  %v54 = vmul.f32 %v51, %v43
  %v55 = vmul.f32 %v53, %v43
  %v56 = vadd.f32 %v54, 1e-05
  %v57 = vadd.f32 %v55, 1e-05
  %v58 = vrsqrt.pop %v56
  %v59 = vrsqrt.pop %v57
  %v60 = vmul.f32 %v46, %v58
  %v61 = vmul.f32 %v47, %v59
  %v63 = vlaneseq
  %v64 = vshrl.u32 %v63, 7
  %v65 = vsub.s32 0, %v64
  %v66 = vrot.slane %v37, %v65
  %v68 = vmul.f32 %v60, %v66
  %v69 = vmul.f32 %v61, %v66
  %v71 = vlaneseq
  %v72 = vshrl.u32 %v71, 7
  %v73 = vsub.s32 0, %v72
  %v74 = vrot.slane %v38, %v73
  %v76 = vadd.f32 %v68, %v74
  %v77 = vadd.f32 %v69, %v74
  %v78 = vpack.c.bf16 %v77, %v76
  %v79 = vld [vmem:[%s3] sm:$0xff]
  %v80 = vld [vmem:[%s3 + $0x8] sm:$0xff]
  %v81 = vld [vmem:[%s3 + $0x10] sm:$0xff]
  %v82 = vld [vmem:[%s3 + $0x18] sm:$0xff]
  %v83 = vld [vmem:[%s3 + $0x20] sm:$0xff]
  %v84 = vld [vmem:[%s3 + $0x28] sm:$0xff]
  %v85 = vld [vmem:[%s3 + $0x30] sm:$0xff]
  %v86 = vld [vmem:[%s3 + $0x38] sm:$0xff]
  %v87 = vld [vmem:[%s3 + $0x40] sm:$0xff]
  %v88 = vld [vmem:[%s3 + $0x48] sm:$0xff]
  %v89 = vld [vmem:[%s3 + $0x50] sm:$0xff]
  %v90 = vld [vmem:[%s3 + $0x58] sm:$0xff]
  %v91 = vld [vmem:[%s3 + $0x60] sm:$0xff]
  %v92 = vld [vmem:[%s3 + $0x68] sm:$0xff]
  %v93 = vld [vmem:[%s3 + $0x70] sm:$0xff]
  %v94 = vld [vmem:[%s3 + $0x78] sm:$0xff]
  %v95 = vld [vmem:[%s3 + $0x80] sm:$0xff]
  %v96 = vld [vmem:[%s3 + $0x88] sm:$0xff]
  %v97 = vld [vmem:[%s3 + $0x90] sm:$0xff]
  %v98 = vld [vmem:[%s3 + $0x98] sm:$0xff]
  %v99 = vld [vmem:[%s3 + $0xa0] sm:$0xff]
  %v100 = vld [vmem:[%s3 + $0xa8] sm:$0xff]
  %v101 = vld [vmem:[%s3 + $0xb0] sm:$0xff]
  %v102 = vld [vmem:[%s3 + $0xb8] sm:$0xff]
  %v103 = vld [vmem:[%s3 + $0xc0] sm:$0xff]
  %v104 = vld [vmem:[%s3 + $0xc8] sm:$0xff]
  %v105 = vld [vmem:[%s3 + $0xd0] sm:$0xff]
  %v106 = vld [vmem:[%s3 + $0xd8] sm:$0xff]
  %v107 = vld [vmem:[%s3 + $0xe0] sm:$0xff]
  %v108 = vld [vmem:[%s3 + $0xe8] sm:$0xff]
  %v109 = vld [vmem:[%s3 + $0xf0] sm:$0xff]
  %v110 = vld [vmem:[%s3 + $0xf8] sm:$0xff]
  %v111 = vld [vmem:[%s4] sm:$0xf]
  %v113 = vlaneseq
  %v114 = vshrl.u32 %v113, 7
  %v115 = vsub.s32 0, %v114
  %v116 = vrot.slane %v111, %v115
  %v117 = vlaneseq
  %v118 = vshrl.u32 %v117, 7
  %v119 = vsub.s32 1, %v118
  %v120 = vrot.slane %v111, %v119
  %v121 = vlaneseq
  %v122 = vshrl.u32 %v121, 7
  %v123 = vsub.s32 2, %v122
  %v124 = vrot.slane %v111, %v123
  %v125 = vlaneseq
  %v126 = vshrl.u32 %v125, 7
  %v127 = vsub.s32 3, %v126
  %v128 = vrot.slane %v111, %v127
  %v165 = vunpack.c.l.b16 %v79
  %v166 = vunpack.c.h.b16 %v79
  %v167 = vunpack.c.l.b16 %v80
  %v168 = vunpack.c.h.b16 %v80
  %v169 = vunpack.c.l.b16 %v81
  %v170 = vunpack.c.h.b16 %v81
  %v171 = vunpack.c.l.b16 %v82
  %v172 = vunpack.c.h.b16 %v82
  %v173 = vunpack.c.l.b16 %v83
  %v174 = vunpack.c.h.b16 %v83
  %v175 = vunpack.c.l.b16 %v84
  %v176 = vunpack.c.h.b16 %v84
  %v177 = vunpack.c.l.b16 %v85
  %v178 = vunpack.c.h.b16 %v85
  %v179 = vunpack.c.l.b16 %v86
  %v180 = vunpack.c.h.b16 %v86
  %v181 = vunpack.c.l.b16 %v87
  %v182 = vunpack.c.h.b16 %v87
  %v183 = vunpack.c.l.b16 %v88
  %v184 = vunpack.c.h.b16 %v88
  %v185 = vunpack.c.l.b16 %v89
  %v186 = vunpack.c.h.b16 %v89
  %v187 = vunpack.c.l.b16 %v90
  %v188 = vunpack.c.h.b16 %v90
  %v189 = vunpack.c.l.b16 %v91
  %v190 = vunpack.c.h.b16 %v91
  %v191 = vunpack.c.l.b16 %v92
  %v192 = vunpack.c.h.b16 %v92
  %v193 = vunpack.c.l.b16 %v93
  %v194 = vunpack.c.h.b16 %v93
  %v195 = vunpack.c.l.b16 %v94
  %v196 = vunpack.c.h.b16 %v94
  %v197 = vunpack.c.l.b16 %v95
  %v198 = vunpack.c.h.b16 %v95
  %v199 = vunpack.c.l.b16 %v96
  %v200 = vunpack.c.h.b16 %v96
  %v201 = vunpack.c.l.b16 %v97
  %v202 = vunpack.c.h.b16 %v97
  %v203 = vunpack.c.l.b16 %v98
  %v204 = vunpack.c.h.b16 %v98
  %v205 = vunpack.c.l.b16 %v99
  %v206 = vunpack.c.h.b16 %v99
  %v207 = vunpack.c.l.b16 %v100
  %v208 = vunpack.c.h.b16 %v100
  %v209 = vunpack.c.l.b16 %v101
  %v210 = vunpack.c.h.b16 %v101
  %v211 = vunpack.c.l.b16 %v102
  %v212 = vunpack.c.h.b16 %v102
  %v213 = vunpack.c.l.b16 %v103
  %v214 = vunpack.c.h.b16 %v103
  %v215 = vunpack.c.l.b16 %v104
  %v216 = vunpack.c.h.b16 %v104
  %v217 = vunpack.c.l.b16 %v105
  %v218 = vunpack.c.h.b16 %v105
  %v219 = vunpack.c.l.b16 %v106
  %v220 = vunpack.c.h.b16 %v106
  %v221 = vunpack.c.l.b16 %v107
  %v222 = vunpack.c.h.b16 %v107
  %v223 = vunpack.c.l.b16 %v108
  %v224 = vunpack.c.h.b16 %v108
  %v225 = vunpack.c.l.b16 %v109
  %v226 = vunpack.c.h.b16 %v109
  %v227 = vunpack.c.l.b16 %v110
  %v228 = vunpack.c.h.b16 %v110
  %v229 = vpack.c.b16 %v169, %v165
  %v230 = vpack.c.b16 %v170, %v166
  %v231 = vpack.c.b16 %v171, %v167
  %v232 = vpack.c.b16 %v172, %v168
  %v233 = vpack.c.b16 %v177, %v173
  %v234 = vpack.c.b16 %v178, %v174
  %v235 = vpack.c.b16 %v179, %v175
  %v236 = vpack.c.b16 %v180, %v176
  %v237 = vpack.c.b16 %v185, %v181
  %v238 = vpack.c.b16 %v186, %v182
  %v239 = vpack.c.b16 %v187, %v183
  %v240 = vpack.c.b16 %v188, %v184
  %v241 = vpack.c.b16 %v193, %v189
  %v242 = vpack.c.b16 %v194, %v190
  %v243 = vpack.c.b16 %v195, %v191
  %v244 = vpack.c.b16 %v196, %v192
  %v245 = vpack.c.b16 %v201, %v197
  %v246 = vpack.c.b16 %v202, %v198
  %v247 = vpack.c.b16 %v203, %v199
  %v248 = vpack.c.b16 %v204, %v200
  %v249 = vpack.c.b16 %v209, %v205
  %v250 = vpack.c.b16 %v210, %v206
  %v251 = vpack.c.b16 %v211, %v207
  %v252 = vpack.c.b16 %v212, %v208
  %v253 = vpack.c.b16 %v217, %v213
  %v254 = vpack.c.b16 %v218, %v214
  %v255 = vpack.c.b16 %v219, %v215
  %v256 = vpack.c.b16 %v220, %v216
  %v257 = vpack.c.b16 %v225, %v221
  %v258 = vpack.c.b16 %v226, %v222
  %v259 = vpack.c.b16 %v227, %v223
  %v260 = vpack.c.b16 %v228, %v224
  %293 = vmatprep.subr.bf16.mxu0 %v230
  %294 = vmatpush1.bf16.msra.mxu0 %v229
  %295 = vmatprep.subr.bf16.mxu0 %v234
  %296 = vmatpush1.bf16.msra.mxu0 %v233
  %297 = vmatprep.subr.bf16.mxu0 %v238
  %298 = vmatpush1.bf16.msra.mxu0 %v237
  %299 = vmatprep.subr.bf16.mxu0 %v242
  %300 = vmatpush1.bf16.msra.mxu0 %v241
  %301 = vmatprep.subr.bf16.mxu0 %v246
  %302 = vmatpush1.bf16.msra.mxu0 %v245
  %303 = vmatprep.subr.bf16.mxu0 %v250
  %304 = vmatpush1.bf16.msra.mxu0 %v249
  %305 = vmatprep.subr.bf16.mxu0 %v254
  %306 = vmatpush1.bf16.msra.mxu0 %v253
  %307 = vmatprep.subr.bf16.mxu0 %v258
  %308 = vmatpush1.bf16.msra.mxu0 %v257
  %309 = vmatprep.subr.bf16.mxu0 0
  %310 = vmatpush1.bf16.msra.mxu0 0
  %311 = vmatprep.subr.bf16.mxu0 0
  %312 = vmatpush1.bf16.msra.mxu0 0
  %313 = vmatprep.subr.bf16.mxu0 0
  %314 = vmatpush1.bf16.msra.mxu0 0
  %315 = vmatprep.subr.bf16.mxu0 0
  %316 = vmatpush1.bf16.msra.mxu0 0
  %317 = vmatprep.subr.bf16.mxu0 0
  %318 = vmatpush1.bf16.msra.mxu0 0
  %319 = vmatprep.subr.bf16.mxu0 0
  %320 = vmatpush1.bf16.msra.mxu0 0
  %321 = vmatprep.subr.bf16.mxu0 0
  %322 = vmatpush1.bf16.msra.mxu0 0
  %323 = vmatprep.subr.bf16.mxu0 0
  %324 = vmatpush1.bf16.msra.mxu0 0
  %325 = vmatprep.mubr.bf16.mxu0 0
  %326 = vmatmul.mubr.bf16.gmra.mrb[0].mxu0 %v78
  %v327 = vpop.f32.mrb[0].mxu0
  %v328 = vadd.f32 %v116, %v327
  %v329 = vpop.f32.mrb[0].mxu0
  %v330 = vadd.f32 %v120, %v329
  %v331 = vpop.f32.mrb[0].mxu0
  %v332 = vadd.f32 %v116, %v331
  %v333 = vpop.f32.mrb[0].mxu0
  %v334 = vadd.f32 %v120, %v333
  %335 = vdwg.mxu0
  %336 = vmatprep.subr.bf16.mxu0 %v232
  %337 = vmatpush1.bf16.msra.mxu0 %v231
  %338 = vmatprep.subr.bf16.mxu0 %v236
  %339 = vmatpush1.bf16.msra.mxu0 %v235
  %340 = vmatprep.subr.bf16.mxu0 %v240
  %341 = vmatpush1.bf16.msra.mxu0 %v239
  %342 = vmatprep.subr.bf16.mxu0 %v244
  %343 = vmatpush1.bf16.msra.mxu0 %v243
  %344 = vmatprep.subr.bf16.mxu0 %v248
  %345 = vmatpush1.bf16.msra.mxu0 %v247
  %346 = vmatprep.subr.bf16.mxu0 %v252
  %347 = vmatpush1.bf16.msra.mxu0 %v251
  %348 = vmatprep.subr.bf16.mxu0 %v256
  %349 = vmatpush1.bf16.msra.mxu0 %v255
  %350 = vmatprep.subr.bf16.mxu0 %v260
  %351 = vmatpush1.bf16.msra.mxu0 %v259
  %352 = vmatprep.subr.bf16.mxu0 0
  %353 = vmatpush1.bf16.msra.mxu0 0
  %354 = vmatprep.subr.bf16.mxu0 0
  %355 = vmatpush1.bf16.msra.mxu0 0
  %356 = vmatprep.subr.bf16.mxu0 0
  %357 = vmatpush1.bf16.msra.mxu0 0
  %358 = vmatprep.subr.bf16.mxu0 0
  %359 = vmatpush1.bf16.msra.mxu0 0
  %360 = vmatprep.subr.bf16.mxu0 0
  %361 = vmatpush1.bf16.msra.mxu0 0
  %362 = vmatprep.subr.bf16.mxu0 0
  %363 = vmatpush1.bf16.msra.mxu0 0
  %364 = vmatprep.subr.bf16.mxu0 0
  %365 = vmatpush1.bf16.msra.mxu0 0
  %366 = vmatprep.subr.bf16.mxu0 0
  %367 = vmatpush1.bf16.msra.mxu0 0
  %368 = vmatprep.mubr.bf16.mxu0 0
  %369 = vmatmul.mubr.bf16.gmra.mrb[0].mxu0 %v78
  %v370 = vpop.f32.mrb[0].mxu0
  %v371 = vadd.f32 %v124, %v370
  %v372 = vpop.f32.mrb[0].mxu0
  %v373 = vadd.f32 %v128, %v372
  %v374 = vpop.f32.mrb[0].mxu0
  %v375 = vadd.f32 %v124, %v374
  %v376 = vpop.f32.mrb[0].mxu0
  %v377 = vadd.f32 %v128, %v376
  %378 = vdwg.mxu0
  %v379 = vmul.f32 %v328, 1.702
  %v380 = vmul.f32 %v330, 1.702
  %v381 = vmul.f32 %v371, 1.702
  %v382 = vmul.f32 %v373, 1.702
  %v383 = vmul.f32 %v332, 1.702
  %v384 = vmul.f32 %v334, 1.702
  %v385 = vmul.f32 %v375, 1.702
  %v386 = vmul.f32 %v377, 1.702
  %v387 = vxor.u32 %v379, 2147483648
  %v388 = vxor.u32 %v380, 2147483648
  %v389 = vxor.u32 %v381, 2147483648
  %v390 = vxor.u32 %v382, 2147483648
  %v391 = vxor.u32 %v383, 2147483648
  %v392 = vxor.u32 %v384, 2147483648
  %v393 = vxor.u32 %v385, 2147483648
  %v394 = vxor.u32 %v386, 2147483648
  %v395 = vmul.f32 %v387, 1.442695
  %v396 = vpow.pop %v395
  %v397 = vmul.f32 %v388, 1.442695
  %v398 = vpow.pop %v397
  %v399 = vmul.f32 %v389, 1.442695
  %v400 = vpow.pop %v399
  %v401 = vmul.f32 %v390, 1.442695
  %v402 = vpow.pop %v401
  %v403 = vmul.f32 %v391, 1.442695
  %v404 = vpow.pop %v403
  %v405 = vmul.f32 %v392, 1.442695
  %v406 = vpow.pop %v405
  %v407 = vmul.f32 %v393, 1.442695
  %v408 = vpow.pop %v407
  %v409 = vmul.f32 %v394, 1.442695
  %v410 = vpow.pop %v409
  %v411 = vadd.f32 %v396, 1.0
  %v412 = vadd.f32 %v398, 1.0
  %v413 = vadd.f32 %v400, 1.0
  %v414 = vadd.f32 %v402, 1.0
  %v415 = vadd.f32 %v404, 1.0
  %v416 = vadd.f32 %v406, 1.0
  %v417 = vadd.f32 %v408, 1.0
  %v418 = vadd.f32 %v410, 1.0
  %v419 = vrcp.pop %v411
  %v420 = vmul.f32 1.0, %v419
  %v421 = vrcp.pop %v412
  %v422 = vmul.f32 1.0, %v421
  %v423 = vrcp.pop %v413
  %v424 = vmul.f32 1.0, %v423
  %v425 = vrcp.pop %v414
  %v426 = vmul.f32 1.0, %v425
  %v427 = vrcp.pop %v415
  %v428 = vmul.f32 1.0, %v427
  %v429 = vrcp.pop %v416
  %v430 = vmul.f32 1.0, %v429
  %v431 = vrcp.pop %v417
  %v432 = vmul.f32 1.0, %v431
  %v433 = vrcp.pop %v418
  %v434 = vmul.f32 1.0, %v433
  %v435 = vmul.f32 %v328, %v420
  %v436 = vmul.f32 %v330, %v422
  %v437 = vmul.f32 %v371, %v424
  %v438 = vmul.f32 %v373, %v426
  %v439 = vmul.f32 %v332, %v428
  %v440 = vmul.f32 %v334, %v430
  %v441 = vmul.f32 %v375, %v432
  %v442 = vmul.f32 %v377, %v434
  %v443 = vpack.c.bf16 %v439, %v435
  %v444 = vpack.c.bf16 %v440, %v436
  %v445 = vpack.c.bf16 %v441, %v437
  %v446 = vpack.c.bf16 %v442, %v438
  %v447 = vld [vmem:[%s5] sm:$0xf]
  %v448 = vld [vmem:[%s5 + $0x4] sm:$0xf]
  %v449 = vld [vmem:[%s5 + $0x8] sm:$0xf]
  %v450 = vld [vmem:[%s5 + $0xc] sm:$0xf]
  %v451 = vld [vmem:[%s5 + $0x10] sm:$0xf]
  %v452 = vld [vmem:[%s5 + $0x14] sm:$0xf]
  %v453 = vld [vmem:[%s5 + $0x18] sm:$0xf]
  %v454 = vld [vmem:[%s5 + $0x1c] sm:$0xf]
  %v455 = vld [vmem:[%s5 + $0x20] sm:$0xf]
  %v456 = vld [vmem:[%s5 + $0x24] sm:$0xf]
  %v457 = vld [vmem:[%s5 + $0x28] sm:$0xf]
  %v458 = vld [vmem:[%s5 + $0x2c] sm:$0xf]
  %v459 = vld [vmem:[%s5 + $0x30] sm:$0xf]
  %v460 = vld [vmem:[%s5 + $0x34] sm:$0xf]
  %v461 = vld [vmem:[%s5 + $0x38] sm:$0xf]
  %v462 = vld [vmem:[%s5 + $0x3c] sm:$0xf]
  %v463 = vld [vmem:[%s5 + $0x40] sm:$0xf]
  %v464 = vld [vmem:[%s5 + $0x44] sm:$0xf]
  %v465 = vld [vmem:[%s5 + $0x48] sm:$0xf]
  %v466 = vld [vmem:[%s5 + $0x4c] sm:$0xf]
  %v467 = vld [vmem:[%s5 + $0x50] sm:$0xf]
  %v468 = vld [vmem:[%s5 + $0x54] sm:$0xf]
  %v469 = vld [vmem:[%s5 + $0x58] sm:$0xf]
  %v470 = vld [vmem:[%s5 + $0x5c] sm:$0xf]
  %v471 = vld [vmem:[%s5 + $0x60] sm:$0xf]
  %v472 = vld [vmem:[%s5 + $0x64] sm:$0xf]
  %v473 = vld [vmem:[%s5 + $0x68] sm:$0xf]
  %v474 = vld [vmem:[%s5 + $0x6c] sm:$0xf]
  %v475 = vld [vmem:[%s5 + $0x70] sm:$0xf]
  %v476 = vld [vmem:[%s5 + $0x74] sm:$0xf]
  %v477 = vld [vmem:[%s5 + $0x78] sm:$0xf]
  %v478 = vld [vmem:[%s5 + $0x7c] sm:$0xf]
  %v479 = vld [vmem:[%s5 + $0x80] sm:$0xf]
  %v480 = vld [vmem:[%s5 + $0x84] sm:$0xf]
  %v481 = vld [vmem:[%s5 + $0x88] sm:$0xf]
  %v482 = vld [vmem:[%s5 + $0x8c] sm:$0xf]
  %v483 = vld [vmem:[%s5 + $0x90] sm:$0xf]
  %v484 = vld [vmem:[%s5 + $0x94] sm:$0xf]
  %v485 = vld [vmem:[%s5 + $0x98] sm:$0xf]
  %v486 = vld [vmem:[%s5 + $0x9c] sm:$0xf]
  %v487 = vld [vmem:[%s5 + $0xa0] sm:$0xf]
  %v488 = vld [vmem:[%s5 + $0xa4] sm:$0xf]
  %v489 = vld [vmem:[%s5 + $0xa8] sm:$0xf]
  %v490 = vld [vmem:[%s5 + $0xac] sm:$0xf]
  %v491 = vld [vmem:[%s5 + $0xb0] sm:$0xf]
  %v492 = vld [vmem:[%s5 + $0xb4] sm:$0xf]
  %v493 = vld [vmem:[%s5 + $0xb8] sm:$0xf]
  %v494 = vld [vmem:[%s5 + $0xbc] sm:$0xf]
  %v495 = vld [vmem:[%s5 + $0xc0] sm:$0xf]
  %v496 = vld [vmem:[%s5 + $0xc4] sm:$0xf]
  %v497 = vld [vmem:[%s5 + $0xc8] sm:$0xf]
  %v498 = vld [vmem:[%s5 + $0xcc] sm:$0xf]
  %v499 = vld [vmem:[%s5 + $0xd0] sm:$0xf]
  %v500 = vld [vmem:[%s5 + $0xd4] sm:$0xf]
  %v501 = vld [vmem:[%s5 + $0xd8] sm:$0xf]
  %v502 = vld [vmem:[%s5 + $0xdc] sm:$0xf]
  %v503 = vld [vmem:[%s5 + $0xe0] sm:$0xf]
  %v504 = vld [vmem:[%s5 + $0xe4] sm:$0xf]
  %v505 = vld [vmem:[%s5 + $0xe8] sm:$0xf]
  %v506 = vld [vmem:[%s5 + $0xec] sm:$0xf]
  %v507 = vld [vmem:[%s5 + $0xf0] sm:$0xf]
  %v508 = vld [vmem:[%s5 + $0xf4] sm:$0xf]
  %v509 = vld [vmem:[%s5 + $0xf8] sm:$0xf]
  %v510 = vld [vmem:[%s5 + $0xfc] sm:$0xf]
  %v511 = vld [vmem:[%s6] sm:$0x1]
  %v513 = vlaneseq
  %v514 = vshrl.u32 %v513, 7
  %v515 = vsub.s32 0, %v514
  %v516 = vrot.slane %v511, %v515
  %v582 = vunpack.c.l.b16 %v447
  %v583 = vunpack.c.l.b16 %v448
  %v584 = vunpack.c.l.b16 %v449
  %v585 = vunpack.c.l.b16 %v450
  %v586 = vunpack.c.l.b16 %v451
  %v587 = vunpack.c.l.b16 %v452
  %v588 = vunpack.c.l.b16 %v453
  %v589 = vunpack.c.l.b16 %v454
  %v590 = vunpack.c.l.b16 %v455
  %v591 = vunpack.c.l.b16 %v456
  %v592 = vunpack.c.l.b16 %v457
  %v593 = vunpack.c.l.b16 %v458
  %v594 = vunpack.c.l.b16 %v459
  %v595 = vunpack.c.l.b16 %v460
  %v596 = vunpack.c.l.b16 %v461
  %v597 = vunpack.c.l.b16 %v462
  %v598 = vunpack.c.l.b16 %v463
  %v599 = vunpack.c.l.b16 %v464
  %v600 = vunpack.c.l.b16 %v465
  %v601 = vunpack.c.l.b16 %v466
  %v602 = vunpack.c.l.b16 %v467
  %v603 = vunpack.c.l.b16 %v468
  %v604 = vunpack.c.l.b16 %v469
  %v605 = vunpack.c.l.b16 %v470
  %v606 = vunpack.c.l.b16 %v471
  %v607 = vunpack.c.l.b16 %v472
  %v608 = vunpack.c.l.b16 %v473
  %v609 = vunpack.c.l.b16 %v474
  %v610 = vunpack.c.l.b16 %v475
  %v611 = vunpack.c.l.b16 %v476
  %v612 = vunpack.c.l.b16 %v477
  %v613 = vunpack.c.l.b16 %v478
  %v614 = vunpack.c.l.b16 %v479
  %v615 = vunpack.c.l.b16 %v480
  %v616 = vunpack.c.l.b16 %v481
  %v617 = vunpack.c.l.b16 %v482
  %v618 = vunpack.c.l.b16 %v483
  %v619 = vunpack.c.l.b16 %v484
  %v620 = vunpack.c.l.b16 %v485
  %v621 = vunpack.c.l.b16 %v486
  %v622 = vunpack.c.l.b16 %v487
  %v623 = vunpack.c.l.b16 %v488
  %v624 = vunpack.c.l.b16 %v489
  %v625 = vunpack.c.l.b16 %v490
  %v626 = vunpack.c.l.b16 %v491
  %v627 = vunpack.c.l.b16 %v492
  %v628 = vunpack.c.l.b16 %v493
  %v629 = vunpack.c.l.b16 %v494
  %v630 = vunpack.c.l.b16 %v495
  %v631 = vunpack.c.l.b16 %v496
  %v632 = vunpack.c.l.b16 %v497
  %v633 = vunpack.c.l.b16 %v498
  %v634 = vunpack.c.l.b16 %v499
  %v635 = vunpack.c.l.b16 %v500
  %v636 = vunpack.c.l.b16 %v501
  %v637 = vunpack.c.l.b16 %v502
  %v638 = vunpack.c.l.b16 %v503
  %v639 = vunpack.c.l.b16 %v504
  %v640 = vunpack.c.l.b16 %v505
  %v641 = vunpack.c.l.b16 %v506
  %v642 = vunpack.c.l.b16 %v507
  %v643 = vunpack.c.l.b16 %v508
  %v644 = vunpack.c.l.b16 %v509
  %v645 = vunpack.c.l.b16 %v510
  %v646 = vpack.c.b16 %v583, %v582
  %v647 = vpack.c.b16 %v585, %v584
  %v648 = vpack.c.b16 %v587, %v586
  %v649 = vpack.c.b16 %v589, %v588
  %v650 = vpack.c.b16 %v591, %v590
  %v651 = vpack.c.b16 %v593, %v592
  %v652 = vpack.c.b16 %v595, %v594
  %v653 = vpack.c.b16 %v597, %v596
  %v654 = vpack.c.b16 %v599, %v598
  %v655 = vpack.c.b16 %v601, %v600
  %v656 = vpack.c.b16 %v603, %v602
  %v657 = vpack.c.b16 %v605, %v604
  %v658 = vpack.c.b16 %v607, %v606
  %v659 = vpack.c.b16 %v609, %v608
  %v660 = vpack.c.b16 %v611, %v610
  %v661 = vpack.c.b16 %v613, %v612
  %v662 = vpack.c.b16 %v615, %v614
  %v663 = vpack.c.b16 %v617, %v616
  %v664 = vpack.c.b16 %v619, %v618
  %v665 = vpack.c.b16 %v621, %v620
  %v666 = vpack.c.b16 %v623, %v622
  %v667 = vpack.c.b16 %v625, %v624
  %v668 = vpack.c.b16 %v627, %v626
  %v669 = vpack.c.b16 %v629, %v628
  %v670 = vpack.c.b16 %v631, %v630
  %v671 = vpack.c.b16 %v633, %v632
  %v672 = vpack.c.b16 %v635, %v634
  %v673 = vpack.c.b16 %v637, %v636
  %v674 = vpack.c.b16 %v639, %v638
  %v675 = vpack.c.b16 %v641, %v640
  %v676 = vpack.c.b16 %v643, %v642
  %v677 = vpack.c.b16 %v645, %v644
  %710 = vmatprep.subr.bf16.mxu0 0
  %711 = vmatpush1.bf16.msra.mxu0 %v646
  %712 = vmatprep.subr.bf16.mxu0 0
  %713 = vmatpush1.bf16.msra.mxu0 %v647
  %714 = vmatprep.subr.bf16.mxu0 0
  %715 = vmatpush1.bf16.msra.mxu0 %v648
  %716 = vmatprep.subr.bf16.mxu0 0
  %717 = vmatpush1.bf16.msra.mxu0 %v649
  %718 = vmatprep.subr.bf16.mxu0 0
  %719 = vmatpush1.bf16.msra.mxu0 %v650
  %720 = vmatprep.subr.bf16.mxu0 0
  %721 = vmatpush1.bf16.msra.mxu0 %v651
  %722 = vmatprep.subr.bf16.mxu0 0
  %723 = vmatpush1.bf16.msra.mxu0 %v652
  %724 = vmatprep.subr.bf16.mxu0 0
  %725 = vmatpush1.bf16.msra.mxu0 %v653
  %726 = vmatprep.subr.bf16.mxu0 0
  %727 = vmatpush1.bf16.msra.mxu0 %v654
  %728 = vmatprep.subr.bf16.mxu0 0
  %729 = vmatpush1.bf16.msra.mxu0 %v655
  %730 = vmatprep.subr.bf16.mxu0 0
  %731 = vmatpush1.bf16.msra.mxu0 %v656
  %732 = vmatprep.subr.bf16.mxu0 0
  %733 = vmatpush1.bf16.msra.mxu0 %v657
  %734 = vmatprep.subr.bf16.mxu0 0
  %735 = vmatpush1.bf16.msra.mxu0 %v658
  %736 = vmatprep.subr.bf16.mxu0 0
  %737 = vmatpush1.bf16.msra.mxu0 %v659
  %738 = vmatprep.subr.bf16.mxu0 0
  %739 = vmatpush1.bf16.msra.mxu0 %v660
  %740 = vmatprep.subr.bf16.mxu0 0
  %741 = vmatpush1.bf16.msra.mxu0 %v661
  %742 = vmatprep.mubr.bf16.mxu0 %v444
  %743 = vmatmul.mubr.bf16.gmra.mrb[0].mxu0 %v443
  %v744 = vpop.f32.mrb[0].mxu0
  %v745 = vadd.f32 %v516, %v744
  %v746 = vpop.f32.mrb[0].mxu0
  %v747 = vpop.f32.mrb[0].mxu0
  %v748 = vadd.f32 %v516, %v747
  %v749 = vpop.f32.mrb[0].mxu0
  %750 = vdwg.mxu0
  %751 = vmatprep.subr.bf16.mxu0 0
  %752 = vmatpush1.bf16.msra.mxu0 %v662
  %753 = vmatprep.subr.bf16.mxu0 0
  %754 = vmatpush1.bf16.msra.mxu0 %v663
  %755 = vmatprep.subr.bf16.mxu0 0
  %756 = vmatpush1.bf16.msra.mxu0 %v664
  %757 = vmatprep.subr.bf16.mxu0 0
  %758 = vmatpush1.bf16.msra.mxu0 %v665
  %759 = vmatprep.subr.bf16.mxu0 0
  %760 = vmatpush1.bf16.msra.mxu0 %v666
  %761 = vmatprep.subr.bf16.mxu0 0
  %762 = vmatpush1.bf16.msra.mxu0 %v667
  %763 = vmatprep.subr.bf16.mxu0 0
  %764 = vmatpush1.bf16.msra.mxu0 %v668
  %765 = vmatprep.subr.bf16.mxu0 0
  %766 = vmatpush1.bf16.msra.mxu0 %v669
  %767 = vmatprep.subr.bf16.mxu0 0
  %768 = vmatpush1.bf16.msra.mxu0 %v670
  %769 = vmatprep.subr.bf16.mxu0 0
  %770 = vmatpush1.bf16.msra.mxu0 %v671
  %771 = vmatprep.subr.bf16.mxu0 0
  %772 = vmatpush1.bf16.msra.mxu0 %v672
  %773 = vmatprep.subr.bf16.mxu0 0
  %774 = vmatpush1.bf16.msra.mxu0 %v673
  %775 = vmatprep.subr.bf16.mxu0 0
  %776 = vmatpush1.bf16.msra.mxu0 %v674
  %777 = vmatprep.subr.bf16.mxu0 0
  %778 = vmatpush1.bf16.msra.mxu0 %v675
  %779 = vmatprep.subr.bf16.mxu0 0
  %780 = vmatpush1.bf16.msra.mxu0 %v676
  %781 = vmatprep.subr.bf16.mxu0 0
  %782 = vmatpush1.bf16.msra.mxu0 %v677
  %783 = vmatprep.mubr.bf16.mxu0 %v446
  %784 = vmatmul.mubr.bf16.gmra.mrb[0].mxu0 %v445
  %v785 = vpop.f32.mrb[0].mxu0
  %v786 = vadd.f32 %v745, %v785
  %v787 = vpop.f32.mrb[0].mxu0
  %v788 = vpop.f32.mrb[0].mxu0
  %v789 = vadd.f32 %v748, %v788
  %v790 = vpop.f32.mrb[0].mxu0
  %791 = vdwg.mxu0
  %v792 = vadd.f32 %v35, %v786
  %v793 = vadd.f32 %v36, %v789
  %v794 = vld [vmem:[%s7] sm:$0x1]
  %v795 = vld [vmem:[%s8] sm:$0x1]
  %796 = vadd.xlane.f32.xlu0 %v792
  %v797 = vpop.xlane.xlu0 %796
  %798 = vadd.xlane.f32.xlu0 %v793
  %v799 = vpop.xlane.xlu0 %798
  %v800 = vmul.f32 %v797, %v43
  %v801 = vmul.f32 %v799, %v43
  %v802 = vsub.f32 %v792, %v800
  %v803 = vsub.f32 %v793, %v801
  %v804 = vmul.f32 %v802, %v802
  %v805 = vmul.f32 %v803, %v803
  %806 = vadd.xlane.f32.xlu0 %v804
  %v807 = vpop.xlane.xlu0 %806
  %808 = vadd.xlane.f32.xlu0 %v805
  %v809 = vpop.xlane.xlu0 %808
  %v810 = vmul.f32 %v807, %v43
  %v811 = vmul.f32 %v809, %v43
  %v812 = vadd.f32 %v810, 1e-05
  %v813 = vadd.f32 %v811, 1e-05
  %v814 = vrsqrt.pop %v812
  %v815 = vrsqrt.pop %v813
  %v816 = vmul.f32 %v802, %v814
  %v817 = vmul.f32 %v803, %v815
  %v819 = vlaneseq
  %v820 = vshrl.u32 %v819, 7
  %v821 = vsub.s32 0, %v820
  %v822 = vrot.slane %v794, %v821
  %v824 = vmul.f32 %v816, %v822
  %v825 = vmul.f32 %v817, %v822
  %v827 = vlaneseq
  %v828 = vshrl.u32 %v827, 7
  %v829 = vsub.s32 0, %v828
  %v830 = vrot.slane %v795, %v829
  %v832 = vadd.f32 %v824, %v830
  %v833 = vadd.f32 %v825, %v830
  %834 = vst [vmem:[%s9] sm:$0xff] %v832
  %835 = vst [vmem:[%s9 + $0x8] sm:$0xff] %v833
  // Predicated region
  $region38: #{clip_text_forward.7} parent=0 // pred_check
    _
  $region39: #{clip_text_forward.7} parent=0 // pred_check_branch
    %837 = sbr.rel (0) target = $region41
  $region40: #{clip_text_forward.7} parent=0 // pred_region
    _
  $region41: #{clip_text_forward.7} parent=0 // pred_fallthru
    _
  // Predicated region
  $region42: #{clip_text_forward.7} parent=0 // pred_check
    _
  $region43: #{clip_text_forward.7} parent=0 // pred_check_branch
    %839 = sbr.rel (0) target = $region45
  $region44: #{clip_text_forward.7} parent=0 // pred_region
    _
  $region45: #{clip_text_forward.7} parent=0 // pred_fallthru
    _

// kernel: clip_text_forward.4
$region0: #{clip_text_forward.4}
  #allocation0 [shape = 'u32[]', space=smem, size = 0x4, offset = 0x4, fixed_abs, tag = 'smem constant byte address 0x4 - core index']
  #allocation1 [shape = 'u32[144,128]{1,0:T(1,128)}', space=vmem, size = 0x12000, scoped, tag = 'internal scratch']
  #allocation2 [shape = 'bf16[8,128]{1,0:T(8,128)(2,1)}', space=vmem, size = 0x800, scoped, tag = 'scratch operand']
  #allocation3 [shape = 'f32[8,128]{1,0:T(8,128)}', space=vmem, size = 0x1000, scoped, tag = 'scratch operand']
  %s0 = inlined_call_operand.vmem [shape: bf16[2,8,128], index: 0, kind: input, shape index: {}]
  %s1 = inlined_call_operand.vmem [shape: f32[1,128], index: 1, kind: input, shape index: {}]
  %s2 = inlined_call_operand.vmem [shape: f32[1,128], index: 2, kind: input, shape index: {}]
  %s3 = inlined_call_operand.vmem [shape: bf16[2,3,128,64], index: 3, kind: input, shape index: {}]
  %s4 = inlined_call_operand.vmem [shape: f32[2,3,1,64], index: 4, kind: input, shape index: {}]
  %s5 = inlined_call_operand.vmem [shape: bf16[128,128], index: 5, kind: input, shape index: {}]
  %s6 = inlined_call_operand.vmem [shape: f32[1,128], index: 6, kind: input, shape index: {}]
  %s7 = inlined_call_operand.vmem [shape: bf16[2,8,128], index: 7, kind: output, shape index: {}]
  %s8 = sld [smem:[#allocation0]]
  $region69: #{clip_text_forward.4} parent=0
    _
  %s10 = ssub.s32 1, %s8
  %s11 = scalar_select 0, %s10, %s8
  loop: start=0, step=1, limit=4
  $region2: #{clip_text_forward.4} parent=0 // loop_pre_header
    _
  $region3: #{clip_text_forward.4} parent=0 // loop_header
    %s13 = sphi 0, %s17
    %p14 = scmp.ge.s32.totalorder %s13, 4
    %s20 = sphi 0, %s32
    %s21 = sphi 0, %s28
    %s22 = sphi 0, %s20
    %s23 = sphi 0, %s21
    %s24 = sphi 0, %s22
    %s25 = sphi 0, %s23
    %s35 = sphi 0, %s37
    %s38 = sphi 0, %s35
    %s39 = sphi 0, %s38
    %s55 = sphi 0, %s39
    %s59 = sphi 0, %s59
    %s61 = sphi 0, %s59
    %s62 = sphi 0, %s61
    %s76 = sphi 0, %s62
    %s80 = sphi 0, %s80
    %s82 = sphi 0, %s80
    %s83 = sphi 0, %s82
    %s97 = sphi 0, %s83
    %s103 = sphi 0, %s105
    %s106 = sphi 0, %s103
    %s107 = sphi 0, %s106
    %s123 = sphi 0, %s107
    %s129 = sphi 0, %s131
    %s132 = sphi 0, %s129
    %s133 = sphi 0, %s132
    %s149 = sphi 0, %s133
    %s155 = sphi 0, %s157
    %s158 = sphi 0, %s155
    %s159 = sphi 0, %s158
    %s175 = sphi 0, %s159
    %s179 = sphi 0, %s179
    %s181 = sphi 0, %s179
    %s182 = sphi 0, %s181
    %s196 = sphi 0, %s182
    %s202 = sphi 0, %s204
    %s205 = sphi 0, %s202
    %s206 = sphi 0, %s205
    %s222 = sphi 0, %s206
  $region4: #{clip_text_forward.4} parent=0 // loop_header_branch
    %16 = sbr.rel (%p14) target = $region8
  $region5: #{clip_text_forward.4} parent=0 // loop_body
    %s18 = ssub.s32 %s13, 1
    %s19 = ssub.s32 %s13, 2
    %s26 = sadd.s32 1, %s21
    %p27 = scmp.ge.s32.totalorder %s26, 1
    %s28 = scalar_select %p27, 0, %s26
    %s29 = sadd.s32 1, %s20
    %s30 = scalar_select %p27, %s29, %s20
    %p31 = scmp.ge.s32.totalorder %s30, 2
    %s32 = scalar_select %p31, 0, %s30
    %s33 = ssub.s32 %s20, %s32
    %p34 = scmp.eq.s32.totalorder %s33, 0
    %s36 = sadd.s32 %s35, 1
    %s37 = scalar_select %p34, %s35, %s36
    %p40 = pneg %p34
    %p41 = scmp.eq.s32.totalorder %s13, 1
    %p42 = por %p40, %p41
    %p43 = scmp.ne.s32.totalorder %s35, %s38
    %p44 = scmp.eq.s32.totalorder %s13, 0
    %p45 = por %p43, %p44
    %p46 = scmp.ne.s32.totalorder %s35, %s38
    %p47 = scmp.eq.s32.totalorder %s18, 1
    %p48 = por %p46, %p47
    %p49 = scmp.ne.s32.totalorder %s38, %s39
    %p50 = scmp.eq.s32.totalorder %s18, 0
    %p51 = por %p49, %p50
    %p52 = scmp.ne.s32.totalorder %s38, %s39
    %p53 = scmp.eq.s32.totalorder %s19, 1
    %p54 = por %p52, %p53
    %p56 = scmp.ne.s32.totalorder %s39, %s55
    %p57 = scmp.eq.s32.totalorder %s19, 0
    %p58 = por %p56, %p57
    %s60 = sadd.s32 %s59, 1
    %p63 = scmp.eq.s32.totalorder %s13, 1
    %p64 = scmp.ne.s32.totalorder %s59, %s61
    %p65 = scmp.eq.s32.totalorder %s13, 0
    %p66 = por %p64, %p65
    %p67 = scmp.ne.s32.totalorder %s59, %s61
    %p68 = scmp.eq.s32.totalorder %s18, 1
    %p69 = por %p67, %p68
    %p70 = scmp.ne.s32.totalorder %s61, %s62
    %p71 = scmp.eq.s32.totalorder %s18, 0
    %p72 = por %p70, %p71
    %p73 = scmp.ne.s32.totalorder %s61, %s62
    %p74 = scmp.eq.s32.totalorder %s19, 1
    %p75 = por %p73, %p74
    %p77 = scmp.ne.s32.totalorder %s62, %s76
    %p78 = scmp.eq.s32.totalorder %s19, 0
    %p79 = por %p77, %p78
    %s81 = sadd.s32 %s80, 1
    %p84 = scmp.eq.s32.totalorder %s13, 1
    %p85 = scmp.ne.s32.totalorder %s80, %s82
    %p86 = scmp.eq.s32.totalorder %s13, 0
    %p87 = por %p85, %p86
    %p88 = scmp.ne.s32.totalorder %s80, %s82
    %p89 = scmp.eq.s32.totalorder %s18, 1
    %p90 = por %p88, %p89
    %p91 = scmp.ne.s32.totalorder %s82, %s83
    %p92 = scmp.eq.s32.totalorder %s18, 0
    %p93 = por %p91, %p92
    %p94 = scmp.ne.s32.totalorder %s82, %s83
    %p95 = scmp.eq.s32.totalorder %s19, 1
    %p96 = por %p94, %p95
    %p98 = scmp.ne.s32.totalorder %s83, %s97
    %p99 = scmp.eq.s32.totalorder %s19, 0
    %p100 = por %p98, %p99
    %s101 = ssub.s32 %s21, %s28
    %p102 = scmp.eq.s32.totalorder %s101, 0
    %s104 = sadd.s32 %s103, 1
    %s105 = scalar_select %p102, %s103, %s104
    %p108 = pneg %p102
    %p109 = scmp.eq.s32.totalorder %s13, 1
    %p110 = por %p108, %p109
    %p111 = scmp.ne.s32.totalorder %s103, %s106
    %p112 = scmp.eq.s32.totalorder %s13, 0
    %p113 = por %p111, %p112
    %p114 = scmp.ne.s32.totalorder %s103, %s106
    %p115 = scmp.eq.s32.totalorder %s18, 1
    %p116 = por %p114, %p115
    %p117 = scmp.ne.s32.totalorder %s106, %s107
    %p118 = scmp.eq.s32.totalorder %s18, 0
    %p119 = por %p117, %p118
    %p120 = scmp.ne.s32.totalorder %s106, %s107
    %p121 = scmp.eq.s32.totalorder %s19, 1
    %p122 = por %p120, %p121
    %p124 = scmp.ne.s32.totalorder %s107, %s123
    %p125 = scmp.eq.s32.totalorder %s19, 0
    %p126 = por %p124, %p125
    %s127 = ssub.s32 %s21, %s28
    %p128 = scmp.eq.s32.totalorder %s127, 0
    %s130 = sadd.s32 %s129, 1
    %s131 = scalar_select %p128, %s129, %s130
    %p134 = pneg %p128
    %p135 = scmp.eq.s32.totalorder %s13, 1
    %p136 = por %p134, %p135
    %p137 = scmp.ne.s32.totalorder %s129, %s132
    %p138 = scmp.eq.s32.totalorder %s13, 0
    %p139 = por %p137, %p138
    %p140 = scmp.ne.s32.totalorder %s129, %s132
    %p141 = scmp.eq.s32.totalorder %s18, 1
    %p142 = por %p140, %p141
    %p143 = scmp.ne.s32.totalorder %s132, %s133
    %p144 = scmp.eq.s32.totalorder %s18, 0
    %p145 = por %p143, %p144
    %p146 = scmp.ne.s32.totalorder %s132, %s133
    %p147 = scmp.eq.s32.totalorder %s19, 1
    %p148 = por %p146, %p147
    %p150 = scmp.ne.s32.totalorder %s133, %s149
    %p151 = scmp.eq.s32.totalorder %s19, 0
    %p152 = por %p150, %p151
    %s153 = ssub.s32 %s21, %s28
    %p154 = scmp.eq.s32.totalorder %s153, 0
    %s156 = sadd.s32 %s155, 1
    %s157 = scalar_select %p154, %s155, %s156
    %p160 = pneg %p154
    %p161 = scmp.eq.s32.totalorder %s13, 1
    %p162 = por %p160, %p161
    %p163 = scmp.ne.s32.totalorder %s155, %s158
    %p164 = scmp.eq.s32.totalorder %s13, 0
    %p165 = por %p163, %p164
    %p166 = scmp.ne.s32.totalorder %s155, %s158
    %p167 = scmp.eq.s32.totalorder %s18, 1
    %p168 = por %p166, %p167
    %p169 = scmp.ne.s32.totalorder %s158, %s159
    %p170 = scmp.eq.s32.totalorder %s18, 0
    %p171 = por %p169, %p170
    %p172 = scmp.ne.s32.totalorder %s158, %s159
    %p173 = scmp.eq.s32.totalorder %s19, 1
    %p174 = por %p172, %p173
    %p176 = scmp.ne.s32.totalorder %s159, %s175
    %p177 = scmp.eq.s32.totalorder %s19, 0
    %p178 = por %p176, %p177
    %s180 = sadd.s32 %s179, 1
    %p183 = scmp.eq.s32.totalorder %s13, 1
    %p184 = scmp.ne.s32.totalorder %s179, %s181
    %p185 = scmp.eq.s32.totalorder %s13, 0
    %p186 = por %p184, %p185
    %p187 = scmp.ne.s32.totalorder %s179, %s181
    %p188 = scmp.eq.s32.totalorder %s18, 1
    %p189 = por %p187, %p188
    %p190 = scmp.ne.s32.totalorder %s181, %s182
    %p191 = scmp.eq.s32.totalorder %s18, 0
    %p192 = por %p190, %p191
    %p193 = scmp.ne.s32.totalorder %s181, %s182
    %p194 = scmp.eq.s32.totalorder %s19, 1
    %p195 = por %p193, %p194
    %p197 = scmp.ne.s32.totalorder %s182, %s196
    %p198 = scmp.eq.s32.totalorder %s19, 0
    %p199 = por %p197, %p198
    %s200 = ssub.s32 %s20, %s32
    %p201 = scmp.eq.s32.totalorder %s200, 0
    %s203 = sadd.s32 %s202, 1
    %s204 = scalar_select %p201, %s202, %s203
    %p207 = pneg %p201
    %p208 = scmp.eq.s32.totalorder %s13, 1
    %p209 = por %p207, %p208
    %p210 = scmp.ne.s32.totalorder %s202, %s205
    %p211 = scmp.eq.s32.totalorder %s13, 0
    %p212 = por %p210, %p211
    %p213 = scmp.ne.s32.totalorder %s202, %s205
    %p214 = scmp.eq.s32.totalorder %s18, 1
    %p215 = por %p213, %p214
    %p216 = scmp.ne.s32.totalorder %s205, %s206
    %p217 = scmp.eq.s32.totalorder %s18, 0
    %p218 = por %p216, %p217
    %p219 = scmp.ne.s32.totalorder %s205, %s206
    %p220 = scmp.eq.s32.totalorder %s19, 1
    %p221 = por %p219, %p220
    %p223 = scmp.ne.s32.totalorder %s206, %s222
    %p224 = scmp.eq.s32.totalorder %s19, 0
    %p225 = por %p223, %p224
    %p226 = scmp.le.s32.totalorder 1, %s13
    %p227 = scmp.lt.s32.totalorder %s13, 3
    %p228 = pnand %p226, %p227
    %p229 = pneg %p228
    // Predicated region
    $region9: #{clip_text_forward.4} parent=5 // pred_check
      _
    $region10: #{clip_text_forward.4} parent=5 // pred_check_branch
      %231 = sbr.rel (%p228) target = $region12
    $region11: #{clip_text_forward.4} parent=5 // pred_region
      %s232 = ssub.s32 %s13, 1
      // Predicated region
      $region13: #{clip_text_forward.4} parent=11 // pred_check
        %p233 = pneg %p72
      $region14: #{clip_text_forward.4} parent=11 // pred_check_branch
        %235 = sbr.rel (%p233) target = $region16
      $region15: #{clip_text_forward.4} parent=11 // pred_region
        _
      $region16: #{clip_text_forward.4} parent=11 // pred_fallthru
        _
      // Predicated region
      $region17: #{clip_text_forward.4} parent=11 // pred_check
        %p236 = pneg %p93
      $region18: #{clip_text_forward.4} parent=11 // pred_check_branch
        %238 = sbr.rel (%p236) target = $region20
      $region19: #{clip_text_forward.4} parent=11 // pred_region
        _
      $region20: #{clip_text_forward.4} parent=11 // pred_fallthru
        _
      // Predicated region
      $region21: #{clip_text_forward.4} parent=11 // pred_check
        %p239 = pneg %p119
      $region22: #{clip_text_forward.4} parent=11 // pred_check_branch
        %241 = sbr.rel (%p239) target = $region24
      $region23: #{clip_text_forward.4} parent=11 // pred_region
        %s242 = smul.u32 2, %s23
        %p243 = scmp.lt.s32.totalorder %s242, 1
        %s244 = scalar_select %p243, %s242, 1
        %s245 = smul.addr %s244, 48
        %s246 = smul.addr %s245, 4
        %s247 = scalar_lea.vmem %s3, %s246
        %s248 = smul.u32 2, %s23
      $region24: #{clip_text_forward.4} parent=11 // pred_fallthru
        _
      // Predicated region
      $region25: #{clip_text_forward.4} parent=11 // pred_check
        %p249 = pneg %p145
      $region26: #{clip_text_forward.4} parent=11 // pred_check_branch
        %251 = sbr.rel (%p249) target = $region28
      $region27: #{clip_text_forward.4} parent=11 // pred_region
        %s252 = smul.u32 2, %s23
        %p253 = scmp.lt.s32.totalorder %s252, 1
        %s254 = scalar_select %p253, %s252, 1
        %s255 = smul.addr %s254, 3
        %s256 = scalar_lea.vmem %s4, %s255
        %s257 = smul.u32 2, %s23
      $region28: #{clip_text_forward.4} parent=11 // pred_fallthru
        _
      // Predicated region
      $region29: #{clip_text_forward.4} parent=11 // pred_check
        %p258 = pneg %p171
      $region30: #{clip_text_forward.4} parent=11 // pred_check_branch
        %260 = sbr.rel (%p258) target = $region32
      $region31: #{clip_text_forward.4} parent=11 // pred_region
        %s261 = smul.u32 16, %s23
        %p262 = scmp.lt.s32.totalorder %s261, 15
        %s263 = scalar_select %p262, %s261, 15
        %s264 = smul.addr %s263, 4
        %s265 = scalar_lea.vmem %s5, %s264
        %s266 = smul.u32 16, %s23
      $region32: #{clip_text_forward.4} parent=11 // pred_fallthru
        _
      // Predicated region
      $region33: #{clip_text_forward.4} parent=11 // pred_check
        %p267 = pneg %p192
      $region34: #{clip_text_forward.4} parent=11 // pred_check_branch
        %269 = sbr.rel (%p267) target = $region36
      $region35: #{clip_text_forward.4} parent=11 // pred_region
        _
      $region36: #{clip_text_forward.4} parent=11 // pred_fallthru
        _
    $region12: #{clip_text_forward.4} parent=5 // pred_fallthru
      _
    %p270 = scmp.lt.s32.totalorder %s13, 2
    // Predicated region
    $region37: #{clip_text_forward.4} parent=5 // pred_check
      %p271 = pneg %p270
    $region38: #{clip_text_forward.4} parent=5 // pred_check_branch
      %273 = sbr.rel (%p271) target = $region40
    $region39: #{clip_text_forward.4} parent=5 // pred_region
      // Predicated region
      $region41: #{clip_text_forward.4} parent=39 // pred_check
        %p274 = pneg %p45
      $region42: #{clip_text_forward.4} parent=39 // pred_check_branch
        %276 = sbr.rel (%p274) target = $region44
      $region43: #{clip_text_forward.4} parent=39 // pred_region
        %p277 = scmp.lt.s32.totalorder %s20, 1
        %s278 = scalar_select %p277, %s20, 1
        %s279 = smul.addr %s278, 4
        %s280 = scalar_lea.vmem %s0, %s279
      $region44: #{clip_text_forward.4} parent=39 // pred_fallthru
        _
    $region40: #{clip_text_forward.4} parent=5 // pred_fallthru
      _
    %p281 = scmp.le.s32.totalorder 1, %s13
    %p282 = scmp.lt.s32.totalorder %s13, 3
    %p283 = pnand %p281, %p282
    %p284 = pneg %p283
    // Predicated region
    $region45: #{clip_text_forward.4} parent=5 // pred_check
      _
    $region46: #{clip_text_forward.4} parent=5 // pred_check_branch
      %286 = sbr.rel (%p283) target = $region48
    $region47: #{clip_text_forward.4} parent=5 // pred_region
      %s287 = ssub.s32 %s13, 1
      %p288 = scmp.lt.s32.totalorder %s22, 1
      %s289 = scalar_select %p288, %s22, 1
      %s290 = smul.addr %s289, 4
      %s291 = scalar_lea.vmem %s0, %s290
      %p292 = pneg %p51
      %p293 = pneg %p48
      %p294 = pneg %p72
      %p295 = pneg %p69
      %p296 = pneg %p93
      %p297 = pneg %p90
      %s298 = smul.u32 2, %s23
      %p299 = scmp.lt.s32.totalorder %s298, 1
      %s300 = scalar_select %p299, %s298, 1
      %s301 = smul.addr %s300, 48
      %s302 = smul.addr %s301, 4
      %s303 = scalar_lea.vmem %s3, %s302
      %p304 = pneg %p119
      %p305 = pneg %p116
      %s306 = smul.u32 2, %s23
      %p307 = scmp.lt.s32.totalorder %s306, 1
      %s308 = scalar_select %p307, %s306, 1
      %s309 = smul.addr %s308, 3
      %s310 = scalar_lea.vmem %s4, %s309
      %p311 = pneg %p145
      %p312 = pneg %p142
      %s313 = smul.u32 16, %s23
      %p314 = scmp.lt.s32.totalorder %s313, 15
      %s315 = scalar_select %p314, %s313, 15
      %s316 = smul.addr %s315, 4
      %s317 = scalar_lea.vmem %s5, %s316
      %p318 = pneg %p171
      %p319 = pneg %p168
      %p320 = pneg %p192
      %p321 = pneg %p189
      %p322 = pneg %p218
      %p323 = pneg %p215
      %p324 = scmp.lt.s32.totalorder %s22, 1
      %s325 = scalar_select %p324, %s22, 1
      %s326 = smul.addr %s325, 4
      %s327 = scalar_lea.vmem %s7, %s326
      %p328 = scmp.lt.s32.totalorder %s22, 1
      %s329 = scalar_select %p328, %s22, 1
      %s330 = smul.addr %s329, 4
      %s331 = scalar_lea.vmem %s0, %s330
      %s332 = smul.u32 2, %s23
      %p333 = scmp.lt.s32.totalorder %s332, 1
      %s334 = scalar_select %p333, %s332, 1
      %s335 = smul.addr %s334, 48
      %s336 = smul.addr %s335, 4
      %s337 = scalar_lea.vmem %s3, %s336
      %s338 = smul.u32 2, %s23
      %s339 = smul.u32 2, %s23
      %p340 = scmp.lt.s32.totalorder %s339, 1
      %s341 = scalar_select %p340, %s339, 1
      %s342 = smul.addr %s341, 3
      %s343 = scalar_lea.vmem %s4, %s342
      %s344 = smul.u32 2, %s23
      %s345 = smul.u32 16, %s23
      %p346 = scmp.lt.s32.totalorder %s345, 15
      %s347 = scalar_select %p346, %s345, 15
      %s348 = smul.addr %s347, 4
      %s349 = scalar_lea.vmem %s5, %s348
      %s350 = smul.u32 16, %s23
      %p351 = scmp.lt.s32.totalorder %s22, 1
      %s352 = scalar_select %p351, %s22, 1
      %s353 = smul.addr %s352, 4
      %s354 = scalar_lea.vmem %s7, %s353
      %v356 = vld [vmem:[%s331] sm:$0xf]
      %v357 = vunpack.c.l.bf16 %v356
      %v358 = vld [vmem:[%s1] sm:$0x1]
      %v359 = vld [vmem:[%s2] sm:$0x1]
      %360 = vadd.xlane.f32.xlu0 %v357
      %v361 = vpop.xlane.xlu0 %360
      %v362 = vrcp.pop 128.0
      %v363 = vmul.f32 %v361, %v362
      %v364 = vsub.f32 %v357, %v363
      %v365 = vmul.f32 %v364, %v364
      %366 = vadd.xlane.f32.xlu0 %v365
      %v367 = vpop.xlane.xlu0 %366
      %v368 = vmul.f32 %v367, %v362
      %v369 = vadd.f32 %v368, 1e-05
      %v370 = vrsqrt.pop %v369
      %v371 = vmul.f32 %v364, %v370
      %v373 = vlaneseq
      %v374 = vshrl.u32 %v373, 7
      %v375 = vsub.s32 0, %v374
      %v376 = vrot.slane %v358, %v375
      %v378 = vmul.f32 %v371, %v376
      %v380 = vlaneseq
      %v381 = vshrl.u32 %v380, 7
      %v382 = vsub.s32 0, %v381
      %v383 = vrot.slane %v359, %v382
      %v385 = vadd.f32 %v378, %v383
      %v386 = vpack.c.bf16 %v385, %v385
      %v387 = vlaneseq
      %v388 = vshrl.u32 %v387, 7
      %v389 = vlaneseq
      %v390 = vand.u32 %v389, 127
      %vm391 = vcmp.le.s32.totalorder %v390, %v388
      %v392 = vsel %vm391, 0.0, -1e+09
      %v393 = vld [vmem:[%s337] sm:$0xf]
      %v394 = vld [vmem:[%s337 + $0x4] sm:$0xf]
      %v395 = vld [vmem:[%s337 + $0x8] sm:$0xf]
      %v396 = vld [vmem:[%s337 + $0xc] sm:$0xf]
      %v397 = vld [vmem:[%s337 + $0x10] sm:$0xf]
      %v398 = vld [vmem:[%s337 + $0x14] sm:$0xf]
      %v399 = vld [vmem:[%s337 + $0x18] sm:$0xf]
      %v400 = vld [vmem:[%s337 + $0x1c] sm:$0xf]
      %v401 = vld [vmem:[%s337 + $0x20] sm:$0xf]
      %v402 = vld [vmem:[%s337 + $0x24] sm:$0xf]
      %v403 = vld [vmem:[%s337 + $0x28] sm:$0xf]
      %v404 = vld [vmem:[%s337 + $0x2c] sm:$0xf]
      %v405 = vld [vmem:[%s337 + $0x30] sm:$0xf]
      %v406 = vld [vmem:[%s337 + $0x34] sm:$0xf]
      %v407 = vld [vmem:[%s337 + $0x38] sm:$0xf]
      %v408 = vld [vmem:[%s337 + $0x3c] sm:$0xf]
      %v409 = vld [vmem:[%s343] sm:$0x1]
      %v411 = vlaneseq
      %v412 = vshrl.u32 %v411, 7
      %v413 = vsub.s32 0, %v412
      %v414 = vrot.slane %v409, %v413
      %v432 = vunpack.c.l.b16 %v393
      %v433 = vunpack.c.l.b16 %v394
      %v434 = vunpack.c.l.b16 %v395
      %v435 = vunpack.c.l.b16 %v396
      %v436 = vunpack.c.l.b16 %v397
      %v437 = vunpack.c.l.b16 %v398
      %v438 = vunpack.c.l.b16 %v399
      %v439 = vunpack.c.l.b16 %v400
      %v440 = vunpack.c.l.b16 %v401
      %v441 = vunpack.c.l.b16 %v402
      %v442 = vunpack.c.l.b16 %v403
      %v443 = vunpack.c.l.b16 %v404
      %v444 = vunpack.c.l.b16 %v405
      %v445 = vunpack.c.l.b16 %v406
      %v446 = vunpack.c.l.b16 %v407
      %v447 = vunpack.c.l.b16 %v408
      %v448 = vpack.c.b16 %v433, %v432
      %v449 = vpack.c.b16 %v435, %v434
      %v450 = vpack.c.b16 %v437, %v436
      %v451 = vpack.c.b16 %v439, %v438
      %v452 = vpack.c.b16 %v441, %v440
      %v453 = vpack.c.b16 %v443, %v442
      %v454 = vpack.c.b16 %v445, %v444
      %v455 = vpack.c.b16 %v447, %v446
      %464 = vmatprep.subr.bf16.mxu0 0
      %465 = vmatpush1.bf16.msra.mxu0 %v448
      %466 = vmatprep.subr.bf16.mxu0 0
      %467 = vmatpush1.bf16.msra.mxu0 %v449
      %468 = vmatprep.subr.bf16.mxu0 0
      %469 = vmatpush1.bf16.msra.mxu0 %v450
      %470 = vmatprep.subr.bf16.mxu0 0
      %471 = vmatpush1.bf16.msra.mxu0 %v451
      %472 = vmatprep.subr.bf16.mxu0 0
      %473 = vmatpush1.bf16.msra.mxu0 %v452
      %474 = vmatprep.subr.bf16.mxu0 0
      %475 = vmatpush1.bf16.msra.mxu0 %v453
      %476 = vmatprep.subr.bf16.mxu0 0
      %477 = vmatpush1.bf16.msra.mxu0 %v454
      %478 = vmatprep.subr.bf16.mxu0 0
      %479 = vmatpush1.bf16.msra.mxu0 %v455
      %480 = vmatprep.subr.bf16.mxu0 0
      %481 = vmatpush1.bf16.msra.mxu0 0
      %482 = vmatprep.subr.bf16.mxu0 0
      %483 = vmatpush1.bf16.msra.mxu0 0
      %484 = vmatprep.subr.bf16.mxu0 0
      %485 = vmatpush1.bf16.msra.mxu0 0
      %486 = vmatprep.subr.bf16.mxu0 0
      %487 = vmatpush1.bf16.msra.mxu0 0
      %488 = vmatprep.subr.bf16.mxu0 0
      %489 = vmatpush1.bf16.msra.mxu0 0
      %490 = vmatprep.subr.bf16.mxu0 0
      %491 = vmatpush1.bf16.msra.mxu0 0
      %492 = vmatprep.subr.bf16.mxu0 0
      %493 = vmatpush1.bf16.msra.mxu0 0
      %494 = vmatprep.subr.bf16.mxu0 0
      %495 = vmatpush1.bf16.msra.mxu0 0
      %496 = vmatprep.mubr.bf16.mxu0 0
      %497 = vmatmul.mubr.bf16.gmra.mrb[0].mxu0 %v386
      %v498 = vpop.f32.mrb[0].mxu0
      %v499 = vadd.f32 %v414, %v498
      %v500 = vpop.f32.mrb[0].mxu0
      %v501 = vpop.f32.mrb[0].mxu0
      %v502 = vpop.f32.mrb[0].mxu0
      %503 = vdwg.mxu0
      %s504 = scalar_lea.vmem %s337, 64
      %v505 = vld [vmem:[%s504] sm:$0xf]
      %v506 = vld [vmem:[%s504 + $0x4] sm:$0xf]
      %v507 = vld [vmem:[%s504 + $0x8] sm:$0xf]
      %v508 = vld [vmem:[%s504 + $0xc] sm:$0xf]
      %v509 = vld [vmem:[%s504 + $0x10] sm:$0xf]
      %v510 = vld [vmem:[%s504 + $0x14] sm:$0xf]
      %v511 = vld [vmem:[%s504 + $0x18] sm:$0xf]
      %v512 = vld [vmem:[%s504 + $0x1c] sm:$0xf]
      %v513 = vld [vmem:[%s504 + $0x20] sm:$0xf]
      %v514 = vld [vmem:[%s504 + $0x24] sm:$0xf]
      %v515 = vld [vmem:[%s504 + $0x28] sm:$0xf]
      %v516 = vld [vmem:[%s504 + $0x2c] sm:$0xf]
      %v517 = vld [vmem:[%s504 + $0x30] sm:$0xf]
      %v518 = vld [vmem:[%s504 + $0x34] sm:$0xf]
      %v519 = vld [vmem:[%s504 + $0x38] sm:$0xf]
      %v520 = vld [vmem:[%s504 + $0x3c] sm:$0xf]
      %s521 = scalar_lea.vmem %s343, 1
      %v522 = vld [vmem:[%s521] sm:$0x1]
      %v524 = vlaneseq
      %v525 = vshrl.u32 %v524, 7
      %v526 = vsub.s32 0, %v525
      %v527 = vrot.slane %v522, %v526
      %v545 = vunpack.c.l.b16 %v505
      %v546 = vunpack.c.l.b16 %v506
      %v547 = vunpack.c.l.b16 %v507
      %v548 = vunpack.c.l.b16 %v508
      %v549 = vunpack.c.l.b16 %v509
      %v550 = vunpack.c.l.b16 %v510
      %v551 = vunpack.c.l.b16 %v511
      %v552 = vunpack.c.l.b16 %v512
      %v553 = vunpack.c.l.b16 %v513
      %v554 = vunpack.c.l.b16 %v514
      %v555 = vunpack.c.l.b16 %v515
      %v556 = vunpack.c.l.b16 %v516
      %v557 = vunpack.c.l.b16 %v517
      %v558 = vunpack.c.l.b16 %v518
      %v559 = vunpack.c.l.b16 %v519
      %v560 = vunpack.c.l.b16 %v520
      %v561 = vpack.c.b16 %v546, %v545
      %v562 = vpack.c.b16 %v548, %v547
      %v563 = vpack.c.b16 %v550, %v549
      %v564 = vpack.c.b16 %v552, %v551
      %v565 = vpack.c.b16 %v554, %v553
      %v566 = vpack.c.b16 %v556, %v555
      %v567 = vpack.c.b16 %v558, %v557
      %v568 = vpack.c.b16 %v560, %v559
      %577 = vmatprep.subr.bf16.mxu0 0
      %578 = vmatpush1.bf16.msra.mxu0 %v561
      %579 = vmatprep.subr.bf16.mxu0 0
      %580 = vmatpush1.bf16.msra.mxu0 %v562
      %581 = vmatprep.subr.bf16.mxu0 0
      %582 = vmatpush1.bf16.msra.mxu0 %v563
      %583 = vmatprep.subr.bf16.mxu0 0
      %584 = vmatpush1.bf16.msra.mxu0 %v564
      %585 = vmatprep.subr.bf16.mxu0 0
      %586 = vmatpush1.bf16.msra.mxu0 %v565
      %587 = vmatprep.subr.bf16.mxu0 0
      %588 = vmatpush1.bf16.msra.mxu0 %v566
      %589 = vmatprep.subr.bf16.mxu0 0
      %590 = vmatpush1.bf16.msra.mxu0 %v567
      %591 = vmatprep.subr.bf16.mxu0 0
      %592 = vmatpush1.bf16.msra.mxu0 %v568
      %593 = vmatprep.subr.bf16.mxu0 0
      %594 = vmatpush1.bf16.msra.mxu0 0
      %595 = vmatprep.subr.bf16.mxu0 0
      %596 = vmatpush1.bf16.msra.mxu0 0
      %597 = vmatprep.subr.bf16.mxu0 0
      %598 = vmatpush1.bf16.msra.mxu0 0
      %599 = vmatprep.subr.bf16.mxu0 0
      %600 = vmatpush1.bf16.msra.mxu0 0
      %601 = vmatprep.subr.bf16.mxu0 0
      %602 = vmatpush1.bf16.msra.mxu0 0
      %603 = vmatprep.subr.bf16.mxu0 0
      %604 = vmatpush1.bf16.msra.mxu0 0
      %605 = vmatprep.subr.bf16.mxu0 0
      %606 = vmatpush1.bf16.msra.mxu0 0
      %607 = vmatprep.subr.bf16.mxu0 0
      %608 = vmatpush1.bf16.msra.mxu0 0
      %609 = vmatprep.mubr.bf16.mxu0 0
      %610 = vmatmul.mubr.bf16.gmra.mrb[0].mxu0 %v386
      %v611 = vpop.f32.mrb[0].mxu0
      %v612 = vadd.f32 %v527, %v611
      %v613 = vpop.f32.mrb[0].mxu0
      %v614 = vpop.f32.mrb[0].mxu0
      %v615 = vpop.f32.mrb[0].mxu0
      %616 = vdwg.mxu0
      %s617 = scalar_lea.vmem %s337, 128
      %v618 = vld [vmem:[%s617] sm:$0xf]
      %v619 = vld [vmem:[%s617 + $0x4] sm:$0xf]
      %v620 = vld [vmem:[%s617 + $0x8] sm:$0xf]
      %v621 = vld [vmem:[%s617 + $0xc] sm:$0xf]
      %v622 = vld [vmem:[%s617 + $0x10] sm:$0xf]
      %v623 = vld [vmem:[%s617 + $0x14] sm:$0xf]
      %v624 = vld [vmem:[%s617 + $0x18] sm:$0xf]
      %v625 = vld [vmem:[%s617 + $0x1c] sm:$0xf]
      %v626 = vld [vmem:[%s617 + $0x20] sm:$0xf]
      %v627 = vld [vmem:[%s617 + $0x24] sm:$0xf]
      %v628 = vld [vmem:[%s617 + $0x28] sm:$0xf]
      %v629 = vld [vmem:[%s617 + $0x2c] sm:$0xf]
      %v630 = vld [vmem:[%s617 + $0x30] sm:$0xf]
      %v631 = vld [vmem:[%s617 + $0x34] sm:$0xf]
      %v632 = vld [vmem:[%s617 + $0x38] sm:$0xf]
      %v633 = vld [vmem:[%s617 + $0x3c] sm:$0xf]
      %s634 = scalar_lea.vmem %s343, 2
      %v635 = vld [vmem:[%s634] sm:$0x1]
      %v637 = vlaneseq
      %v638 = vshrl.u32 %v637, 7
      %v639 = vsub.s32 0, %v638
      %v640 = vrot.slane %v635, %v639
      %v658 = vunpack.c.l.b16 %v618
      %v659 = vunpack.c.l.b16 %v619
      %v660 = vunpack.c.l.b16 %v620
      %v661 = vunpack.c.l.b16 %v621
      %v662 = vunpack.c.l.b16 %v622
      %v663 = vunpack.c.l.b16 %v623
      %v664 = vunpack.c.l.b16 %v624
      %v665 = vunpack.c.l.b16 %v625
      %v666 = vunpack.c.l.b16 %v626
      %v667 = vunpack.c.l.b16 %v627
      %v668 = vunpack.c.l.b16 %v628
      %v669 = vunpack.c.l.b16 %v629
      %v670 = vunpack.c.l.b16 %v630
      %v671 = vunpack.c.l.b16 %v631
      %v672 = vunpack.c.l.b16 %v632
      %v673 = vunpack.c.l.b16 %v633
      %v674 = vpack.c.b16 %v659, %v658
      %v675 = vpack.c.b16 %v661, %v660
      %v676 = vpack.c.b16 %v663, %v662
      %v677 = vpack.c.b16 %v665, %v664
      %v678 = vpack.c.b16 %v667, %v666
      %v679 = vpack.c.b16 %v669, %v668
      %v680 = vpack.c.b16 %v671, %v670
      %v681 = vpack.c.b16 %v673, %v672
      %690 = vmatprep.subr.bf16.mxu0 0
      %691 = vmatpush1.bf16.msra.mxu0 %v674
      %692 = vmatprep.subr.bf16.mxu0 0
      %693 = vmatpush1.bf16.msra.mxu0 %v675
      %694 = vmatprep.subr.bf16.mxu0 0
      %695 = vmatpush1.bf16.msra.mxu0 %v676
      %696 = vmatprep.subr.bf16.mxu0 0
      %697 = vmatpush1.bf16.msra.mxu0 %v677
      %698 = vmatprep.subr.bf16.mxu0 0
      %699 = vmatpush1.bf16.msra.mxu0 %v678
      %700 = vmatprep.subr.bf16.mxu0 0
      %701 = vmatpush1.bf16.msra.mxu0 %v679
      %702 = vmatprep.subr.bf16.mxu0 0
      %703 = vmatpush1.bf16.msra.mxu0 %v680
      %704 = vmatprep.subr.bf16.mxu0 0
      %705 = vmatpush1.bf16.msra.mxu0 %v681
      %706 = vmatprep.subr.bf16.mxu0 0
      %707 = vmatpush1.bf16.msra.mxu0 0
      %708 = vmatprep.subr.bf16.mxu0 0
      %709 = vmatpush1.bf16.msra.mxu0 0
      %710 = vmatprep.subr.bf16.mxu0 0
      %711 = vmatpush1.bf16.msra.mxu0 0
      %712 = vmatprep.subr.bf16.mxu0 0
      %713 = vmatpush1.bf16.msra.mxu0 0
      %714 = vmatprep.subr.bf16.mxu0 0
      %715 = vmatpush1.bf16.msra.mxu0 0
      %716 = vmatprep.subr.bf16.mxu0 0
      %717 = vmatpush1.bf16.msra.mxu0 0
      %718 = vmatprep.subr.bf16.mxu0 0
      %719 = vmatpush1.bf16.msra.mxu0 0
      %720 = vmatprep.subr.bf16.mxu0 0
      %721 = vmatpush1.bf16.msra.mxu0 0
      %722 = vmatprep.mubr.bf16.mxu0 0
      %723 = vmatmul.mubr.bf16.gmra.mrb[0].mxu0 %v386
      %v724 = vpop.f32.mrb[0].mxu0
      %v725 = vadd.f32 %v640, %v724
      %v726 = vpop.f32.mrb[0].mxu0
      %v727 = vpop.f32.mrb[0].mxu0
      %v728 = vpop.f32.mrb[0].mxu0
      %729 = vdwg.mxu0
      %v730 = vpack.c.bf16 %v499, %v499
      %v731 = vpack.c.bf16 %v612, %v612
      %vm732 = vcmask 523264
      %v734 = vsel %vm732, %v730, 0
      %v737 = vsel %vm732, %v731, 0
      %739 = vmatprep.subr.bf16.mxu0 0
      %740 = vmatpush1.bf16.xpose.msra.mxu0 %v737
      %741 = vmatprep.subr.bf16.mxu0 0
      %742 = vmatpush1.bf16.xpose.msra.mxu0 0
      %743 = vmatprep.subr.bf16.mxu0 0
      %744 = vmatpush1.bf16.xpose.msra.mxu0 0
      %745 = vmatprep.subr.bf16.mxu0 0
      %746 = vmatpush1.bf16.xpose.msra.mxu0 0
      %747 = vmatprep.subr.bf16.mxu0 0
      %748 = vmatpush1.bf16.xpose.msra.mxu0 0
      %749 = vmatprep.subr.bf16.mxu0 0
      %750 = vmatpush1.bf16.xpose.msra.mxu0 0
      %751 = vmatprep.subr.bf16.mxu0 0
      %752 = vmatpush1.bf16.xpose.msra.mxu0 0
      %753 = vmatprep.subr.bf16.mxu0 0
      %754 = vmatpush1.bf16.xpose.msra.mxu0 0
      %755 = vmatprep.subr.bf16.mxu0 0
      %756 = vmatpush1.bf16.xpose.msra.mxu0 0
      %757 = vmatprep.subr.bf16.mxu0 0
      %758 = vmatpush1.bf16.xpose.msra.mxu0 0
      %759 = vmatprep.subr.bf16.mxu0 0
      %760 = vmatpush1.bf16.xpose.msra.mxu0 0
      %761 = vmatprep.subr.bf16.mxu0 0
      %762 = vmatpush1.bf16.xpose.msra.mxu0 0
      %763 = vmatprep.subr.bf16.mxu0 0
      %764 = vmatpush1.bf16.xpose.msra.mxu0 0
      %765 = vmatprep.subr.bf16.mxu0 0
      %766 = vmatpush1.bf16.xpose.msra.mxu0 0
      %767 = vmatprep.subr.bf16.mxu0 0
      %768 = vmatpush1.bf16.xpose.msra.mxu0 0
      %769 = vmatprep.subr.bf16.mxu0 0
      %770 = vmatpush1.bf16.xpose.msra.mxu0 0
      %771 = vmatprep.mubr.bf16.mxu0 0
      %772 = vmatmul.mubr.bf16.gmra.mrb[0].mxu0 %v734
      %v773 = vpop.f32.mrb[0].mxu0
      %v774 = vadd.f32 0.0, %v773
      %v775 = vpop.f32.mrb[0].mxu0
      %v776 = vpop.f32.mrb[0].mxu0
      %v777 = vpop.f32.mrb[0].mxu0
      %778 = vdwg.mxu0
      %v779 = vmul.f32 %v774, 0.125
      %v780 = vadd.f32 %v779, %v392
      %vm781 = vcmask 64512
      %v782 = vsel %vm781, %v780, -inf
      %783 = vmax.xlane.f32.xlu0 %v782
      %v784 = vpop.xlane.xlu0 %783
      %v785 = vsub.f32 %v780, %v784
      %v786 = vmul.f32 %v785, 1.442695
      %v787 = vpow.pop %v786
      %v788 = vsel %vm781, %v787, 0.0
      %789 = vadd.xlane.f32.xlu0 %v788
      %v790 = vpop.xlane.xlu0 %789
      %v791 = vrcp.pop %v790
      %v792 = vmul.f32 %v787, %v791
      %v793 = vpack.c.bf16 %v792, %v792
      %v794 = vpack.c.bf16 %v725, %v725
      %v796 = vsel %vm781, %v793, 0
      %vm798 = vcmask 1043456
      %v800 = vsel %vm798, %v794, 0
      %802 = vmatprep.subr.bf16.mxu0 0
      %803 = vmatpush1.bf16.msra.mxu0 %v800
      %804 = vmatprep.subr.bf16.mxu0 0
      %805 = vmatpush1.bf16.msra.mxu0 0
      %806 = vmatprep.subr.bf16.mxu0 0
      %807 = vmatpush1.bf16.msra.mxu0 0
      %808 = vmatprep.subr.bf16.mxu0 0
      %809 = vmatpush1.bf16.msra.mxu0 0
      %810 = vmatprep.subr.bf16.mxu0 0
      %811 = vmatpush1.bf16.msra.mxu0 0
      %812 = vmatprep.subr.bf16.mxu0 0
      %813 = vmatpush1.bf16.msra.mxu0 0
      %814 = vmatprep.subr.bf16.mxu0 0
      %815 = vmatpush1.bf16.msra.mxu0 0
      %816 = vmatprep.subr.bf16.mxu0 0
      %817 = vmatpush1.bf16.msra.mxu0 0
      %818 = vmatprep.subr.bf16.mxu0 0
      %819 = vmatpush1.bf16.msra.mxu0 0
      %820 = vmatprep.subr.bf16.mxu0 0
      %821 = vmatpush1.bf16.msra.mxu0 0
      %822 = vmatprep.subr.bf16.mxu0 0
      %823 = vmatpush1.bf16.msra.mxu0 0
      %824 = vmatprep.subr.bf16.mxu0 0
      %825 = vmatpush1.bf16.msra.mxu0 0
      %826 = vmatprep.subr.bf16.mxu0 0
      %827 = vmatpush1.bf16.msra.mxu0 0
      %828 = vmatprep.subr.bf16.mxu0 0
      %829 = vmatpush1.bf16.msra.mxu0 0
      %830 = vmatprep.subr.bf16.mxu0 0
      %831 = vmatpush1.bf16.msra.mxu0 0
      %832 = vmatprep.subr.bf16.mxu0 0
      %833 = vmatpush1.bf16.msra.mxu0 0
      %834 = vmatprep.mubr.bf16.mxu0 0
      %835 = vmatmul.mubr.bf16.gmra.mrb[0].mxu0 %v796
      %v836 = vpop.f32.mrb[0].mxu0
      %v837 = vadd.f32 0.0, %v836
      %v838 = vpop.f32.mrb[0].mxu0
      %v839 = vpop.f32.mrb[0].mxu0
      %v840 = vpop.f32.mrb[0].mxu0
      %841 = vdwg.mxu0
      %v842 = vpack.c.bf16 %v837, %v837
      %vm843 = vcmask 519168
      %844 = vst.msk [vmem:[#allocation2] sm:$0xf] %vm843, %v842
      %s845 = scalar_lea.vmem %s337, 192
      %v846 = vld [vmem:[%s845] sm:$0xf]
      %v847 = vld [vmem:[%s845 + $0x4] sm:$0xf]
      %v848 = vld [vmem:[%s845 + $0x8] sm:$0xf]
      %v849 = vld [vmem:[%s845 + $0xc] sm:$0xf]
      %v850 = vld [vmem:[%s845 + $0x10] sm:$0xf]
      %v851 = vld [vmem:[%s845 + $0x14] sm:$0xf]
      %v852 = vld [vmem:[%s845 + $0x18] sm:$0xf]
      %v853 = vld [vmem:[%s845 + $0x1c] sm:$0xf]
      %v854 = vld [vmem:[%s845 + $0x20] sm:$0xf]
      %v855 = vld [vmem:[%s845 + $0x24] sm:$0xf]
      %v856 = vld [vmem:[%s845 + $0x28] sm:$0xf]
      %v857 = vld [vmem:[%s845 + $0x2c] sm:$0xf]
      %v858 = vld [vmem:[%s845 + $0x30] sm:$0xf]
      %v859 = vld [vmem:[%s845 + $0x34] sm:$0xf]
      %v860 = vld [vmem:[%s845 + $0x38] sm:$0xf]
      %v861 = vld [vmem:[%s845 + $0x3c] sm:$0xf]
      %s862 = scalar_lea.vmem %s343, 3
      %v863 = vld [vmem:[%s862] sm:$0x1]
      %v865 = vlaneseq
      %v866 = vshrl.u32 %v865, 7
      %v867 = vsub.s32 0, %v866
      %v868 = vrot.slane %v863, %v867
      %v886 = vunpack.c.l.b16 %v846
      %v887 = vunpack.c.l.b16 %v847
      %v888 = vunpack.c.l.b16 %v848
      %v889 = vunpack.c.l.b16 %v849
      %v890 = vunpack.c.l.b16 %v850
      %v891 = vunpack.c.l.b16 %v851
      %v892 = vunpack.c.l.b16 %v852
      %v893 = vunpack.c.l.b16 %v853
      %v894 = vunpack.c.l.b16 %v854
      %v895 = vunpack.c.l.b16 %v855
      %v896 = vunpack.c.l.b16 %v856
      %v897 = vunpack.c.l.b16 %v857
      %v898 = vunpack.c.l.b16 %v858
      %v899 = vunpack.c.l.b16 %v859
      %v900 = vunpack.c.l.b16 %v860
      %v901 = vunpack.c.l.b16 %v861
      %v902 = vpack.c.b16 %v887, %v886
      %v903 = vpack.c.b16 %v889, %v888
      %v904 = vpack.c.b16 %v891, %v890
      %v905 = vpack.c.b16 %v893, %v892
      %v906 = vpack.c.b16 %v895, %v894
      %v907 = vpack.c.b16 %v897, %v896
      %v908 = vpack.c.b16 %v899, %v898
      %v909 = vpack.c.b16 %v901, %v900
      %918 = vmatprep.subr.bf16.mxu0 0
      %919 = vmatpush1.bf16.msra.mxu0 %v902
      %920 = vmatprep.subr.bf16.mxu0 0
      %921 = vmatpush1.bf16.msra.mxu0 %v903
      %922 = vmatprep.subr.bf16.mxu0 0
      %923 = vmatpush1.bf16.msra.mxu0 %v904
      %924 = vmatprep.subr.bf16.mxu0 0
      %925 = vmatpush1.bf16.msra.mxu0 %v905
      %926 = vmatprep.subr.bf16.mxu0 0
      %927 = vmatpush1.bf16.msra.mxu0 %v906
      %928 = vmatprep.subr.bf16.mxu0 0
      %929 = vmatpush1.bf16.msra.mxu0 %v907
      %930 = vmatprep.subr.bf16.mxu0 0
      %931 = vmatpush1.bf16.msra.mxu0 %v908
      %932 = vmatprep.subr.bf16.mxu0 0
      %933 = vmatpush1.bf16.msra.mxu0 %v909
      %934 = vmatprep.subr.bf16.mxu0 0
      %935 = vmatpush1.bf16.msra.mxu0 0
      %936 = vmatprep.subr.bf16.mxu0 0
      %937 = vmatpush1.bf16.msra.mxu0 0
      %938 = vmatprep.subr.bf16.mxu0 0
      %939 = vmatpush1.bf16.msra.mxu0 0
      %940 = vmatprep.subr.bf16.mxu0 0
      %941 = vmatpush1.bf16.msra.mxu0 0
      %942 = vmatprep.subr.bf16.mxu0 0
      %943 = vmatpush1.bf16.msra.mxu0 0
      %944 = vmatprep.subr.bf16.mxu0 0
      %945 = vmatpush1.bf16.msra.mxu0 0
      %946 = vmatprep.subr.bf16.mxu0 0
      %947 = vmatpush1.bf16.msra.mxu0 0
      %948 = vmatprep.subr.bf16.mxu0 0
      %949 = vmatpush1.bf16.msra.mxu0 0
      %950 = vmatprep.mubr.bf16.mxu0 0
      %951 = vmatmul.mubr.bf16.gmra.mrb[0].mxu0 %v386
      %v952 = vpop.f32.mrb[0].mxu0
      %v953 = vadd.f32 %v868, %v952
      %v954 = vpop.f32.mrb[0].mxu0
      %v955 = vpop.f32.mrb[0].mxu0
      %v956 = vpop.f32.mrb[0].mxu0
      %957 = vdwg.mxu0
      %s958 = scalar_lea.vmem %s337, 256
      %v959 = vld [vmem:[%s958] sm:$0xf]
      %v960 = vld [vmem:[%s958 + $0x4] sm:$0xf]
      %v961 = vld [vmem:[%s958 + $0x8] sm:$0xf]
      %v962 = vld [vmem:[%s958 + $0xc] sm:$0xf]
      %v963 = vld [vmem:[%s958 + $0x10] sm:$0xf]
      %v964 = vld [vmem:[%s958 + $0x14] sm:$0xf]
      %v965 = vld [vmem:[%s958 + $0x18] sm:$0xf]
      %v966 = vld [vmem:[%s958 + $0x1c] sm:$0xf]
      %v967 = vld [vmem:[%s958 + $0x20] sm:$0xf]
      %v968 = vld [vmem:[%s958 + $0x24] sm:$0xf]
      %v969 = vld [vmem:[%s958 + $0x28] sm:$0xf]
      %v970 = vld [vmem:[%s958 + $0x2c] sm:$0xf]
      %v971 = vld [vmem:[%s958 + $0x30] sm:$0xf]
      %v972 = vld [vmem:[%s958 + $0x34] sm:$0xf]
      %v973 = vld [vmem:[%s958 + $0x38] sm:$0xf]
      %v974 = vld [vmem:[%s958 + $0x3c] sm:$0xf]
      %s975 = scalar_lea.vmem %s343, 4
      %v976 = vld [vmem:[%s975] sm:$0x1]
      %v978 = vlaneseq
      %v979 = vshrl.u32 %v978, 7
      %v980 = vsub.s32 0, %v979
      %v981 = vrot.slane %v976, %v980
      %v999 = vunpack.c.l.b16 %v959
      %v1000 = vunpack.c.l.b16 %v960
      %v1001 = vunpack.c.l.b16 %v961
      %v1002 = vunpack.c.l.b16 %v962
      %v1003 = vunpack.c.l.b16 %v963
      %v1004 = vunpack.c.l.b16 %v964
      %v1005 = vunpack.c.l.b16 %v965
      %v1006 = vunpack.c.l.b16 %v966
      %v1007 = vunpack.c.l.b16 %v967
      %v1008 = vunpack.c.l.b16 %v968
      %v1009 = vunpack.c.l.b16 %v969
      %v1010 = vunpack.c.l.b16 %v970
      %v1011 = vunpack.c.l.b16 %v971
      %v1012 = vunpack.c.l.b16 %v972
      %v1013 = vunpack.c.l.b16 %v973
      %v1014 = vunpack.c.l.b16 %v974
      %v1015 = vpack.c.b16 %v1000, %v999
      %v1016 = vpack.c.b16 %v1002, %v1001
      %v1017 = vpack.c.b16 %v1004, %v1003
      %v1018 = vpack.c.b16 %v1006, %v1005
      %v1019 = vpack.c.b16 %v1008, %v1007
      %v1020 = vpack.c.b16 %v1010, %v1009
      %v1021 = vpack.c.b16 %v1012, %v1011
      %v1022 = vpack.c.b16 %v1014, %v1013
      %1031 = vmatprep.subr.bf16.mxu0 0
      %1032 = vmatpush1.bf16.msra.mxu0 %v1015
      %1033 = vmatprep.subr.bf16.mxu0 0
      %1034 = vmatpush1.bf16.msra.mxu0 %v1016
      %1035 = vmatprep.subr.bf16.mxu0 0
      %1036 = vmatpush1.bf16.msra.mxu0 %v1017
      %1037 = vmatprep.subr.bf16.mxu0 0
      %1038 = vmatpush1.bf16.msra.mxu0 %v1018
      %1039 = vmatprep.subr.bf16.mxu0 0
      %1040 = vmatpush1.bf16.msra.mxu0 %v1019
      %1041 = vmatprep.subr.bf16.mxu0 0
      %1042 = vmatpush1.bf16.msra.mxu0 %v1020
      %1043 = vmatprep.subr.bf16.mxu0 0
      %1044 = vmatpush1.bf16.msra.mxu0 %v1021
      %1045 = vmatprep.subr.bf16.mxu0 0
      %1046 = vmatpush1.bf16.msra.mxu0 %v1022
      %1047 = vmatprep.subr.bf16.mxu0 0
      %1048 = vmatpush1.bf16.msra.mxu0 0
      %1049 = vmatprep.subr.bf16.mxu0 0
      %1050 = vmatpush1.bf16.msra.mxu0 0
      %1051 = vmatprep.subr.bf16.mxu0 0
      %1052 = vmatpush1.bf16.msra.mxu0 0
      %1053 = vmatprep.subr.bf16.mxu0 0
      %1054 = vmatpush1.bf16.msra.mxu0 0
      %1055 = vmatprep.subr.bf16.mxu0 0
      %1056 = vmatpush1.bf16.msra.mxu0 0
      %1057 = vmatprep.subr.bf16.mxu0 0
      %1058 = vmatpush1.bf16.msra.mxu0 0
      %1059 = vmatprep.subr.bf16.mxu0 0
      %1060 = vmatpush1.bf16.msra.mxu0 0
      %1061 = vmatprep.subr.bf16.mxu0 0
      %1062 = vmatpush1.bf16.msra.mxu0 0
      %1063 = vmatprep.mubr.bf16.mxu0 0
      %1064 = vmatmul.mubr.bf16.gmra.mrb[0].mxu0 %v386
      %v1065 = vpop.f32.mrb[0].mxu0
      %v1066 = vadd.f32 %v981, %v1065
      %v1067 = vpop.f32.mrb[0].mxu0
      %v1068 = vpop.f32.mrb[0].mxu0
      %v1069 = vpop.f32.mrb[0].mxu0
      %1070 = vdwg.mxu0
      %s1071 = scalar_lea.vmem %s337, 320
      %v1072 = vld [vmem:[%s1071] sm:$0xf]
      %v1073 = vld [vmem:[%s1071 + $0x4] sm:$0xf]
      %v1074 = vld [vmem:[%s1071 + $0x8] sm:$0xf]
      %v1075 = vld [vmem:[%s1071 + $0xc] sm:$0xf]
      %v1076 = vld [vmem:[%s1071 + $0x10] sm:$0xf]
      %v1077 = vld [vmem:[%s1071 + $0x14] sm:$0xf]
      %v1078 = vld [vmem:[%s1071 + $0x18] sm:$0xf]
      %v1079 = vld [vmem:[%s1071 + $0x1c] sm:$0xf]
      %v1080 = vld [vmem:[%s1071 + $0x20] sm:$0xf]
      %v1081 = vld [vmem:[%s1071 + $0x24] sm:$0xf]
      %v1082 = vld [vmem:[%s1071 + $0x28] sm:$0xf]
      %v1083 = vld [vmem:[%s1071 + $0x2c] sm:$0xf]
      %v1084 = vld [vmem:[%s1071 + $0x30] sm:$0xf]
      %v1085 = vld [vmem:[%s1071 + $0x34] sm:$0xf]
      %v1086 = vld [vmem:[%s1071 + $0x38] sm:$0xf]
      %v1087 = vld [vmem:[%s1071 + $0x3c] sm:$0xf]
      %s1088 = scalar_lea.vmem %s343, 5
      %v1089 = vld [vmem:[%s1088] sm:$0x1]
      %v1091 = vlaneseq
      %v1092 = vshrl.u32 %v1091, 7
      %v1093 = vsub.s32 0, %v1092
      %v1094 = vrot.slane %v1089, %v1093
      %v1112 = vunpack.c.l.b16 %v1072
      %v1113 = vunpack.c.l.b16 %v1073
      %v1114 = vunpack.c.l.b16 %v1074
      %v1115 = vunpack.c.l.b16 %v1075
      %v1116 = vunpack.c.l.b16 %v1076
      %v1117 = vunpack.c.l.b16 %v1077
      %v1118 = vunpack.c.l.b16 %v1078
      %v1119 = vunpack.c.l.b16 %v1079
      %v1120 = vunpack.c.l.b16 %v1080
      %v1121 = vunpack.c.l.b16 %v1081
      %v1122 = vunpack.c.l.b16 %v1082
      %v1123 = vunpack.c.l.b16 %v1083
      %v1124 = vunpack.c.l.b16 %v1084
      %v1125 = vunpack.c.l.b16 %v1085
      %v1126 = vunpack.c.l.b16 %v1086
      %v1127 = vunpack.c.l.b16 %v1087
      %v1128 = vpack.c.b16 %v1113, %v1112
      %v1129 = vpack.c.b16 %v1115, %v1114
      %v1130 = vpack.c.b16 %v1117, %v1116
      %v1131 = vpack.c.b16 %v1119, %v1118
      %v1132 = vpack.c.b16 %v1121, %v1120
      %v1133 = vpack.c.b16 %v1123, %v1122
      %v1134 = vpack.c.b16 %v1125, %v1124
      %v1135 = vpack.c.b16 %v1127, %v1126
      %1144 = vmatprep.subr.bf16.mxu0 0
      %1145 = vmatpush1.bf16.msra.mxu0 %v1128
      %1146 = vmatprep.subr.bf16.mxu0 0
      %1147 = vmatpush1.bf16.msra.mxu0 %v1129
      %1148 = vmatprep.subr.bf16.mxu0 0
      %1149 = vmatpush1.bf16.msra.mxu0 %v1130
      %1150 = vmatprep.subr.bf16.mxu0 0
      %1151 = vmatpush1.bf16.msra.mxu0 %v1131
      %1152 = vmatprep.subr.bf16.mxu0 0
      %1153 = vmatpush1.bf16.msra.mxu0 %v1132
      %1154 = vmatprep.subr.bf16.mxu0 0
      %1155 = vmatpush1.bf16.msra.mxu0 %v1133
      %1156 = vmatprep.subr.bf16.mxu0 0
      %1157 = vmatpush1.bf16.msra.mxu0 %v1134
      %1158 = vmatprep.subr.bf16.mxu0 0
      %1159 = vmatpush1.bf16.msra.mxu0 %v1135
      %1160 = vmatprep.subr.bf16.mxu0 0
      %1161 = vmatpush1.bf16.msra.mxu0 0
      %1162 = vmatprep.subr.bf16.mxu0 0
      %1163 = vmatpush1.bf16.msra.mxu0 0
      %1164 = vmatprep.subr.bf16.mxu0 0
      %1165 = vmatpush1.bf16.msra.mxu0 0
      %1166 = vmatprep.subr.bf16.mxu0 0
      %1167 = vmatpush1.bf16.msra.mxu0 0
      %1168 = vmatprep.subr.bf16.mxu0 0
      %1169 = vmatpush1.bf16.msra.mxu0 0
      %1170 = vmatprep.subr.bf16.mxu0 0
      %1171 = vmatpush1.bf16.msra.mxu0 0
      %1172 = vmatprep.subr.bf16.mxu0 0
      %1173 = vmatpush1.bf16.msra.mxu0 0
      %1174 = vmatprep.subr.bf16.mxu0 0
      %1175 = vmatpush1.bf16.msra.mxu0 0
      %1176 = vmatprep.mubr.bf16.mxu0 0
      %1177 = vmatmul.mubr.bf16.gmra.mrb[0].mxu0 %v386
      %v1178 = vpop.f32.mrb[0].mxu0
      %v1179 = vadd.f32 %v1094, %v1178
      %v1180 = vpop.f32.mrb[0].mxu0
      %v1181 = vpop.f32.mrb[0].mxu0
      %v1182 = vpop.f32.mrb[0].mxu0
      %1183 = vdwg.mxu0
      %v1184 = vpack.c.bf16 %v953, %v953
      %v1185 = vpack.c.bf16 %v1066, %v1066
      %v1187 = vsel %vm732, %v1184, 0
      %v1190 = vsel %vm732, %v1185, 0
      %1192 = vmatprep.subr.bf16.mxu0 0
      %1193 = vmatpush1.bf16.xpose.msra.mxu0 %v1190
      %1194 = vmatprep.subr.bf16.mxu0 0
      %1195 = vmatpush1.bf16.xpose.msra.mxu0 0
      %1196 = vmatprep.subr.bf16.mxu0 0
      %1197 = vmatpush1.bf16.xpose.msra.mxu0 0
      %1198 = vmatprep.subr.bf16.mxu0 0
      %1199 = vmatpush1.bf16.xpose.msra.mxu0 0
      %1200 = vmatprep.subr.bf16.mxu0 0
      %1201 = vmatpush1.bf16.xpose.msra.mxu0 0
      %1202 = vmatprep.subr.bf16.mxu0 0
      %1203 = vmatpush1.bf16.xpose.msra.mxu0 0
      %1204 = vmatprep.subr.bf16.mxu0 0
      %1205 = vmatpush1.bf16.xpose.msra.mxu0 0
      %1206 = vmatprep.subr.bf16.mxu0 0
      %1207 = vmatpush1.bf16.xpose.msra.mxu0 0
      %1208 = vmatprep.subr.bf16.mxu0 0
      %1209 = vmatpush1.bf16.xpose.msra.mxu0 0
      %1210 = vmatprep.subr.bf16.mxu0 0
      %1211 = vmatpush1.bf16.xpose.msra.mxu0 0
      %1212 = vmatprep.subr.bf16.mxu0 0
      %1213 = vmatpush1.bf16.xpose.msra.mxu0 0
      %1214 = vmatprep.subr.bf16.mxu0 0
      %1215 = vmatpush1.bf16.xpose.msra.mxu0 0
      %1216 = vmatprep.subr.bf16.mxu0 0
      %1217 = vmatpush1.bf16.xpose.msra.mxu0 0
      %1218 = vmatprep.subr.bf16.mxu0 0
      %1219 = vmatpush1.bf16.xpose.msra.mxu0 0
      %1220 = vmatprep.subr.bf16.mxu0 0
      %1221 = vmatpush1.bf16.xpose.msra.mxu0 0
      %1222 = vmatprep.subr.bf16.mxu0 0
      %1223 = vmatpush1.bf16.xpose.msra.mxu0 0
      %1224 = vmatprep.mubr.bf16.mxu0 0
      %1225 = vmatmul.mubr.bf16.gmra.mrb[0].mxu0 %v1187
      %v1226 = vpop.f32.mrb[0].mxu0
      %v1227 = vadd.f32 0.0, %v1226
      %v1228 = vpop.f32.mrb[0].mxu0
      %v1229 = vpop.f32.mrb[0].mxu0
      %v1230 = vpop.f32.mrb[0].mxu0
      %1231 = vdwg.mxu0
      %v1232 = vmul.f32 %v1227, 0.125
      %v1233 = vadd.f32 %v1232, %v392
      %v1234 = vsel %vm781, %v1233, -inf
      %1235 = vmax.xlane.f32.xlu0 %v1234
      %v1236 = vpop.xlane.xlu0 %1235
      %v1237 = vsub.f32 %v1233, %v1236
      %v1238 = vmul.f32 %v1237, 1.442695
      %v1239 = vpow.pop %v1238
      %v1240 = vsel %vm781, %v1239, 0.0
      %1241 = vadd.xlane.f32.xlu0 %v1240
      %v1242 = vpop.xlane.xlu0 %1241
      %v1243 = vrcp.pop %v1242
      %v1244 = vmul.f32 %v1239, %v1243
      %v1245 = vpack.c.bf16 %v1244, %v1244
      %v1246 = vpack.c.bf16 %v1179, %v1179
      %v1248 = vsel %vm781, %v1245, 0
      %v1251 = vsel %vm798, %v1246, 0
      %1253 = vmatprep.subr.bf16.mxu0 0
      %1254 = vmatpush1.bf16.msra.mxu0 %v1251
      %1255 = vmatprep.subr.bf16.mxu0 0
      %1256 = vmatpush1.bf16.msra.mxu0 0
      %1257 = vmatprep.subr.bf16.mxu0 0
      %1258 = vmatpush1.bf16.msra.mxu0 0
      %1259 = vmatprep.subr.bf16.mxu0 0
      %1260 = vmatpush1.bf16.msra.mxu0 0
      %1261 = vmatprep.subr.bf16.mxu0 0
      %1262 = vmatpush1.bf16.msra.mxu0 0
      %1263 = vmatprep.subr.bf16.mxu0 0
      %1264 = vmatpush1.bf16.msra.mxu0 0
      %1265 = vmatprep.subr.bf16.mxu0 0
      %1266 = vmatpush1.bf16.msra.mxu0 0
      %1267 = vmatprep.subr.bf16.mxu0 0
      %1268 = vmatpush1.bf16.msra.mxu0 0
      %1269 = vmatprep.subr.bf16.mxu0 0
      %1270 = vmatpush1.bf16.msra.mxu0 0
      %1271 = vmatprep.subr.bf16.mxu0 0
      %1272 = vmatpush1.bf16.msra.mxu0 0
      %1273 = vmatprep.subr.bf16.mxu0 0
      %1274 = vmatpush1.bf16.msra.mxu0 0
      %1275 = vmatprep.subr.bf16.mxu0 0
      %1276 = vmatpush1.bf16.msra.mxu0 0
      %1277 = vmatprep.subr.bf16.mxu0 0
      %1278 = vmatpush1.bf16.msra.mxu0 0
      %1279 = vmatprep.subr.bf16.mxu0 0
      %1280 = vmatpush1.bf16.msra.mxu0 0
      %1281 = vmatprep.subr.bf16.mxu0 0
      %1282 = vmatpush1.bf16.msra.mxu0 0
      %1283 = vmatprep.subr.bf16.mxu0 0
      %1284 = vmatpush1.bf16.msra.mxu0 0
      %1285 = vmatprep.mubr.bf16.mxu0 0
      %1286 = vmatmul.mubr.bf16.gmra.mrb[0].mxu0 %v1248
      %v1287 = vpop.f32.mrb[0].mxu0
      %v1288 = vadd.f32 0.0, %v1287
      %v1289 = vpop.f32.mrb[0].mxu0
      %v1290 = vpop.f32.mrb[0].mxu0
      %v1291 = vpop.f32.mrb[0].mxu0
      %1292 = vdwg.mxu0
      %v1293 = vpack.c.bf16 %v1288, %v1288
      %v1295 = vunpack.c.l.b16 %v1293
      %v1296 = vpack.c.b16 %v1295, %v1295
      %1297 = vrot.lane.b32.xlu0 %v1296, 64
      %v1298 = vpop.permute.xlu0 %1297
      %vm1300 = vcmask 1043968
      %1301 = vst.msk [vmem:[#allocation2] sm:$0xf] %vm1300, %v1298
      %p1302 = scmp.eq.s32.totalorder %s23, 0
      // Predicated region
      $region49: #{clip_text_forward.4} parent=47 // pred_check
        %p1303 = pneg %p1302
      $region50: #{clip_text_forward.4} parent=47 // pred_check_branch
        %1305 = sbr.rel (%p1303) target = $region52
      $region51: #{clip_text_forward.4} parent=47 // pred_region
        %v1306 = vld [vmem:[%s6] sm:$0x1]
        %v1308 = vlaneseq
        %v1309 = vshrl.u32 %v1308, 7
        %v1310 = vsub.s32 0, %v1309
        %v1311 = vrot.slane %v1306, %v1310
        %v1313 = vadd.f32 %v357, %v1311
        %1314 = vst [vmem:[#allocation3] sm:$0xff] %v1313
      $region52: #{clip_text_forward.4} parent=47 // pred_fallthru
        _
      %v1315 = vld [vmem:[#allocation3] sm:$0xff]
      %v1316 = vld [vmem:[#allocation2] sm:$0xf]
      %v1317 = vld [vmem:[%s349] sm:$0xf]
      %v1318 = vld [vmem:[%s349 + $0x4] sm:$0xf]
      %v1319 = vld [vmem:[%s349 + $0x8] sm:$0xf]
      %v1320 = vld [vmem:[%s349 + $0xc] sm:$0xf]
      %v1321 = vld [vmem:[%s349 + $0x10] sm:$0xf]
      %v1322 = vld [vmem:[%s349 + $0x14] sm:$0xf]
      %v1323 = vld [vmem:[%s349 + $0x18] sm:$0xf]
      %v1324 = vld [vmem:[%s349 + $0x1c] sm:$0xf]
      %v1325 = vld [vmem:[%s349 + $0x20] sm:$0xf]
      %v1326 = vld [vmem:[%s349 + $0x24] sm:$0xf]
      %v1327 = vld [vmem:[%s349 + $0x28] sm:$0xf]
      %v1328 = vld [vmem:[%s349 + $0x2c] sm:$0xf]
      %v1329 = vld [vmem:[%s349 + $0x30] sm:$0xf]
      %v1330 = vld [vmem:[%s349 + $0x34] sm:$0xf]
      %v1331 = vld [vmem:[%s349 + $0x38] sm:$0xf]
      %v1332 = vld [vmem:[%s349 + $0x3c] sm:$0xf]
      %v1349 = vunpack.c.l.b16 %v1317
      %v1350 = vunpack.c.l.b16 %v1318
      %v1351 = vunpack.c.l.b16 %v1319
      %v1352 = vunpack.c.l.b16 %v1320
      %v1353 = vunpack.c.l.b16 %v1321
      %v1354 = vunpack.c.l.b16 %v1322
      %v1355 = vunpack.c.l.b16 %v1323
      %v1356 = vunpack.c.l.b16 %v1324
      %v1357 = vunpack.c.l.b16 %v1325
      %v1358 = vunpack.c.l.b16 %v1326
      %v1359 = vunpack.c.l.b16 %v1327
      %v1360 = vunpack.c.l.b16 %v1328
      %v1361 = vunpack.c.l.b16 %v1329
      %v1362 = vunpack.c.l.b16 %v1330
      %v1363 = vunpack.c.l.b16 %v1331
      %v1364 = vunpack.c.l.b16 %v1332
      %v1365 = vpack.c.b16 %v1350, %v1349
      %v1366 = vpack.c.b16 %v1352, %v1351
      %v1367 = vpack.c.b16 %v1354, %v1353
      %v1368 = vpack.c.b16 %v1356, %v1355
      %v1369 = vpack.c.b16 %v1358, %v1357
      %v1370 = vpack.c.b16 %v1360, %v1359
      %v1371 = vpack.c.b16 %v1362, %v1361
      %v1372 = vpack.c.b16 %v1364, %v1363
      %1381 = vmatprep.subr.bf16.mxu0 0
      %1382 = vmatpush1.bf16.msra.mxu0 %v1365
      %1383 = vmatprep.subr.bf16.mxu0 0
      %1384 = vmatpush1.bf16.msra.mxu0 %v1366
      %1385 = vmatprep.subr.bf16.mxu0 0
      %1386 = vmatpush1.bf16.msra.mxu0 %v1367
      %1387 = vmatprep.subr.bf16.mxu0 0
      %1388 = vmatpush1.bf16.msra.mxu0 %v1368
      %1389 = vmatprep.subr.bf16.mxu0 0
      %1390 = vmatpush1.bf16.msra.mxu0 %v1369
      %1391 = vmatprep.subr.bf16.mxu0 0
      %1392 = vmatpush1.bf16.msra.mxu0 %v1370
      %1393 = vmatprep.subr.bf16.mxu0 0
      %1394 = vmatpush1.bf16.msra.mxu0 %v1371
      %1395 = vmatprep.subr.bf16.mxu0 0
      %1396 = vmatpush1.bf16.msra.mxu0 %v1372
      %1397 = vmatprep.subr.bf16.mxu0 0
      %1398 = vmatpush1.bf16.msra.mxu0 0
      %1399 = vmatprep.subr.bf16.mxu0 0
      %1400 = vmatpush1.bf16.msra.mxu0 0
      %1401 = vmatprep.subr.bf16.mxu0 0
      %1402 = vmatpush1.bf16.msra.mxu0 0
      %1403 = vmatprep.subr.bf16.mxu0 0
      %1404 = vmatpush1.bf16.msra.mxu0 0
      %1405 = vmatprep.subr.bf16.mxu0 0
      %1406 = vmatpush1.bf16.msra.mxu0 0
      %1407 = vmatprep.subr.bf16.mxu0 0
      %1408 = vmatpush1.bf16.msra.mxu0 0
      %1409 = vmatprep.subr.bf16.mxu0 0
      %1410 = vmatpush1.bf16.msra.mxu0 0
      %1411 = vmatprep.subr.bf16.mxu0 0
      %1412 = vmatpush1.bf16.msra.mxu0 0
      %1413 = vmatprep.mubr.bf16.mxu0 0
      %1414 = vmatmul.mubr.bf16.gmra.mrb[0].mxu0 %v1316
      %v1415 = vpop.f32.mrb[0].mxu0
      %v1416 = vadd.f32 0.0, %v1415
      %v1417 = vpop.f32.mrb[0].mxu0
      %v1418 = vpop.f32.mrb[0].mxu0
      %v1419 = vpop.f32.mrb[0].mxu0
      %1420 = vdwg.mxu0
      %v1421 = vadd.f32 %v1315, %v1416
      %1422 = vst [vmem:[#allocation3] sm:$0xff] %v1421
      // Predicated region
      $region53: #{clip_text_forward.4} parent=47 // pred_check
        %p1423 = pneg %p1302
      $region54: #{clip_text_forward.4} parent=47 // pred_check_branch
        %1425 = sbr.rel (%p1423) target = $region56
      $region55: #{clip_text_forward.4} parent=47 // pred_region
        %v1426 = vld [vmem:[#allocation3] sm:$0xff]
        %v1427 = vpack.c.bf16 %v1426, %v1426
        %1428 = vst [vmem:[%s354] sm:$0xf] %v1427
      $region56: #{clip_text_forward.4} parent=47 // pred_fallthru
        _
      %p1429 = scmp.lt.s32.totalorder %s22, 1
      %s1430 = scalar_select %p1429, %s22, 1
      %s1431 = smul.addr %s1430, 4
      %s1432 = scalar_lea.vmem %s7, %s1431
      // Predicated region
      $region57: #{clip_text_forward.4} parent=47 // pred_check
        %p1433 = pneg %p215
      $region58: #{clip_text_forward.4} parent=47 // pred_check_branch
        %1435 = sbr.rel (%p1433) target = $region60
      $region59: #{clip_text_forward.4} parent=47 // pred_region
        _
      $region60: #{clip_text_forward.4} parent=47 // pred_fallthru
        _
    $region48: #{clip_text_forward.4} parent=5 // pred_fallthru
      _
    %p1436 = scmp.le.s32.totalorder 2, %s13
    // Predicated region
    $region61: #{clip_text_forward.4} parent=5 // pred_check
      %p1437 = pneg %p1436
    $region62: #{clip_text_forward.4} parent=5 // pred_check_branch
      %1439 = sbr.rel (%p1437) target = $region64
    $region63: #{clip_text_forward.4} parent=5 // pred_region
      %s1440 = ssub.s32 %s13, 2
      // Predicated region
      $region65: #{clip_text_forward.4} parent=63 // pred_check
        %p1441 = pneg %p221
      $region66: #{clip_text_forward.4} parent=63 // pred_check_branch
        %1443 = sbr.rel (%p1441) target = $region68
      $region67: #{clip_text_forward.4} parent=63 // pred_region
        %p1444 = scmp.lt.s32.totalorder %s24, 1
        %s1445 = scalar_select %p1444, %s24, 1
        %s1446 = smul.addr %s1445, 4
        %s1447 = scalar_lea.vmem %s7, %s1446
      $region68: #{clip_text_forward.4} parent=63 // pred_fallthru
        _
    $region64: #{clip_text_forward.4} parent=5 // pred_fallthru
      _
  $region6: #{clip_text_forward.4} parent=0 // loop_footer
    %s17 = sadd.s32 1, %s13
  $region7: #{clip_text_forward.4} parent=0 // loop_footer_branch
    %12 = sbr.rel target = $region3
  $region8: #{clip_text_forward.4} parent=0 // loop_exit
    _

</llo_original>
